<compile_context>
chip_gen: v5e
topology: v5e:2x2
jax: 0.10.0
libtpu: 0.0.40
codegen_flags: <defaults>
</compile_context>

<pallas_src>
import jax
import jax.numpy as jnp
from jax.experimental import pallas as pl
from jax.experimental.pallas import tpu as pltpu

# ---------------- small ALBERT-like config ----------------
VOCAB = 100
TYPE_VOCAB = 2
MAX_POS = 16
E = 32          # embedding size (ALBERT factorized embedding)
H = 128         # hidden size
NHEADS = 4
DHEAD = H // NHEADS
INTER = 256     # intermediate (FFN) size
NLAYERS = 2     # layers (ALBERT shares one set of layer weights)
NLABELS = 2
LN_EPS = 1e-12
B = 2
S = 8
BS = B * S
LANE = 128      # lane-dense width (padded vocab / padded classifier output)


def _layernorm(x, g, b):
    mu = jnp.mean(x, axis=-1, keepdims=True)
    var = jnp.mean(jnp.square(x - mu), axis=-1, keepdims=True)
    return (x - mu) * jax.lax.rsqrt(var + LN_EPS) * g + b


# ---------------- single fused forward kernel ----------------
def fused_forward_kernel(ids_ref, tids_ref, mask_ref,
                         word_ref, type_ref, pos_ref,
                         emb_g_ref, emb_b_ref, proj_w_ref, proj_b_ref,
                         wqkv_ref, bqkv_ref, wo_ref, bo_ref,
                         ln1g_ref, ln1b_ref,
                         w1_ref, b1_ref, w2_ref, b2_ref,
                         ln2g_ref, ln2b_ref,
                         wp_ref, bp_ref, wc_ref, bc_ref,
                         out_ref):
    # ---- embeddings ------------------------------------------------------
    # Word gather as one-hot @ table on the MXU (vocab lane-padded to 128).
    ids = ids_ref[...]                                           # (BS, 1) int32
    lane_iota = jax.lax.broadcasted_iota(jnp.int32, (BS, LANE), 1)
    onehot_w = (lane_iota == ids).astype(jnp.float32)            # (BS, 128)
    word = jnp.dot(onehot_w, word_ref[...],
                   preferred_element_type=jnp.float32)           # (BS, E)

    # Token-type gather: TYPE_VOCAB == 2, exact select/lerp on the VPU.
    t = type_ref[...]                                            # (2, E)
    tid = tids_ref[...].astype(jnp.float32)                      # (BS, 1)
    typ = t[0:1, :] + tid * (t[1:2, :] - t[0:1, :])              # (BS, E)

    # Position embedding: broadcast the (S, E) table over the batch axis.
    e = (word + typ).reshape(B, S, E) + pos_ref[...][None]       # (B, S, E)
    e = e.reshape(BS, E)

    # Embedding LayerNorm over E, then E->H projection.
    e = _layernorm(e, emb_g_ref[...], emb_b_ref[...])
    x = jnp.dot(e, proj_w_ref[...],
                preferred_element_type=jnp.float32) + proj_b_ref[...]   # (BS, H)

    # Hoist the additive-mask broadcast out of the layer/head loops.
    mask_b = jnp.broadcast_to(mask_ref[...], (B, S, S))          # (B, S, S)
    scale = 1.0 / (DHEAD ** 0.5)

    wqkv = wqkv_ref[...]; bqkv = bqkv_ref[...]
    wo = wo_ref[...]; bo = bo_ref[...]
    ln1g = ln1g_ref[...]; ln1b = ln1b_ref[...]
    w1 = w1_ref[...]; b1 = b1_ref[...]
    w2 = w2_ref[...]; b2 = b2_ref[...]
    ln2g = ln2g_ref[...]; ln2b = ln2b_ref[...]

    # ---- NLAYERS shared-weight transformer layers (unrolled) -------------
    for _ in range(NLAYERS):
        # Fused Q/K/V projection for all B*S rows: (BS, 3H)
        qkv = jnp.dot(x, wqkv, preferred_element_type=jnp.float32) + bqkv

        head_ctx = []
        for h in range(NHEADS):
            lo = h * DHEAD
            qh = qkv[:, lo:lo + DHEAD].reshape(B, S, DHEAD)
            kh = qkv[:, H + lo:H + lo + DHEAD].reshape(B, S, DHEAD)
            vh = qkv[:, 2 * H + lo:2 * H + lo + DHEAD].reshape(B, S, DHEAD)

            s = jnp.einsum('bqd,bkd->bqk', qh, kh,
                           preferred_element_type=jnp.float32) * scale   # (B,S,S)
            s = s + mask_b
            s = s - jnp.max(s, axis=-1, keepdims=True)
            p = jnp.exp(s)
            p = p * pl.reciprocal(jnp.sum(p, axis=-1, keepdims=True), approx=True)
            c = jnp.einsum('bqk,bkd->bqd', p, vh,
                           preferred_element_type=jnp.float32)           # (B,S,D)
            head_ctx.append(c.reshape(BS, DHEAD))

        # Concatenate per-head contexts, single full-width output projection.
        ctx = jnp.concatenate(head_ctx, axis=-1)                         # (BS, H)
        attn = jnp.dot(ctx, wo, preferred_element_type=jnp.float32) + bo

        h1 = _layernorm(x + attn, ln1g, ln1b)                            # (BS, H)

        f = jnp.dot(h1, w1, preferred_element_type=jnp.float32) + b1
        f = jax.nn.gelu(f, approximate=True)                             # gelu_new
        f = jnp.dot(f, w2, preferred_element_type=jnp.float32) + b2

        x = _layernorm(h1 + f, ln2g, ln2b)

    # ---- pooler (tanh on CLS) + classifier (lane-padded logits) ----------
    cls = x.reshape(B, S, H)[:, 0, :]                                    # (B, H)
    pooled = jnp.tanh(
        jnp.dot(cls, wp_ref[...], preferred_element_type=jnp.float32) + bp_ref[...])
    logits = jnp.dot(pooled, wc_ref[...],
                     preferred_element_type=jnp.float32) + bc_ref[...]   # (B, LANE)
    out_ref[...] = logits.astype(out_ref.dtype)


# ---------------- parameters ----------------
def init_params(key):
    ks = jax.random.split(key, 16)
    n = lambda k, shp: (jax.random.normal(k, shp, jnp.float32) * 0.02)
    return dict(
        word_emb=n(ks[0], (VOCAB, E)),
        pos_emb=n(ks[1], (MAX_POS, E)),
        type_emb=n(ks[2], (TYPE_VOCAB, E)),
        emb_ln_g=jnp.ones((1, E), jnp.float32),
        emb_ln_b=jnp.zeros((1, E), jnp.float32),
        proj_w=n(ks[3], (E, H)), proj_b=jnp.zeros((1, H), jnp.float32),
        wq=n(ks[4], (H, H)), bq=jnp.zeros((1, H), jnp.float32),
        wk=n(ks[5], (H, H)), bk=jnp.zeros((1, H), jnp.float32),
        wv=n(ks[6], (H, H)), bv=jnp.zeros((1, H), jnp.float32),
        wo=n(ks[7], (H, H)), bo=jnp.zeros((1, H), jnp.float32),
        ln1_g=jnp.ones((1, H), jnp.float32), ln1_b=jnp.zeros((1, H), jnp.float32),
        w1=n(ks[8], (H, INTER)), b1=jnp.zeros((1, INTER), jnp.float32),
        w2=n(ks[9], (INTER, H)), b2=jnp.zeros((1, H), jnp.float32),
        ln2_g=jnp.ones((1, H), jnp.float32), ln2_b=jnp.zeros((1, H), jnp.float32),
        wp=n(ks[10], (H, H)), bp=jnp.zeros((1, H), jnp.float32),
        wc=n(ks[11], (H, NLABELS)), bc=jnp.zeros((1, NLABELS), jnp.float32),
    )


# ---------------- wrapper (single pallas_call) ----------------
def albert_forward(params, input_ids, attention_mask, token_type_ids):
    ids = input_ids.reshape(BS, 1).astype(jnp.int32)
    tids = token_type_ids.reshape(BS, 1).astype(jnp.int32)

    # Additive attention mask, HF-style: 0 where attended, large-neg where padded.
    add_mask = (1.0 - attention_mask.astype(jnp.float32)) * (-1e9)
    add_mask = add_mask[:, None, :]                               # (B, 1, S)

    # Lane-pad the word-embedding table (rows) for the one-hot MXU gather;
    # fuse Q/K/V weights; lane-pad classifier head to 128 columns.
    word_pad = jnp.zeros((LANE, E), jnp.float32).at[:VOCAB].set(params['word_emb'])
    pos_s = params['pos_emb'][:S]                                 # (S, E)
    wqkv = jnp.concatenate([params['wq'], params['wk'], params['wv']], axis=1)
    bqkv = jnp.concatenate([params['bq'], params['bk'], params['bv']], axis=1)
    wc_pad = jnp.zeros((H, LANE), jnp.float32).at[:, :NLABELS].set(params['wc'])
    bc_pad = jnp.zeros((1, LANE), jnp.float32).at[:, :NLABELS].set(params['bc'])

    logits_pad = pl.pallas_call(
        fused_forward_kernel,
        out_shape=jax.ShapeDtypeStruct((B, LANE), jnp.float32),
        compiler_params=pltpu.CompilerParams(vmem_limit_bytes=16 * 1024 * 1024),
    )(ids, tids, add_mask,
      word_pad, params['type_emb'], pos_s,
      params['emb_ln_g'], params['emb_ln_b'], params['proj_w'], params['proj_b'],
      wqkv, bqkv, params['wo'], params['bo'],
      params['ln1_g'], params['ln1_b'],
      params['w1'], params['b1'], params['w2'], params['b2'],
      params['ln2_g'], params['ln2_b'],
      params['wp'], params['bp'], wc_pad, bc_pad)

    return logits_pad[:, :NLABELS]


if __name__ == "__main__":
    key = jax.random.PRNGKey(0)
    pkey, dkey = jax.random.split(key)
    params = init_params(pkey)

    input_ids = jax.random.randint(dkey, (B, S), 0, VOCAB, dtype=jnp.int32)
    attention_mask = jnp.ones((B, S), jnp.int32).at[1, 6:].set(0)  # pad tail of seq 1
    token_type_ids = jnp.zeros((B, S), jnp.int32)

    logits = jax.jit(albert_forward)(params, input_ids, attention_mask, token_type_ids)
    logits = jax.block_until_ready(logits)
    assert logits.shape == (B, NLABELS) and logits.dtype == jnp.float32
    print("KERNEL_OK")
</pallas_src>

<mosaic_0001>
module attributes {stable_mosaic.version = 11 : i64} {
  func.func @fused_forward_kernel(%arg0: memref<16x1xi32, #tpu.memory_space<vmem>>, %arg1: memref<16x1xi32, #tpu.memory_space<vmem>>, %arg2: memref<2x1x8xf32, #tpu.memory_space<vmem>>, %arg3: memref<128x32xf32, #tpu.memory_space<vmem>>, %arg4: memref<2x32xf32, #tpu.memory_space<vmem>>, %arg5: memref<8x32xf32, #tpu.memory_space<vmem>>, %arg6: memref<1x32xf32, #tpu.memory_space<vmem>>, %arg7: memref<1x32xf32, #tpu.memory_space<vmem>>, %arg8: memref<32x128xf32, #tpu.memory_space<vmem>>, %arg9: memref<1x128xf32, #tpu.memory_space<vmem>>, %arg10: memref<128x384xf32, #tpu.memory_space<vmem>>, %arg11: memref<1x384xf32, #tpu.memory_space<vmem>>, %arg12: memref<128x128xf32, #tpu.memory_space<vmem>>, %arg13: memref<1x128xf32, #tpu.memory_space<vmem>>, %arg14: memref<1x128xf32, #tpu.memory_space<vmem>>, %arg15: memref<1x128xf32, #tpu.memory_space<vmem>>, %arg16: memref<128x256xf32, #tpu.memory_space<vmem>>, %arg17: memref<1x256xf32, #tpu.memory_space<vmem>>, %arg18: memref<256x128xf32, #tpu.memory_space<vmem>>, %arg19: memref<1x128xf32, #tpu.memory_space<vmem>>, %arg20: memref<1x128xf32, #tpu.memory_space<vmem>>, %arg21: memref<1x128xf32, #tpu.memory_space<vmem>>, %arg22: memref<128x128xf32, #tpu.memory_space<vmem>>, %arg23: memref<1x128xf32, #tpu.memory_space<vmem>>, %arg24: memref<128x128xf32, #tpu.memory_space<vmem>>, %arg25: memref<1x128xf32, #tpu.memory_space<vmem>>, %arg26: memref<2x128xf32, #tpu.memory_space<vmem>>) attributes {dimension_semantics = [], scalar_prefetch = 0 : i64, scratch_operands = 0 : i64, tpu.core_type = #tpu.core_type<tc>} {
    %c0 = arith.constant 0 : index
    %c0_0 = arith.constant 0 : index
    %0 = vector.load %arg0[%c0, %c0_0] : memref<16x1xi32, #tpu.memory_space<vmem>>, vector<16x1xi32>
    %1 = tpu.iota {dimensions = array<i32: 1>} : vector<16x128xi32>
    %2 = vector.broadcast %0 : vector<16x1xi32> to vector<16x128xi32>
    %3 = arith.cmpi eq, %1, %2 : vector<16x128xi32>
    %4 = arith.extui %3 : vector<16x128xi1> to vector<16x128xi32>
    %5 = arith.sitofp %4 : vector<16x128xi32> to vector<16x128xf32>
    %c0_1 = arith.constant 0 : index
    %c0_2 = arith.constant 0 : index
    %6 = vector.load %arg3[%c0_1, %c0_2] : memref<128x32xf32, #tpu.memory_space<vmem>>, vector<128x32xf32>
    %cst = arith.constant dense<0.000000e+00> : vector<16x32xf32>
    %7 = tpu.matmul %5, %6, %cst {dimension_numbers = #tpu.dot_dimension_numbers<[1], [0], [0], [1], [0, 0, 1, 1], [], []>} : vector<16x128xf32>, vector<128x32xf32>, vector<16x32xf32> -> vector<16x32xf32>
    %c0_3 = arith.constant 0 : index
    %c0_4 = arith.constant 0 : index
    %8 = vector.load %arg4[%c0_3, %c0_4] : memref<2x32xf32, #tpu.memory_space<vmem>>, vector<2x32xf32>
    %c0_5 = arith.constant 0 : index
    %c0_6 = arith.constant 0 : index
    %9 = vector.load %arg1[%c0_5, %c0_6] : memref<16x1xi32, #tpu.memory_space<vmem>>, vector<16x1xi32>
    %10 = arith.sitofp %9 : vector<16x1xi32> to vector<16x1xf32>
    %11 = vector.extract_strided_slice %8 {offsets = [0, 0], sizes = [1, 32], strides = [1, 1]} : vector<2x32xf32> to vector<1x32xf32>
    %12 = vector.extract_strided_slice %8 {offsets = [1, 0], sizes = [1, 32], strides = [1, 1]} : vector<2x32xf32> to vector<1x32xf32>
    %13 = vector.extract_strided_slice %8 {offsets = [0, 0], sizes = [1, 32], strides = [1, 1]} : vector<2x32xf32> to vector<1x32xf32>
    %14 = arith.subf %12, %13 : vector<1x32xf32>
    %15 = vector.broadcast %10 : vector<16x1xf32> to vector<16x32xf32>
    %16 = vector.broadcast %14 : vector<1x32xf32> to vector<16x32xf32>
    %17 = arith.mulf %15, %16 : vector<16x32xf32>
    %18 = vector.broadcast %11 : vector<1x32xf32> to vector<16x32xf32>
    %19 = arith.addf %18, %17 : vector<16x32xf32>
    %20 = arith.addf %7, %19 : vector<16x32xf32>
    %21 = vector.shape_cast %20 : vector<16x32xf32> to vector<2x8x32xf32>
    %c0_7 = arith.constant 0 : index
    %c0_8 = arith.constant 0 : index
    %22 = vector.load %arg5[%c0_7, %c0_8] : memref<8x32xf32, #tpu.memory_space<vmem>>, vector<8x32xf32>
    %23 = vector.shape_cast %22 : vector<8x32xf32> to vector<1x8x32xf32>
    %24 = vector.broadcast %23 : vector<1x8x32xf32> to vector<2x8x32xf32>
    %25 = arith.addf %21, %24 : vector<2x8x32xf32>
    %26 = vector.shape_cast %25 : vector<2x8x32xf32> to vector<16x32xf32>
    %c0_9 = arith.constant 0 : index
    %c0_10 = arith.constant 0 : index
    %27 = vector.load %arg6[%c0_9, %c0_10] : memref<1x32xf32, #tpu.memory_space<vmem>>, vector<1x32xf32>
    %c0_11 = arith.constant 0 : index
    %c0_12 = arith.constant 0 : index
    %28 = vector.load %arg7[%c0_11, %c0_12] : memref<1x32xf32, #tpu.memory_space<vmem>>, vector<1x32xf32>
    %cst_13 = arith.constant dense<0.000000e+00> : vector<16xf32>
    %29 = vector.multi_reduction <add>, %26, %cst_13 [1] : vector<16x32xf32> to vector<16xf32>
    %30 = vector.shape_cast %29 : vector<16xf32> to vector<16x1xf32>
    %cst_14 = arith.constant 3.200000e+01 : f32
    %31 = vector.broadcast %cst_14 : f32 to vector<16x1xf32>
    %32 = arith.divf %30, %31 : vector<16x1xf32>
    %33 = vector.broadcast %32 : vector<16x1xf32> to vector<16x32xf32>
    %34 = arith.subf %26, %33 : vector<16x32xf32>
    %35 = arith.mulf %34, %34 : vector<16x32xf32>
    %cst_15 = arith.constant dense<0.000000e+00> : vector<16xf32>
    %36 = vector.multi_reduction <add>, %35, %cst_15 [1] : vector<16x32xf32> to vector<16xf32>
    %37 = vector.shape_cast %36 : vector<16xf32> to vector<16x1xf32>
    %cst_16 = arith.constant 3.200000e+01 : f32
    %38 = vector.broadcast %cst_16 : f32 to vector<16x1xf32>
    %39 = arith.divf %37, %38 : vector<16x1xf32>
    %40 = vector.broadcast %32 : vector<16x1xf32> to vector<16x32xf32>
    %41 = arith.subf %26, %40 : vector<16x32xf32>
    %cst_17 = arith.constant 9.99999996E-13 : f32
    %42 = vector.broadcast %cst_17 : f32 to vector<16x1xf32>
    %43 = arith.addf %39, %42 : vector<16x1xf32>
    %44 = math.rsqrt %43 : vector<16x1xf32>
    %45 = vector.broadcast %44 : vector<16x1xf32> to vector<16x32xf32>
    %46 = arith.mulf %41, %45 : vector<16x32xf32>
    %47 = vector.broadcast %27 : vector<1x32xf32> to vector<16x32xf32>
    %48 = arith.mulf %46, %47 : vector<16x32xf32>
    %49 = vector.broadcast %28 : vector<1x32xf32> to vector<16x32xf32>
    %50 = arith.addf %48, %49 : vector<16x32xf32>
    %c0_18 = arith.constant 0 : index
    %c0_19 = arith.constant 0 : index
    %51 = vector.load %arg8[%c0_18, %c0_19] : memref<32x128xf32, #tpu.memory_space<vmem>>, vector<32x128xf32>
    %cst_20 = arith.constant dense<0.000000e+00> : vector<16x128xf32>
    %52 = tpu.matmul %50, %51, %cst_20 {dimension_numbers = #tpu.dot_dimension_numbers<[1], [0], [0], [1], [0, 0, 1, 1], [], []>} : vector<16x32xf32>, vector<32x128xf32>, vector<16x128xf32> -> vector<16x128xf32>
    %c0_21 = arith.constant 0 : index
    %c0_22 = arith.constant 0 : index
    %53 = vector.load %arg9[%c0_21, %c0_22] : memref<1x128xf32, #tpu.memory_space<vmem>>, vector<1x128xf32>
    %54 = vector.broadcast %53 : vector<1x128xf32> to vector<16x128xf32>
    %55 = arith.addf %52, %54 : vector<16x128xf32>
    %c0_23 = arith.constant 0 : index
    %c0_24 = arith.constant 0 : index
    %c0_25 = arith.constant 0 : index
    %56 = vector.load %arg2[%c0_23, %c0_24, %c0_25] : memref<2x1x8xf32, #tpu.memory_space<vmem>>, vector<2x1x8xf32>
    %57 = vector.shape_cast %56 : vector<2x1x8xf32> to vector<2x1x8xf32>
    %58 = vector.broadcast %57 : vector<2x1x8xf32> to vector<2x8x8xf32>
    %c0_26 = arith.constant 0 : index
    %c0_27 = arith.constant 0 : index
    %59 = vector.load %arg10[%c0_26, %c0_27] : memref<128x384xf32, #tpu.memory_space<vmem>>, vector<128x384xf32>
    %c0_28 = arith.constant 0 : index
    %c0_29 = arith.constant 0 : index
    %60 = vector.load %arg11[%c0_28, %c0_29] : memref<1x384xf32, #tpu.memory_space<vmem>>, vector<1x384xf32>
    %c0_30 = arith.constant 0 : index
    %c0_31 = arith.constant 0 : index
    %61 = vector.load %arg12[%c0_30, %c0_31] : memref<128x128xf32, #tpu.memory_space<vmem>>, vector<128x128xf32>
    %c0_32 = arith.constant 0 : index
    %c0_33 = arith.constant 0 : index
    %62 = vector.load %arg13[%c0_32, %c0_33] : memref<1x128xf32, #tpu.memory_space<vmem>>, vector<1x128xf32>
    %c0_34 = arith.constant 0 : index
    %c0_35 = arith.constant 0 : index
    %63 = vector.load %arg14[%c0_34, %c0_35] : memref<1x128xf32, #tpu.memory_space<vmem>>, vector<1x128xf32>
    %c0_36 = arith.constant 0 : index
    %c0_37 = arith.constant 0 : index
    %64 = vector.load %arg15[%c0_36, %c0_37] : memref<1x128xf32, #tpu.memory_space<vmem>>, vector<1x128xf32>
    %c0_38 = arith.constant 0 : index
    %c0_39 = arith.constant 0 : index
    %65 = vector.load %arg16[%c0_38, %c0_39] : memref<128x256xf32, #tpu.memory_space<vmem>>, vector<128x256xf32>
    %c0_40 = arith.constant 0 : index
    %c0_41 = arith.constant 0 : index
    %66 = vector.load %arg17[%c0_40, %c0_41] : memref<1x256xf32, #tpu.memory_space<vmem>>, vector<1x256xf32>
    %c0_42 = arith.constant 0 : index
    %c0_43 = arith.constant 0 : index
    %67 = vector.load %arg18[%c0_42, %c0_43] : memref<256x128xf32, #tpu.memory_space<vmem>>, vector<256x128xf32>
    %c0_44 = arith.constant 0 : index
    %c0_45 = arith.constant 0 : index
    %68 = vector.load %arg19[%c0_44, %c0_45] : memref<1x128xf32, #tpu.memory_space<vmem>>, vector<1x128xf32>
    %c0_46 = arith.constant 0 : index
    %c0_47 = arith.constant 0 : index
    %69 = vector.load %arg20[%c0_46, %c0_47] : memref<1x128xf32, #tpu.memory_space<vmem>>, vector<1x128xf32>
    %c0_48 = arith.constant 0 : index
    %c0_49 = arith.constant 0 : index
    %70 = vector.load %arg21[%c0_48, %c0_49] : memref<1x128xf32, #tpu.memory_space<vmem>>, vector<1x128xf32>
    %cst_50 = arith.constant dense<0.000000e+00> : vector<16x384xf32>
    %71 = tpu.matmul %55, %59, %cst_50 {dimension_numbers = #tpu.dot_dimension_numbers<[1], [0], [0], [1], [0, 0, 1, 1], [], []>} : vector<16x128xf32>, vector<128x384xf32>, vector<16x384xf32> -> vector<16x384xf32>
    %72 = vector.broadcast %60 : vector<1x384xf32> to vector<16x384xf32>
    %73 = arith.addf %71, %72 : vector<16x384xf32>
    %74 = vector.extract_strided_slice %73 {offsets = [0, 0], sizes = [16, 32], strides = [1, 1]} : vector<16x384xf32> to vector<16x32xf32>
    %75 = vector.shape_cast %74 : vector<16x32xf32> to vector<2x8x32xf32>
    %76 = vector.extract_strided_slice %73 {offsets = [0, 128], sizes = [16, 32], strides = [1, 1]} : vector<16x384xf32> to vector<16x32xf32>
    %77 = vector.shape_cast %76 : vector<16x32xf32> to vector<2x8x32xf32>
    %78 = vector.extract_strided_slice %73 {offsets = [0, 256], sizes = [16, 32], strides = [1, 1]} : vector<16x384xf32> to vector<16x32xf32>
    %79 = vector.shape_cast %78 : vector<16x32xf32> to vector<2x8x32xf32>
    "tpu.trace_start"() <{level = 10 : i32, message = "bqd,bkd->bqk"}> : () -> ()
    %cst_51 = arith.constant dense<0.000000e+00> : vector<2x8x8xf32>
    %80 = tpu.matmul %75, %77, %cst_51 {dimension_numbers = #tpu.dot_dimension_numbers<[2], [2], [1], [1], [0, 0, 0, 1, 1, 1], [0], [0]>} : vector<2x8x32xf32>, vector<2x8x32xf32>, vector<2x8x8xf32> -> vector<2x8x8xf32>
    "tpu.trace_stop"() : () -> ()
    %cst_52 = arith.constant 0.176776692 : f32
    %81 = vector.broadcast %cst_52 : f32 to vector<2x8x8xf32>
    %82 = arith.mulf %80, %81 : vector<2x8x8xf32>
    %83 = arith.addf %82, %58 : vector<2x8x8xf32>
    %cst_53 = arith.constant dense<0xFF800000> : vector<2x8xf32>
    %84 = vector.multi_reduction <maximumf>, %83, %cst_53 [2] : vector<2x8x8xf32> to vector<2x8xf32>
    %85 = vector.shape_cast %84 : vector<2x8xf32> to vector<2x8x1xf32>
    %86 = vector.broadcast %85 : vector<2x8x1xf32> to vector<2x8x8xf32>
    %87 = arith.subf %83, %86 : vector<2x8x8xf32>
    %88 = math.exp %87 : vector<2x8x8xf32>
    %cst_54 = arith.constant dense<0.000000e+00> : vector<2x8xf32>
    %89 = vector.multi_reduction <add>, %88, %cst_54 [2] : vector<2x8x8xf32> to vector<2x8xf32>
    %90 = vector.shape_cast %89 : vector<2x8xf32> to vector<2x8x1xf32>
    %91 = tpu.reciprocal %90 {approx = true} : vector<2x8x1xf32> -> vector<2x8x1xf32>
    %92 = vector.broadcast %91 : vector<2x8x1xf32> to vector<2x8x8xf32>
    %93 = arith.mulf %88, %92 : vector<2x8x8xf32>
    "tpu.trace_start"() <{level = 10 : i32, message = "bqk,bkd->bqd"}> : () -> ()
    %cst_55 = arith.constant dense<0.000000e+00> : vector<2x8x32xf32>
    %94 = tpu.matmul %93, %79, %cst_55 {dimension_numbers = #tpu.dot_dimension_numbers<[2], [1], [1], [2], [0, 0, 0, 1, 1, 2], [0], [0]>} : vector<2x8x8xf32>, vector<2x8x32xf32>, vector<2x8x32xf32> -> vector<2x8x32xf32>
    "tpu.trace_stop"() : () -> ()
    %95 = vector.shape_cast %94 : vector<2x8x32xf32> to vector<16x32xf32>
    %96 = vector.extract_strided_slice %73 {offsets = [0, 32], sizes = [16, 32], strides = [1, 1]} : vector<16x384xf32> to vector<16x32xf32>
    %97 = vector.shape_cast %96 : vector<16x32xf32> to vector<2x8x32xf32>
    %98 = vector.extract_strided_slice %73 {offsets = [0, 160], sizes = [16, 32], strides = [1, 1]} : vector<16x384xf32> to vector<16x32xf32>
    %99 = vector.shape_cast %98 : vector<16x32xf32> to vector<2x8x32xf32>
    %100 = vector.extract_strided_slice %73 {offsets = [0, 288], sizes = [16, 32], strides = [1, 1]} : vector<16x384xf32> to vector<16x32xf32>
    %101 = vector.shape_cast %100 : vector<16x32xf32> to vector<2x8x32xf32>
    "tpu.trace_start"() <{level = 10 : i32, message = "bqd,bkd->bqk"}> : () -> ()
    %cst_56 = arith.constant dense<0.000000e+00> : vector<2x8x8xf32>
    %102 = tpu.matmul %97, %99, %cst_56 {dimension_numbers = #tpu.dot_dimension_numbers<[2], [2], [1], [1], [0, 0, 0, 1, 1, 1], [0], [0]>} : vector<2x8x32xf32>, vector<2x8x32xf32>, vector<2x8x8xf32> -> vector<2x8x8xf32>
    "tpu.trace_stop"() : () -> ()
    %cst_57 = arith.constant 0.176776692 : f32
    %103 = vector.broadcast %cst_57 : f32 to vector<2x8x8xf32>
    %104 = arith.mulf %102, %103 : vector<2x8x8xf32>
    %105 = arith.addf %104, %58 : vector<2x8x8xf32>
    %cst_58 = arith.constant dense<0xFF800000> : vector<2x8xf32>
    %106 = vector.multi_reduction <maximumf>, %105, %cst_58 [2] : vector<2x8x8xf32> to vector<2x8xf32>
    %107 = vector.shape_cast %106 : vector<2x8xf32> to vector<2x8x1xf32>
    %108 = vector.broadcast %107 : vector<2x8x1xf32> to vector<2x8x8xf32>
    %109 = arith.subf %105, %108 : vector<2x8x8xf32>
    %110 = math.exp %109 : vector<2x8x8xf32>
    %cst_59 = arith.constant dense<0.000000e+00> : vector<2x8xf32>
    %111 = vector.multi_reduction <add>, %110, %cst_59 [2] : vector<2x8x8xf32> to vector<2x8xf32>
    %112 = vector.shape_cast %111 : vector<2x8xf32> to vector<2x8x1xf32>
    %113 = tpu.reciprocal %112 {approx = true} : vector<2x8x1xf32> -> vector<2x8x1xf32>
    %114 = vector.broadcast %113 : vector<2x8x1xf32> to vector<2x8x8xf32>
    %115 = arith.mulf %110, %114 : vector<2x8x8xf32>
    "tpu.trace_start"() <{level = 10 : i32, message = "bqk,bkd->bqd"}> : () -> ()
    %cst_60 = arith.constant dense<0.000000e+00> : vector<2x8x32xf32>
    %116 = tpu.matmul %115, %101, %cst_60 {dimension_numbers = #tpu.dot_dimension_numbers<[2], [1], [1], [2], [0, 0, 0, 1, 1, 2], [0], [0]>} : vector<2x8x8xf32>, vector<2x8x32xf32>, vector<2x8x32xf32> -> vector<2x8x32xf32>
    "tpu.trace_stop"() : () -> ()
    %117 = vector.shape_cast %116 : vector<2x8x32xf32> to vector<16x32xf32>
    %118 = vector.extract_strided_slice %73 {offsets = [0, 64], sizes = [16, 32], strides = [1, 1]} : vector<16x384xf32> to vector<16x32xf32>
    %119 = vector.shape_cast %118 : vector<16x32xf32> to vector<2x8x32xf32>
    %120 = vector.extract_strided_slice %73 {offsets = [0, 192], sizes = [16, 32], strides = [1, 1]} : vector<16x384xf32> to vector<16x32xf32>
    %121 = vector.shape_cast %120 : vector<16x32xf32> to vector<2x8x32xf32>
    %122 = vector.extract_strided_slice %73 {offsets = [0, 320], sizes = [16, 32], strides = [1, 1]} : vector<16x384xf32> to vector<16x32xf32>
    %123 = vector.shape_cast %122 : vector<16x32xf32> to vector<2x8x32xf32>
    "tpu.trace_start"() <{level = 10 : i32, message = "bqd,bkd->bqk"}> : () -> ()
    %cst_61 = arith.constant dense<0.000000e+00> : vector<2x8x8xf32>
    %124 = tpu.matmul %119, %121, %cst_61 {dimension_numbers = #tpu.dot_dimension_numbers<[2], [2], [1], [1], [0, 0, 0, 1, 1, 1], [0], [0]>} : vector<2x8x32xf32>, vector<2x8x32xf32>, vector<2x8x8xf32> -> vector<2x8x8xf32>
    "tpu.trace_stop"() : () -> ()
    %cst_62 = arith.constant 0.176776692 : f32
    %125 = vector.broadcast %cst_62 : f32 to vector<2x8x8xf32>
    %126 = arith.mulf %124, %125 : vector<2x8x8xf32>
    %127 = arith.addf %126, %58 : vector<2x8x8xf32>
    %cst_63 = arith.constant dense<0xFF800000> : vector<2x8xf32>
    %128 = vector.multi_reduction <maximumf>, %127, %cst_63 [2] : vector<2x8x8xf32> to vector<2x8xf32>
    %129 = vector.shape_cast %128 : vector<2x8xf32> to vector<2x8x1xf32>
    %130 = vector.broadcast %129 : vector<2x8x1xf32> to vector<2x8x8xf32>
    %131 = arith.subf %127, %130 : vector<2x8x8xf32>
    %132 = math.exp %131 : vector<2x8x8xf32>
    %cst_64 = arith.constant dense<0.000000e+00> : vector<2x8xf32>
    %133 = vector.multi_reduction <add>, %132, %cst_64 [2] : vector<2x8x8xf32> to vector<2x8xf32>
    %134 = vector.shape_cast %133 : vector<2x8xf32> to vector<2x8x1xf32>
    %135 = tpu.reciprocal %134 {approx = true} : vector<2x8x1xf32> -> vector<2x8x1xf32>
    %136 = vector.broadcast %135 : vector<2x8x1xf32> to vector<2x8x8xf32>
    %137 = arith.mulf %132, %136 : vector<2x8x8xf32>
    "tpu.trace_start"() <{level = 10 : i32, message = "bqk,bkd->bqd"}> : () -> ()
    %cst_65 = arith.constant dense<0.000000e+00> : vector<2x8x32xf32>
    %138 = tpu.matmul %137, %123, %cst_65 {dimension_numbers = #tpu.dot_dimension_numbers<[2], [1], [1], [2], [0, 0, 0, 1, 1, 2], [0], [0]>} : vector<2x8x8xf32>, vector<2x8x32xf32>, vector<2x8x32xf32> -> vector<2x8x32xf32>
    "tpu.trace_stop"() : () -> ()
    %139 = vector.shape_cast %138 : vector<2x8x32xf32> to vector<16x32xf32>
    %140 = vector.extract_strided_slice %73 {offsets = [0, 96], sizes = [16, 32], strides = [1, 1]} : vector<16x384xf32> to vector<16x32xf32>
    %141 = vector.shape_cast %140 : vector<16x32xf32> to vector<2x8x32xf32>
    %142 = vector.extract_strided_slice %73 {offsets = [0, 224], sizes = [16, 32], strides = [1, 1]} : vector<16x384xf32> to vector<16x32xf32>
    %143 = vector.shape_cast %142 : vector<16x32xf32> to vector<2x8x32xf32>
    %144 = vector.extract_strided_slice %73 {offsets = [0, 352], sizes = [16, 32], strides = [1, 1]} : vector<16x384xf32> to vector<16x32xf32>
    %145 = vector.shape_cast %144 : vector<16x32xf32> to vector<2x8x32xf32>
    "tpu.trace_start"() <{level = 10 : i32, message = "bqd,bkd->bqk"}> : () -> ()
    %cst_66 = arith.constant dense<0.000000e+00> : vector<2x8x8xf32>
    %146 = tpu.matmul %141, %143, %cst_66 {dimension_numbers = #tpu.dot_dimension_numbers<[2], [2], [1], [1], [0, 0, 0, 1, 1, 1], [0], [0]>} : vector<2x8x32xf32>, vector<2x8x32xf32>, vector<2x8x8xf32> -> vector<2x8x8xf32>
    "tpu.trace_stop"() : () -> ()
    %cst_67 = arith.constant 0.176776692 : f32
    %147 = vector.broadcast %cst_67 : f32 to vector<2x8x8xf32>
    %148 = arith.mulf %146, %147 : vector<2x8x8xf32>
    %149 = arith.addf %148, %58 : vector<2x8x8xf32>
    %cst_68 = arith.constant dense<0xFF800000> : vector<2x8xf32>
    %150 = vector.multi_reduction <maximumf>, %149, %cst_68 [2] : vector<2x8x8xf32> to vector<2x8xf32>
    %151 = vector.shape_cast %150 : vector<2x8xf32> to vector<2x8x1xf32>
    %152 = vector.broadcast %151 : vector<2x8x1xf32> to vector<2x8x8xf32>
    %153 = arith.subf %149, %152 : vector<2x8x8xf32>
    %154 = math.exp %153 : vector<2x8x8xf32>
    %cst_69 = arith.constant dense<0.000000e+00> : vector<2x8xf32>
    %155 = vector.multi_reduction <add>, %154, %cst_69 [2] : vector<2x8x8xf32> to vector<2x8xf32>
    %156 = vector.shape_cast %155 : vector<2x8xf32> to vector<2x8x1xf32>
    %157 = tpu.reciprocal %156 {approx = true} : vector<2x8x1xf32> -> vector<2x8x1xf32>
    %158 = vector.broadcast %157 : vector<2x8x1xf32> to vector<2x8x8xf32>
    %159 = arith.mulf %154, %158 : vector<2x8x8xf32>
    "tpu.trace_start"() <{level = 10 : i32, message = "bqk,bkd->bqd"}> : () -> ()
    %cst_70 = arith.constant dense<0.000000e+00> : vector<2x8x32xf32>
    %160 = tpu.matmul %159, %145, %cst_70 {dimension_numbers = #tpu.dot_dimension_numbers<[2], [1], [1], [2], [0, 0, 0, 1, 1, 2], [0], [0]>} : vector<2x8x8xf32>, vector<2x8x32xf32>, vector<2x8x32xf32> -> vector<2x8x32xf32>
    "tpu.trace_stop"() : () -> ()
    %161 = vector.shape_cast %160 : vector<2x8x32xf32> to vector<16x32xf32>
    %162 = tpu.concatenate %95, %117, %139, %161 in 1 : vector<16x32xf32>, vector<16x32xf32>, vector<16x32xf32>, vector<16x32xf32> -> vector<16x128xf32>
    %cst_71 = arith.constant dense<0.000000e+00> : vector<16x128xf32>
    %163 = tpu.matmul %162, %61, %cst_71 {dimension_numbers = #tpu.dot_dimension_numbers<[1], [0], [0], [1], [0, 0, 1, 1], [], []>} : vector<16x128xf32>, vector<128x128xf32>, vector<16x128xf32> -> vector<16x128xf32>
    %164 = vector.broadcast %62 : vector<1x128xf32> to vector<16x128xf32>
    %165 = arith.addf %163, %164 : vector<16x128xf32>
    %166 = arith.addf %55, %165 : vector<16x128xf32>
    %cst_72 = arith.constant dense<0.000000e+00> : vector<16xf32>
    %167 = vector.multi_reduction <add>, %166, %cst_72 [1] : vector<16x128xf32> to vector<16xf32>
    %168 = vector.shape_cast %167 : vector<16xf32> to vector<16x1xf32>
    %cst_73 = arith.constant 1.280000e+02 : f32
    %169 = vector.broadcast %cst_73 : f32 to vector<16x1xf32>
    %170 = arith.divf %168, %169 : vector<16x1xf32>
    %171 = vector.broadcast %170 : vector<16x1xf32> to vector<16x128xf32>
    %172 = arith.subf %166, %171 : vector<16x128xf32>
    %173 = arith.mulf %172, %172 : vector<16x128xf32>
    %cst_74 = arith.constant dense<0.000000e+00> : vector<16xf32>
    %174 = vector.multi_reduction <add>, %173, %cst_74 [1] : vector<16x128xf32> to vector<16xf32>
    %175 = vector.shape_cast %174 : vector<16xf32> to vector<16x1xf32>
    %cst_75 = arith.constant 1.280000e+02 : f32
    %176 = vector.broadcast %cst_75 : f32 to vector<16x1xf32>
    %177 = arith.divf %175, %176 : vector<16x1xf32>
    %178 = vector.broadcast %170 : vector<16x1xf32> to vector<16x128xf32>
    %179 = arith.subf %166, %178 : vector<16x128xf32>
    %cst_76 = arith.constant 9.99999996E-13 : f32
    %180 = vector.broadcast %cst_76 : f32 to vector<16x1xf32>
    %181 = arith.addf %177, %180 : vector<16x1xf32>
    %182 = math.rsqrt %181 : vector<16x1xf32>
    %183 = vector.broadcast %182 : vector<16x1xf32> to vector<16x128xf32>
    %184 = arith.mulf %179, %183 : vector<16x128xf32>
    %185 = vector.broadcast %63 : vector<1x128xf32> to vector<16x128xf32>
    %186 = arith.mulf %184, %185 : vector<16x128xf32>
    %187 = vector.broadcast %64 : vector<1x128xf32> to vector<16x128xf32>
    %188 = arith.addf %186, %187 : vector<16x128xf32>
    %cst_77 = arith.constant dense<0.000000e+00> : vector<16x256xf32>
    %189 = tpu.matmul %188, %65, %cst_77 {dimension_numbers = #tpu.dot_dimension_numbers<[1], [0], [0], [1], [0, 0, 1, 1], [], []>} : vector<16x128xf32>, vector<128x256xf32>, vector<16x256xf32> -> vector<16x256xf32>
    %190 = vector.broadcast %66 : vector<1x256xf32> to vector<16x256xf32>
    %191 = arith.addf %189, %190 : vector<16x256xf32>
    %192 = arith.mulf %191, %191 : vector<16x256xf32>
    %193 = arith.mulf %191, %192 : vector<16x256xf32>
    %cst_78 = arith.constant 4.471500e-02 : f32
    %194 = vector.broadcast %cst_78 : f32 to vector<16x256xf32>
    %195 = arith.mulf %194, %193 : vector<16x256xf32>
    %196 = arith.addf %191, %195 : vector<16x256xf32>
    %cst_79 = arith.constant 0.797884583 : f32
    %197 = vector.broadcast %cst_79 : f32 to vector<16x256xf32>
    %198 = arith.mulf %197, %196 : vector<16x256xf32>
    %199 = math.tanh %198 : vector<16x256xf32>
    %cst_80 = arith.constant 1.000000e+00 : f32
    %200 = vector.broadcast %cst_80 : f32 to vector<16x256xf32>
    %201 = arith.addf %200, %199 : vector<16x256xf32>
    %cst_81 = arith.constant 5.000000e-01 : f32
    %202 = vector.broadcast %cst_81 : f32 to vector<16x256xf32>
    %203 = arith.mulf %202, %201 : vector<16x256xf32>
    %204 = arith.mulf %191, %203 : vector<16x256xf32>
    %cst_82 = arith.constant dense<0.000000e+00> : vector<16x128xf32>
    %205 = tpu.matmul %204, %67, %cst_82 {dimension_numbers = #tpu.dot_dimension_numbers<[1], [0], [0], [1], [0, 0, 1, 1], [], []>} : vector<16x256xf32>, vector<256x128xf32>, vector<16x128xf32> -> vector<16x128xf32>
    %206 = vector.broadcast %68 : vector<1x128xf32> to vector<16x128xf32>
    %207 = arith.addf %205, %206 : vector<16x128xf32>
    %208 = arith.addf %188, %207 : vector<16x128xf32>
    %cst_83 = arith.constant dense<0.000000e+00> : vector<16xf32>
    %209 = vector.multi_reduction <add>, %208, %cst_83 [1] : vector<16x128xf32> to vector<16xf32>
    %210 = vector.shape_cast %209 : vector<16xf32> to vector<16x1xf32>
    %cst_84 = arith.constant 1.280000e+02 : f32
    %211 = vector.broadcast %cst_84 : f32 to vector<16x1xf32>
    %212 = arith.divf %210, %211 : vector<16x1xf32>
    %213 = vector.broadcast %212 : vector<16x1xf32> to vector<16x128xf32>
    %214 = arith.subf %208, %213 : vector<16x128xf32>
    %215 = arith.mulf %214, %214 : vector<16x128xf32>
    %cst_85 = arith.constant dense<0.000000e+00> : vector<16xf32>
    %216 = vector.multi_reduction <add>, %215, %cst_85 [1] : vector<16x128xf32> to vector<16xf32>
    %217 = vector.shape_cast %216 : vector<16xf32> to vector<16x1xf32>
    %cst_86 = arith.constant 1.280000e+02 : f32
    %218 = vector.broadcast %cst_86 : f32 to vector<16x1xf32>
    %219 = arith.divf %217, %218 : vector<16x1xf32>
    %220 = vector.broadcast %212 : vector<16x1xf32> to vector<16x128xf32>
    %221 = arith.subf %208, %220 : vector<16x128xf32>
    %cst_87 = arith.constant 9.99999996E-13 : f32
    %222 = vector.broadcast %cst_87 : f32 to vector<16x1xf32>
    %223 = arith.addf %219, %222 : vector<16x1xf32>
    %224 = math.rsqrt %223 : vector<16x1xf32>
    %225 = vector.broadcast %224 : vector<16x1xf32> to vector<16x128xf32>
    %226 = arith.mulf %221, %225 : vector<16x128xf32>
    %227 = vector.broadcast %69 : vector<1x128xf32> to vector<16x128xf32>
    %228 = arith.mulf %226, %227 : vector<16x128xf32>
    %229 = vector.broadcast %70 : vector<1x128xf32> to vector<16x128xf32>
    %230 = arith.addf %228, %229 : vector<16x128xf32>
    %cst_88 = arith.constant dense<0.000000e+00> : vector<16x384xf32>
    %231 = tpu.matmul %230, %59, %cst_88 {dimension_numbers = #tpu.dot_dimension_numbers<[1], [0], [0], [1], [0, 0, 1, 1], [], []>} : vector<16x128xf32>, vector<128x384xf32>, vector<16x384xf32> -> vector<16x384xf32>
    %232 = vector.broadcast %60 : vector<1x384xf32> to vector<16x384xf32>
    %233 = arith.addf %231, %232 : vector<16x384xf32>
    %234 = vector.extract_strided_slice %233 {offsets = [0, 0], sizes = [16, 32], strides = [1, 1]} : vector<16x384xf32> to vector<16x32xf32>
    %235 = vector.shape_cast %234 : vector<16x32xf32> to vector<2x8x32xf32>
    %236 = vector.extract_strided_slice %233 {offsets = [0, 128], sizes = [16, 32], strides = [1, 1]} : vector<16x384xf32> to vector<16x32xf32>
    %237 = vector.shape_cast %236 : vector<16x32xf32> to vector<2x8x32xf32>
    %238 = vector.extract_strided_slice %233 {offsets = [0, 256], sizes = [16, 32], strides = [1, 1]} : vector<16x384xf32> to vector<16x32xf32>
    %239 = vector.shape_cast %238 : vector<16x32xf32> to vector<2x8x32xf32>
    "tpu.trace_start"() <{level = 10 : i32, message = "bqd,bkd->bqk"}> : () -> ()
    %cst_89 = arith.constant dense<0.000000e+00> : vector<2x8x8xf32>
    %240 = tpu.matmul %235, %237, %cst_89 {dimension_numbers = #tpu.dot_dimension_numbers<[2], [2], [1], [1], [0, 0, 0, 1, 1, 1], [0], [0]>} : vector<2x8x32xf32>, vector<2x8x32xf32>, vector<2x8x8xf32> -> vector<2x8x8xf32>
    "tpu.trace_stop"() : () -> ()
    %cst_90 = arith.constant 0.176776692 : f32
    %241 = vector.broadcast %cst_90 : f32 to vector<2x8x8xf32>
    %242 = arith.mulf %240, %241 : vector<2x8x8xf32>
    %243 = arith.addf %242, %58 : vector<2x8x8xf32>
    %cst_91 = arith.constant dense<0xFF800000> : vector<2x8xf32>
    %244 = vector.multi_reduction <maximumf>, %243, %cst_91 [2] : vector<2x8x8xf32> to vector<2x8xf32>
    %245 = vector.shape_cast %244 : vector<2x8xf32> to vector<2x8x1xf32>
    %246 = vector.broadcast %245 : vector<2x8x1xf32> to vector<2x8x8xf32>
    %247 = arith.subf %243, %246 : vector<2x8x8xf32>
    %248 = math.exp %247 : vector<2x8x8xf32>
    %cst_92 = arith.constant dense<0.000000e+00> : vector<2x8xf32>
    %249 = vector.multi_reduction <add>, %248, %cst_92 [2] : vector<2x8x8xf32> to vector<2x8xf32>
    %250 = vector.shape_cast %249 : vector<2x8xf32> to vector<2x8x1xf32>
    %251 = tpu.reciprocal %250 {approx = true} : vector<2x8x1xf32> -> vector<2x8x1xf32>
    %252 = vector.broadcast %251 : vector<2x8x1xf32> to vector<2x8x8xf32>
    %253 = arith.mulf %248, %252 : vector<2x8x8xf32>
    "tpu.trace_start"() <{level = 10 : i32, message = "bqk,bkd->bqd"}> : () -> ()
    %cst_93 = arith.constant dense<0.000000e+00> : vector<2x8x32xf32>
    %254 = tpu.matmul %253, %239, %cst_93 {dimension_numbers = #tpu.dot_dimension_numbers<[2], [1], [1], [2], [0, 0, 0, 1, 1, 2], [0], [0]>} : vector<2x8x8xf32>, vector<2x8x32xf32>, vector<2x8x32xf32> -> vector<2x8x32xf32>
    "tpu.trace_stop"() : () -> ()
    %255 = vector.shape_cast %254 : vector<2x8x32xf32> to vector<16x32xf32>
    %256 = vector.extract_strided_slice %233 {offsets = [0, 32], sizes = [16, 32], strides = [1, 1]} : vector<16x384xf32> to vector<16x32xf32>
    %257 = vector.shape_cast %256 : vector<16x32xf32> to vector<2x8x32xf32>
    %258 = vector.extract_strided_slice %233 {offsets = [0, 160], sizes = [16, 32], strides = [1, 1]} : vector<16x384xf32> to vector<16x32xf32>
    %259 = vector.shape_cast %258 : vector<16x32xf32> to vector<2x8x32xf32>
    %260 = vector.extract_strided_slice %233 {offsets = [0, 288], sizes = [16, 32], strides = [1, 1]} : vector<16x384xf32> to vector<16x32xf32>
    %261 = vector.shape_cast %260 : vector<16x32xf32> to vector<2x8x32xf32>
    "tpu.trace_start"() <{level = 10 : i32, message = "bqd,bkd->bqk"}> : () -> ()
    %cst_94 = arith.constant dense<0.000000e+00> : vector<2x8x8xf32>
    %262 = tpu.matmul %257, %259, %cst_94 {dimension_numbers = #tpu.dot_dimension_numbers<[2], [2], [1], [1], [0, 0, 0, 1, 1, 1], [0], [0]>} : vector<2x8x32xf32>, vector<2x8x32xf32>, vector<2x8x8xf32> -> vector<2x8x8xf32>
    "tpu.trace_stop"() : () -> ()
    %cst_95 = arith.constant 0.176776692 : f32
    %263 = vector.broadcast %cst_95 : f32 to vector<2x8x8xf32>
    %264 = arith.mulf %262, %263 : vector<2x8x8xf32>
    %265 = arith.addf %264, %58 : vector<2x8x8xf32>
    %cst_96 = arith.constant dense<0xFF800000> : vector<2x8xf32>
    %266 = vector.multi_reduction <maximumf>, %265, %cst_96 [2] : vector<2x8x8xf32> to vector<2x8xf32>
    %267 = vector.shape_cast %266 : vector<2x8xf32> to vector<2x8x1xf32>
    %268 = vector.broadcast %267 : vector<2x8x1xf32> to vector<2x8x8xf32>
    %269 = arith.subf %265, %268 : vector<2x8x8xf32>
    %270 = math.exp %269 : vector<2x8x8xf32>
    %cst_97 = arith.constant dense<0.000000e+00> : vector<2x8xf32>
    %271 = vector.multi_reduction <add>, %270, %cst_97 [2] : vector<2x8x8xf32> to vector<2x8xf32>
    %272 = vector.shape_cast %271 : vector<2x8xf32> to vector<2x8x1xf32>
    %273 = tpu.reciprocal %272 {approx = true} : vector<2x8x1xf32> -> vector<2x8x1xf32>
    %274 = vector.broadcast %273 : vector<2x8x1xf32> to vector<2x8x8xf32>
    %275 = arith.mulf %270, %274 : vector<2x8x8xf32>
    "tpu.trace_start"() <{level = 10 : i32, message = "bqk,bkd->bqd"}> : () -> ()
    %cst_98 = arith.constant dense<0.000000e+00> : vector<2x8x32xf32>
    %276 = tpu.matmul %275, %261, %cst_98 {dimension_numbers = #tpu.dot_dimension_numbers<[2], [1], [1], [2], [0, 0, 0, 1, 1, 2], [0], [0]>} : vector<2x8x8xf32>, vector<2x8x32xf32>, vector<2x8x32xf32> -> vector<2x8x32xf32>
    "tpu.trace_stop"() : () -> ()
    %277 = vector.shape_cast %276 : vector<2x8x32xf32> to vector<16x32xf32>
    %278 = vector.extract_strided_slice %233 {offsets = [0, 64], sizes = [16, 32], strides = [1, 1]} : vector<16x384xf32> to vector<16x32xf32>
    %279 = vector.shape_cast %278 : vector<16x32xf32> to vector<2x8x32xf32>
    %280 = vector.extract_strided_slice %233 {offsets = [0, 192], sizes = [16, 32], strides = [1, 1]} : vector<16x384xf32> to vector<16x32xf32>
    %281 = vector.shape_cast %280 : vector<16x32xf32> to vector<2x8x32xf32>
    %282 = vector.extract_strided_slice %233 {offsets = [0, 320], sizes = [16, 32], strides = [1, 1]} : vector<16x384xf32> to vector<16x32xf32>
    %283 = vector.shape_cast %282 : vector<16x32xf32> to vector<2x8x32xf32>
    "tpu.trace_start"() <{level = 10 : i32, message = "bqd,bkd->bqk"}> : () -> ()
    %cst_99 = arith.constant dense<0.000000e+00> : vector<2x8x8xf32>
    %284 = tpu.matmul %279, %281, %cst_99 {dimension_numbers = #tpu.dot_dimension_numbers<[2], [2], [1], [1], [0, 0, 0, 1, 1, 1], [0], [0]>} : vector<2x8x32xf32>, vector<2x8x32xf32>, vector<2x8x8xf32> -> vector<2x8x8xf32>
    "tpu.trace_stop"() : () -> ()
    %cst_100 = arith.constant 0.176776692 : f32
    %285 = vector.broadcast %cst_100 : f32 to vector<2x8x8xf32>
    %286 = arith.mulf %284, %285 : vector<2x8x8xf32>
    %287 = arith.addf %286, %58 : vector<2x8x8xf32>
    %cst_101 = arith.constant dense<0xFF800000> : vector<2x8xf32>
    %288 = vector.multi_reduction <maximumf>, %287, %cst_101 [2] : vector<2x8x8xf32> to vector<2x8xf32>
    %289 = vector.shape_cast %288 : vector<2x8xf32> to vector<2x8x1xf32>
    %290 = vector.broadcast %289 : vector<2x8x1xf32> to vector<2x8x8xf32>
    %291 = arith.subf %287, %290 : vector<2x8x8xf32>
    %292 = math.exp %291 : vector<2x8x8xf32>
    %cst_102 = arith.constant dense<0.000000e+00> : vector<2x8xf32>
    %293 = vector.multi_reduction <add>, %292, %cst_102 [2] : vector<2x8x8xf32> to vector<2x8xf32>
    %294 = vector.shape_cast %293 : vector<2x8xf32> to vector<2x8x1xf32>
    %295 = tpu.reciprocal %294 {approx = true} : vector<2x8x1xf32> -> vector<2x8x1xf32>
    %296 = vector.broadcast %295 : vector<2x8x1xf32> to vector<2x8x8xf32>
    %297 = arith.mulf %292, %296 : vector<2x8x8xf32>
    "tpu.trace_start"() <{level = 10 : i32, message = "bqk,bkd->bqd"}> : () -> ()
    %cst_103 = arith.constant dense<0.000000e+00> : vector<2x8x32xf32>
    %298 = tpu.matmul %297, %283, %cst_103 {dimension_numbers = #tpu.dot_dimension_numbers<[2], [1], [1], [2], [0, 0, 0, 1, 1, 2], [0], [0]>} : vector<2x8x8xf32>, vector<2x8x32xf32>, vector<2x8x32xf32> -> vector<2x8x32xf32>
    "tpu.trace_stop"() : () -> ()
    %299 = vector.shape_cast %298 : vector<2x8x32xf32> to vector<16x32xf32>
    %300 = vector.extract_strided_slice %233 {offsets = [0, 96], sizes = [16, 32], strides = [1, 1]} : vector<16x384xf32> to vector<16x32xf32>
    %301 = vector.shape_cast %300 : vector<16x32xf32> to vector<2x8x32xf32>
    %302 = vector.extract_strided_slice %233 {offsets = [0, 224], sizes = [16, 32], strides = [1, 1]} : vector<16x384xf32> to vector<16x32xf32>
    %303 = vector.shape_cast %302 : vector<16x32xf32> to vector<2x8x32xf32>
    %304 = vector.extract_strided_slice %233 {offsets = [0, 352], sizes = [16, 32], strides = [1, 1]} : vector<16x384xf32> to vector<16x32xf32>
    %305 = vector.shape_cast %304 : vector<16x32xf32> to vector<2x8x32xf32>
    "tpu.trace_start"() <{level = 10 : i32, message = "bqd,bkd->bqk"}> : () -> ()
    %cst_104 = arith.constant dense<0.000000e+00> : vector<2x8x8xf32>
    %306 = tpu.matmul %301, %303, %cst_104 {dimension_numbers = #tpu.dot_dimension_numbers<[2], [2], [1], [1], [0, 0, 0, 1, 1, 1], [0], [0]>} : vector<2x8x32xf32>, vector<2x8x32xf32>, vector<2x8x8xf32> -> vector<2x8x8xf32>
    "tpu.trace_stop"() : () -> ()
    %cst_105 = arith.constant 0.176776692 : f32
    %307 = vector.broadcast %cst_105 : f32 to vector<2x8x8xf32>
    %308 = arith.mulf %306, %307 : vector<2x8x8xf32>
    %309 = arith.addf %308, %58 : vector<2x8x8xf32>
    %cst_106 = arith.constant dense<0xFF800000> : vector<2x8xf32>
    %310 = vector.multi_reduction <maximumf>, %309, %cst_106 [2] : vector<2x8x8xf32> to vector<2x8xf32>
    %311 = vector.shape_cast %310 : vector<2x8xf32> to vector<2x8x1xf32>
    %312 = vector.broadcast %311 : vector<2x8x1xf32> to vector<2x8x8xf32>
    %313 = arith.subf %309, %312 : vector<2x8x8xf32>
    %314 = math.exp %313 : vector<2x8x8xf32>
    %cst_107 = arith.constant dense<0.000000e+00> : vector<2x8xf32>
    %315 = vector.multi_reduction <add>, %314, %cst_107 [2] : vector<2x8x8xf32> to vector<2x8xf32>
    %316 = vector.shape_cast %315 : vector<2x8xf32> to vector<2x8x1xf32>
    %317 = tpu.reciprocal %316 {approx = true} : vector<2x8x1xf32> -> vector<2x8x1xf32>
    %318 = vector.broadcast %317 : vector<2x8x1xf32> to vector<2x8x8xf32>
    %319 = arith.mulf %314, %318 : vector<2x8x8xf32>
    "tpu.trace_start"() <{level = 10 : i32, message = "bqk,bkd->bqd"}> : () -> ()
    %cst_108 = arith.constant dense<0.000000e+00> : vector<2x8x32xf32>
    %320 = tpu.matmul %319, %305, %cst_108 {dimension_numbers = #tpu.dot_dimension_numbers<[2], [1], [1], [2], [0, 0, 0, 1, 1, 2], [0], [0]>} : vector<2x8x8xf32>, vector<2x8x32xf32>, vector<2x8x32xf32> -> vector<2x8x32xf32>
    "tpu.trace_stop"() : () -> ()
    %321 = vector.shape_cast %320 : vector<2x8x32xf32> to vector<16x32xf32>
    %322 = tpu.concatenate %255, %277, %299, %321 in 1 : vector<16x32xf32>, vector<16x32xf32>, vector<16x32xf32>, vector<16x32xf32> -> vector<16x128xf32>
    %cst_109 = arith.constant dense<0.000000e+00> : vector<16x128xf32>
    %323 = tpu.matmul %322, %61, %cst_109 {dimension_numbers = #tpu.dot_dimension_numbers<[1], [0], [0], [1], [0, 0, 1, 1], [], []>} : vector<16x128xf32>, vector<128x128xf32>, vector<16x128xf32> -> vector<16x128xf32>
    %324 = vector.broadcast %62 : vector<1x128xf32> to vector<16x128xf32>
    %325 = arith.addf %323, %324 : vector<16x128xf32>
    %326 = arith.addf %230, %325 : vector<16x128xf32>
    %cst_110 = arith.constant dense<0.000000e+00> : vector<16xf32>
    %327 = vector.multi_reduction <add>, %326, %cst_110 [1] : vector<16x128xf32> to vector<16xf32>
    %328 = vector.shape_cast %327 : vector<16xf32> to vector<16x1xf32>
    %cst_111 = arith.constant 1.280000e+02 : f32
    %329 = vector.broadcast %cst_111 : f32 to vector<16x1xf32>
    %330 = arith.divf %328, %329 : vector<16x1xf32>
    %331 = vector.broadcast %330 : vector<16x1xf32> to vector<16x128xf32>
    %332 = arith.subf %326, %331 : vector<16x128xf32>
    %333 = arith.mulf %332, %332 : vector<16x128xf32>
    %cst_112 = arith.constant dense<0.000000e+00> : vector<16xf32>
    %334 = vector.multi_reduction <add>, %333, %cst_112 [1] : vector<16x128xf32> to vector<16xf32>
    %335 = vector.shape_cast %334 : vector<16xf32> to vector<16x1xf32>
    %cst_113 = arith.constant 1.280000e+02 : f32
    %336 = vector.broadcast %cst_113 : f32 to vector<16x1xf32>
    %337 = arith.divf %335, %336 : vector<16x1xf32>
    %338 = vector.broadcast %330 : vector<16x1xf32> to vector<16x128xf32>
    %339 = arith.subf %326, %338 : vector<16x128xf32>
    %cst_114 = arith.constant 9.99999996E-13 : f32
    %340 = vector.broadcast %cst_114 : f32 to vector<16x1xf32>
    %341 = arith.addf %337, %340 : vector<16x1xf32>
    %342 = math.rsqrt %341 : vector<16x1xf32>
    %343 = vector.broadcast %342 : vector<16x1xf32> to vector<16x128xf32>
    %344 = arith.mulf %339, %343 : vector<16x128xf32>
    %345 = vector.broadcast %63 : vector<1x128xf32> to vector<16x128xf32>
    %346 = arith.mulf %344, %345 : vector<16x128xf32>
    %347 = vector.broadcast %64 : vector<1x128xf32> to vector<16x128xf32>
    %348 = arith.addf %346, %347 : vector<16x128xf32>
    %cst_115 = arith.constant dense<0.000000e+00> : vector<16x256xf32>
    %349 = tpu.matmul %348, %65, %cst_115 {dimension_numbers = #tpu.dot_dimension_numbers<[1], [0], [0], [1], [0, 0, 1, 1], [], []>} : vector<16x128xf32>, vector<128x256xf32>, vector<16x256xf32> -> vector<16x256xf32>
    %350 = vector.broadcast %66 : vector<1x256xf32> to vector<16x256xf32>
    %351 = arith.addf %349, %350 : vector<16x256xf32>
    %352 = arith.mulf %351, %351 : vector<16x256xf32>
    %353 = arith.mulf %351, %352 : vector<16x256xf32>
    %cst_116 = arith.constant 4.471500e-02 : f32
    %354 = vector.broadcast %cst_116 : f32 to vector<16x256xf32>
    %355 = arith.mulf %354, %353 : vector<16x256xf32>
    %356 = arith.addf %351, %355 : vector<16x256xf32>
    %cst_117 = arith.constant 0.797884583 : f32
    %357 = vector.broadcast %cst_117 : f32 to vector<16x256xf32>
    %358 = arith.mulf %357, %356 : vector<16x256xf32>
    %359 = math.tanh %358 : vector<16x256xf32>
    %cst_118 = arith.constant 1.000000e+00 : f32
    %360 = vector.broadcast %cst_118 : f32 to vector<16x256xf32>
    %361 = arith.addf %360, %359 : vector<16x256xf32>
    %cst_119 = arith.constant 5.000000e-01 : f32
    %362 = vector.broadcast %cst_119 : f32 to vector<16x256xf32>
    %363 = arith.mulf %362, %361 : vector<16x256xf32>
    %364 = arith.mulf %351, %363 : vector<16x256xf32>
    %cst_120 = arith.constant dense<0.000000e+00> : vector<16x128xf32>
    %365 = tpu.matmul %364, %67, %cst_120 {dimension_numbers = #tpu.dot_dimension_numbers<[1], [0], [0], [1], [0, 0, 1, 1], [], []>} : vector<16x256xf32>, vector<256x128xf32>, vector<16x128xf32> -> vector<16x128xf32>
    %366 = vector.broadcast %68 : vector<1x128xf32> to vector<16x128xf32>
    %367 = arith.addf %365, %366 : vector<16x128xf32>
    %368 = arith.addf %348, %367 : vector<16x128xf32>
    %cst_121 = arith.constant dense<0.000000e+00> : vector<16xf32>
    %369 = vector.multi_reduction <add>, %368, %cst_121 [1] : vector<16x128xf32> to vector<16xf32>
    %370 = vector.shape_cast %369 : vector<16xf32> to vector<16x1xf32>
    %cst_122 = arith.constant 1.280000e+02 : f32
    %371 = vector.broadcast %cst_122 : f32 to vector<16x1xf32>
    %372 = arith.divf %370, %371 : vector<16x1xf32>
    %373 = vector.broadcast %372 : vector<16x1xf32> to vector<16x128xf32>
    %374 = arith.subf %368, %373 : vector<16x128xf32>
    %375 = arith.mulf %374, %374 : vector<16x128xf32>
    %cst_123 = arith.constant dense<0.000000e+00> : vector<16xf32>
    %376 = vector.multi_reduction <add>, %375, %cst_123 [1] : vector<16x128xf32> to vector<16xf32>
    %377 = vector.shape_cast %376 : vector<16xf32> to vector<16x1xf32>
    %cst_124 = arith.constant 1.280000e+02 : f32
    %378 = vector.broadcast %cst_124 : f32 to vector<16x1xf32>
    %379 = arith.divf %377, %378 : vector<16x1xf32>
    %380 = vector.broadcast %372 : vector<16x1xf32> to vector<16x128xf32>
    %381 = arith.subf %368, %380 : vector<16x128xf32>
    %cst_125 = arith.constant 9.99999996E-13 : f32
    %382 = vector.broadcast %cst_125 : f32 to vector<16x1xf32>
    %383 = arith.addf %379, %382 : vector<16x1xf32>
    %384 = math.rsqrt %383 : vector<16x1xf32>
    %385 = vector.broadcast %384 : vector<16x1xf32> to vector<16x128xf32>
    %386 = arith.mulf %381, %385 : vector<16x128xf32>
    %387 = vector.broadcast %69 : vector<1x128xf32> to vector<16x128xf32>
    %388 = arith.mulf %386, %387 : vector<16x128xf32>
    %389 = vector.broadcast %70 : vector<1x128xf32> to vector<16x128xf32>
    %390 = arith.addf %388, %389 : vector<16x128xf32>
    %391 = vector.shape_cast %390 : vector<16x128xf32> to vector<2x8x128xf32>
    %392 = vector.extract_strided_slice %391 {offsets = [0, 0, 0], sizes = [2, 1, 128], strides = [1, 1, 1]} : vector<2x8x128xf32> to vector<2x1x128xf32>
    %393 = vector.shape_cast %392 : vector<2x1x128xf32> to vector<2x128xf32>
    %c0_126 = arith.constant 0 : index
    %c0_127 = arith.constant 0 : index
    %394 = vector.load %arg22[%c0_126, %c0_127] : memref<128x128xf32, #tpu.memory_space<vmem>>, vector<128x128xf32>
    %cst_128 = arith.constant dense<0.000000e+00> : vector<2x128xf32>
    %395 = tpu.matmul %393, %394, %cst_128 {dimension_numbers = #tpu.dot_dimension_numbers<[1], [0], [0], [1], [0, 0, 1, 1], [], []>} : vector<2x128xf32>, vector<128x128xf32>, vector<2x128xf32> -> vector<2x128xf32>
    %c0_129 = arith.constant 0 : index
    %c0_130 = arith.constant 0 : index
    %396 = vector.load %arg23[%c0_129, %c0_130] : memref<1x128xf32, #tpu.memory_space<vmem>>, vector<1x128xf32>
    %397 = vector.broadcast %396 : vector<1x128xf32> to vector<2x128xf32>
    %398 = arith.addf %395, %397 : vector<2x128xf32>
    %399 = math.tanh %398 : vector<2x128xf32>
    %c0_131 = arith.constant 0 : index
    %c0_132 = arith.constant 0 : index
    %400 = vector.load %arg24[%c0_131, %c0_132] : memref<128x128xf32, #tpu.memory_space<vmem>>, vector<128x128xf32>
    %cst_133 = arith.constant dense<0.000000e+00> : vector<2x128xf32>
    %401 = tpu.matmul %399, %400, %cst_133 {dimension_numbers = #tpu.dot_dimension_numbers<[1], [0], [0], [1], [0, 0, 1, 1], [], []>} : vector<2x128xf32>, vector<128x128xf32>, vector<2x128xf32> -> vector<2x128xf32>
    %c0_134 = arith.constant 0 : index
    %c0_135 = arith.constant 0 : index
    %402 = vector.load %arg25[%c0_134, %c0_135] : memref<1x128xf32, #tpu.memory_space<vmem>>, vector<1x128xf32>
    %403 = vector.broadcast %402 : vector<1x128xf32> to vector<2x128xf32>
    %404 = arith.addf %401, %403 : vector<2x128xf32>
    %c0_136 = arith.constant 0 : index
    %c0_137 = arith.constant 0 : index
    %405 = vector.load %arg26[%c0_136, %c0_137] : memref<2x128xf32, #tpu.memory_space<vmem>>, vector<2x128xf32>
    tpu.vector_store %arg26[%c0_136, %c0_137], %404 {strides = array<i32>} : memref<2x128xf32, #tpu.memory_space<vmem>>, vector<2x128xf32>,
    return
  }
}

</mosaic_0001>

<llo_original>
// kernel: albert_forward.1
$region0: #{albert_forward.1}
  #allocation0 [shape = 'u32[]', space=smem, size = 0x4, offset = 0x4, fixed_abs, tag = 'smem constant byte address 0x4 - core index']
  #allocation1 [shape = 'u32[72,128]{1,0:T(1,128)}', space=vmem, size = 0x9000, scoped, tag = 'internal scratch']
  %s0 = inlined_call_operand.vmem [shape: s32[16,1], index: 0, kind: input, shape index: {}]
  %s1 = inlined_call_operand.vmem [shape: s32[16,1], index: 1, kind: input, shape index: {}]
  %s2 = inlined_call_operand.vmem [shape: f32[2,1,8], index: 2, kind: input, shape index: {}]
  %s3 = inlined_call_operand.vmem [shape: f32[128,32], index: 3, kind: input, shape index: {}]
  %s4 = inlined_call_operand.vmem [shape: f32[2,32], index: 4, kind: input, shape index: {}]
  %s5 = inlined_call_operand.vmem [shape: f32[8,32], index: 5, kind: input, shape index: {}]
  %s6 = inlined_call_operand.vmem [shape: f32[1,32], index: 6, kind: input, shape index: {}]
  %s7 = inlined_call_operand.vmem [shape: f32[1,32], index: 7, kind: input, shape index: {}]
  %s8 = inlined_call_operand.vmem [shape: f32[32,128], index: 8, kind: input, shape index: {}]
  %s9 = inlined_call_operand.vmem [shape: f32[1,128], index: 9, kind: input, shape index: {}]
  %s10 = inlined_call_operand.vmem [shape: f32[128,384], index: 10, kind: input, shape index: {}]
  %s11 = inlined_call_operand.vmem [shape: f32[1,384], index: 11, kind: input, shape index: {}]
  %s12 = inlined_call_operand.vmem [shape: f32[128,128], index: 12, kind: input, shape index: {}]
  %s13 = inlined_call_operand.vmem [shape: f32[1,128], index: 13, kind: input, shape index: {}]
  %s14 = inlined_call_operand.vmem [shape: f32[1,128], index: 14, kind: input, shape index: {}]
  %s15 = inlined_call_operand.vmem [shape: f32[1,128], index: 15, kind: input, shape index: {}]
  %s16 = inlined_call_operand.vmem [shape: f32[128,256], index: 16, kind: input, shape index: {}]
  %s17 = inlined_call_operand.vmem [shape: f32[1,256], index: 17, kind: input, shape index: {}]
  %s18 = inlined_call_operand.vmem [shape: f32[256,128], index: 18, kind: input, shape index: {}]
  %s19 = inlined_call_operand.vmem [shape: f32[1,128], index: 19, kind: input, shape index: {}]
  %s20 = inlined_call_operand.vmem [shape: f32[1,128], index: 20, kind: input, shape index: {}]
  %s21 = inlined_call_operand.vmem [shape: f32[1,128], index: 21, kind: input, shape index: {}]
  %s22 = inlined_call_operand.vmem [shape: f32[128,128], index: 22, kind: input, shape index: {}]
  %s23 = inlined_call_operand.vmem [shape: f32[1,128], index: 23, kind: input, shape index: {}]
  %s24 = inlined_call_operand.vmem [shape: f32[128,128], index: 24, kind: input, shape index: {}]
  %s25 = inlined_call_operand.vmem [shape: f32[1,128], index: 25, kind: input, shape index: {}]
  %s26 = inlined_call_operand.hbm [shape: f32[2,128], index: 26, kind: output, shape index: {}]
  %s27 = sld [smem:[#allocation0]]
  $region114: #{albert_forward.1} parent=0
    _
  %s29 = ssub.s32 1, %s27
  %s30 = scalar_select 0, %s29, %s27
  $region1: #{albert_forward.1} parent=0
    #allocation2 [shape = 'u8[1024]{0}', space=vmem, size = 0x400, scoped, tag = 'output window, operand 0, single buffered']
    #allocation3 [shape = 's32[1]{0}', space=sflag, size = 0x4, scoped, tag = 'scoped memory for albert_forward.1']
    %31 = vsyncpa [#allocation3], 0
    // Predicated region
    $region2: #{albert_forward.1} parent=1 // pred_check
      _
    $region3: #{albert_forward.1} parent=1 // pred_check_branch
      %33 = sbr.rel (0) target = $region5
    $region4: #{albert_forward.1} parent=1 // pred_region
      _
    $region5: #{albert_forward.1} parent=1 // pred_fallthru
      _
    // Predicated region
    $region6: #{albert_forward.1} parent=1 // pred_check
      _
    $region7: #{albert_forward.1} parent=1 // pred_check_branch
      %35 = sbr.rel (0) target = $region9
    $region8: #{albert_forward.1} parent=1 // pred_region
      _
    $region9: #{albert_forward.1} parent=1 // pred_fallthru
      _
    // Predicated region
    $region10: #{albert_forward.1} parent=1 // pred_check
      _
    $region11: #{albert_forward.1} parent=1 // pred_check_branch
      %37 = sbr.rel (0) target = $region13
    $region12: #{albert_forward.1} parent=1 // pred_region
      _
    $region13: #{albert_forward.1} parent=1 // pred_fallthru
      _
    // Predicated region
    $region14: #{albert_forward.1} parent=1 // pred_check
      _
    $region15: #{albert_forward.1} parent=1 // pred_check_branch
      %39 = sbr.rel (0) target = $region17
    $region16: #{albert_forward.1} parent=1 // pred_region
      _
    $region17: #{albert_forward.1} parent=1 // pred_fallthru
      _
    // Predicated region
    $region18: #{albert_forward.1} parent=1 // pred_check
      _
    $region19: #{albert_forward.1} parent=1 // pred_check_branch
      %41 = sbr.rel (0) target = $region21
    $region20: #{albert_forward.1} parent=1 // pred_region
      _
    $region21: #{albert_forward.1} parent=1 // pred_fallthru
      _
    // Predicated region
    $region22: #{albert_forward.1} parent=1 // pred_check
      _
    $region23: #{albert_forward.1} parent=1 // pred_check_branch
      %43 = sbr.rel (0) target = $region25
    $region24: #{albert_forward.1} parent=1 // pred_region
      _
    $region25: #{albert_forward.1} parent=1 // pred_fallthru
      _
    // Predicated region
    $region26: #{albert_forward.1} parent=1 // pred_check
      _
    $region27: #{albert_forward.1} parent=1 // pred_check_branch
      %45 = sbr.rel (0) target = $region29
    $region28: #{albert_forward.1} parent=1 // pred_region
      _
    $region29: #{albert_forward.1} parent=1 // pred_fallthru
      _
    // Predicated region
    $region30: #{albert_forward.1} parent=1 // pred_check
      _
    $region31: #{albert_forward.1} parent=1 // pred_check_branch
      %47 = sbr.rel (0) target = $region33
    $region32: #{albert_forward.1} parent=1 // pred_region
      _
    $region33: #{albert_forward.1} parent=1 // pred_fallthru
      _
    // Predicated region
    $region34: #{albert_forward.1} parent=1 // pred_check
      _
    $region35: #{albert_forward.1} parent=1 // pred_check_branch
      %49 = sbr.rel (0) target = $region37
    $region36: #{albert_forward.1} parent=1 // pred_region
      _
    $region37: #{albert_forward.1} parent=1 // pred_fallthru
      _
    // Predicated region
    $region38: #{albert_forward.1} parent=1 // pred_check
      _
    $region39: #{albert_forward.1} parent=1 // pred_check_branch
      %51 = sbr.rel (0) target = $region41
    $region40: #{albert_forward.1} parent=1 // pred_region
      _
    $region41: #{albert_forward.1} parent=1 // pred_fallthru
      _
    // Predicated region
    $region42: #{albert_forward.1} parent=1 // pred_check
      _
    $region43: #{albert_forward.1} parent=1 // pred_check_branch
      %53 = sbr.rel (0) target = $region45
    $region44: #{albert_forward.1} parent=1 // pred_region
      _
    $region45: #{albert_forward.1} parent=1 // pred_fallthru
      _
    // Predicated region
    $region46: #{albert_forward.1} parent=1 // pred_check
      _
    $region47: #{albert_forward.1} parent=1 // pred_check_branch
      %55 = sbr.rel (0) target = $region49
    $region48: #{albert_forward.1} parent=1 // pred_region
      _
    $region49: #{albert_forward.1} parent=1 // pred_fallthru
      _
    // Predicated region
    $region50: #{albert_forward.1} parent=1 // pred_check
      _
    $region51: #{albert_forward.1} parent=1 // pred_check_branch
      %57 = sbr.rel (0) target = $region53
    $region52: #{albert_forward.1} parent=1 // pred_region
      _
    $region53: #{albert_forward.1} parent=1 // pred_fallthru
      _
    // Predicated region
    $region54: #{albert_forward.1} parent=1 // pred_check
      _
    $region55: #{albert_forward.1} parent=1 // pred_check_branch
      %59 = sbr.rel (0) target = $region57
    $region56: #{albert_forward.1} parent=1 // pred_region
      _
    $region57: #{albert_forward.1} parent=1 // pred_fallthru
      _
    // Predicated region
    $region58: #{albert_forward.1} parent=1 // pred_check
      _
    $region59: #{albert_forward.1} parent=1 // pred_check_branch
      %61 = sbr.rel (0) target = $region61
    $region60: #{albert_forward.1} parent=1 // pred_region
      _
    $region61: #{albert_forward.1} parent=1 // pred_fallthru
      _
    // Predicated region
    $region62: #{albert_forward.1} parent=1 // pred_check
      _
    $region63: #{albert_forward.1} parent=1 // pred_check_branch
      %63 = sbr.rel (0) target = $region65
    $region64: #{albert_forward.1} parent=1 // pred_region
      _
    $region65: #{albert_forward.1} parent=1 // pred_fallthru
      _
    // Predicated region
    $region66: #{albert_forward.1} parent=1 // pred_check
      _
    $region67: #{albert_forward.1} parent=1 // pred_check_branch
      %65 = sbr.rel (0) target = $region69
    $region68: #{albert_forward.1} parent=1 // pred_region
      _
    $region69: #{albert_forward.1} parent=1 // pred_fallthru
      _
    // Predicated region
    $region70: #{albert_forward.1} parent=1 // pred_check
      _
    $region71: #{albert_forward.1} parent=1 // pred_check_branch
      %67 = sbr.rel (0) target = $region73
    $region72: #{albert_forward.1} parent=1 // pred_region
      _
    $region73: #{albert_forward.1} parent=1 // pred_fallthru
      _
    // Predicated region
    $region74: #{albert_forward.1} parent=1 // pred_check
      _
    $region75: #{albert_forward.1} parent=1 // pred_check_branch
      %69 = sbr.rel (0) target = $region77
    $region76: #{albert_forward.1} parent=1 // pred_region
      _
    $region77: #{albert_forward.1} parent=1 // pred_fallthru
      _
    // Predicated region
    $region78: #{albert_forward.1} parent=1 // pred_check
      _
    $region79: #{albert_forward.1} parent=1 // pred_check_branch
      %71 = sbr.rel (0) target = $region81
    $region80: #{albert_forward.1} parent=1 // pred_region
      _
    $region81: #{albert_forward.1} parent=1 // pred_fallthru
      _
    // Predicated region
    $region82: #{albert_forward.1} parent=1 // pred_check
      _
    $region83: #{albert_forward.1} parent=1 // pred_check_branch
      %73 = sbr.rel (0) target = $region85
    $region84: #{albert_forward.1} parent=1 // pred_region
      _
    $region85: #{albert_forward.1} parent=1 // pred_fallthru
      _
    // Predicated region
    $region86: #{albert_forward.1} parent=1 // pred_check
      _
    $region87: #{albert_forward.1} parent=1 // pred_check_branch
      %75 = sbr.rel (0) target = $region89
    $region88: #{albert_forward.1} parent=1 // pred_region
      _
    $region89: #{albert_forward.1} parent=1 // pred_fallthru
      _
    // Predicated region
    $region90: #{albert_forward.1} parent=1 // pred_check
      _
    $region91: #{albert_forward.1} parent=1 // pred_check_branch
      %77 = sbr.rel (0) target = $region93
    $region92: #{albert_forward.1} parent=1 // pred_region
      _
    $region93: #{albert_forward.1} parent=1 // pred_fallthru
      _
    // Predicated region
    $region94: #{albert_forward.1} parent=1 // pred_check
      _
    $region95: #{albert_forward.1} parent=1 // pred_check_branch
      %79 = sbr.rel (0) target = $region97
    $region96: #{albert_forward.1} parent=1 // pred_region
      _
    $region97: #{albert_forward.1} parent=1 // pred_fallthru
      _
    // Predicated region
    $region98: #{albert_forward.1} parent=1 // pred_check
      _
    $region99: #{albert_forward.1} parent=1 // pred_check_branch
      %81 = sbr.rel (0) target = $region101
    $region100: #{albert_forward.1} parent=1 // pred_region
      _
    $region101: #{albert_forward.1} parent=1 // pred_fallthru
      _
    // Predicated region
    $region102: #{albert_forward.1} parent=1 // pred_check
      _
    $region103: #{albert_forward.1} parent=1 // pred_check_branch
      %83 = sbr.rel (0) target = $region105
    $region104: #{albert_forward.1} parent=1 // pred_region
      _
    $region105: #{albert_forward.1} parent=1 // pred_fallthru
      _
    %v84 = vld [vmem:[%s0] sm:$0xff]
    %v85 = vld [vmem:[%s0 + $0x8] sm:$0xff]
    %v86 = vlaneseq
    %v87 = vand.u32 %v86, 127
    %88 = vset.pattern.permute.xlu0 0
    %89 = vperm.xlu0 %88, %v84
    %v90 = vpop.permute.xlu0 %89
    %91 = vset.pattern.permute.xlu0 0
    %92 = vperm.xlu0 %91, %v85
    %v93 = vpop.permute.xlu0 %92
    %vm94 = vcmp.eq.s32.totalorder %v87, %v90
    %vm95 = vcmp.eq.s32.totalorder %v87, %v93
    %v96 = vsel %vm94, 1, 0
    %v97 = vsel %vm95, 1, 0
    %v98 = vcvt.s32.f32 %v96
    %v99 = vcvt.s32.f32 %v97
    %v100 = vld [vmem:[%s3] sm:$0xff]
    %v101 = vld [vmem:[%s3 + $0x8] sm:$0xff]
    %v102 = vld [vmem:[%s3 + $0x10] sm:$0xff]
    %v103 = vld [vmem:[%s3 + $0x18] sm:$0xff]
    %v104 = vld [vmem:[%s3 + $0x20] sm:$0xff]
    %v105 = vld [vmem:[%s3 + $0x28] sm:$0xff]
    %v106 = vld [vmem:[%s3 + $0x30] sm:$0xff]
    %v107 = vld [vmem:[%s3 + $0x38] sm:$0xff]
    %v108 = vld [vmem:[%s3 + $0x40] sm:$0xff]
    %v109 = vld [vmem:[%s3 + $0x48] sm:$0xff]
    %v110 = vld [vmem:[%s3 + $0x50] sm:$0xff]
    %v111 = vld [vmem:[%s3 + $0x58] sm:$0xff]
    %v112 = vld [vmem:[%s3 + $0x60] sm:$0xff]
    %v113 = vld [vmem:[%s3 + $0x68] sm:$0xff]
    %v114 = vld [vmem:[%s3 + $0x70] sm:$0xff]
    %v115 = vld [vmem:[%s3 + $0x78] sm:$0xff]
    %v116 = vld [vmem:[%s4] sm:$0x3]
    %v117 = vld [vmem:[%s1] sm:$0xff]
    %v118 = vld [vmem:[%s1 + $0x8] sm:$0xff]
    %v119 = vcvt.s32.f32 %v117
    %v120 = vcvt.s32.f32 %v118
    %v122 = vrot.slane %v116, 7
    %v124 = vsub.f32 %v116, %v122
    %126 = vset.pattern.permute.xlu0 0
    %127 = vperm.xlu0 %126, %v119
    %v128 = vpop.permute.xlu0 %127
    %131 = vset.pattern.permute.xlu0 0
    %132 = vperm.xlu0 %131, %v120
    %v133 = vpop.permute.xlu0 %132
    %v135 = vperm.slane %v124, 1
    %v136 = vmul.f32 %v128, %v135
    %v137 = vmul.f32 %v133, %v135
    %v138 = vperm.slane %v116, 0
    %v139 = vadd.f32 %v138, %v136
    %v140 = vadd.f32 %v138, %v137
    %141 = vmatpush.msra.mxu0 %v115
    %142 = vmatpush.msra.mxu0 %v114
    %143 = vmatpush.msra.mxu0 %v113
    %144 = vmatpush.msra.mxu0 %v112
    %145 = vmatpush.msra.mxu0 %v111
    %146 = vmatpush.msra.mxu0 %v110
    %147 = vmatpush.msra.mxu0 %v109
    %148 = vmatpush.msra.mxu0 %v108
    %149 = vmatpush.msra.mxu0 %v107
    %150 = vmatpush.msra.mxu0 %v106
    %151 = vmatpush.msra.mxu0 %v105
    %152 = vmatpush.msra.mxu0 %v104
    %153 = vmatpush.msra.mxu0 %v103
    %154 = vmatpush.msra.mxu0 %v102
    %155 = vmatpush.msra.mxu0 %v101
    %156 = vmatpush.msra.mxu0 %v100
    %157 = vmatmul.f32.gmra.mxu0 %v98
    %v158 = vpop.f32.mrf.mxu0
    %v159 = vadd.f32 %v139, %v158
    %160 = vmatmul.f32.gmra.mxu0 %v99
    %v161 = vpop.f32.mrf.mxu0
    %v162 = vadd.f32 %v140, %v161
    %163 = vdwg.mxu0
    %v164 = vld [vmem:[%s5] sm:$0xff]
    %v165 = vadd.f32 %v159, %v164
    %v166 = vadd.f32 %v162, %v164
    %v167 = vld [vmem:[%s6] sm:$0x1]
    %v168 = vld [vmem:[%s7] sm:$0x1]
    %vm169 = vcmask 261120
    %v170 = vsel %vm169, %v165, 0.0
    %171 = vadd.xlane.f32.xlu0 %v170
    %v172 = vpop.xlane.xlu0 %171
    %v173 = vsel %vm169, %v166, 0.0
    %174 = vadd.xlane.f32.xlu0 %v173
    %v175 = vpop.xlane.xlu0 %174
    %v176 = vrcp.pop 32.0
    %v177 = vmul.f32 32.0, %v176
    %v178 = vsub.f32 1.0, %v177
    %v179 = vmul.f32 %v176, %v178
    %v180 = vadd.f32 %v176, %v179
    %vm181 = vweird.f32 %v176
    %v182 = vsel %vm181, %v176, %v180
    %v183 = vmul.f32 %v172, %v182
    %v184 = vmul.f32 %v175, %v182
    %v185 = vsub.f32 %v165, %v183
    %v186 = vsub.f32 %v166, %v184
    %v187 = vmul.f32 %v185, %v185
    %v188 = vmul.f32 %v186, %v186
    %v189 = vsel %vm169, %v187, 0.0
    %190 = vadd.xlane.f32.xlu0 %v189
    %v191 = vpop.xlane.xlu0 %190
    %v192 = vsel %vm169, %v188, 0.0
    %193 = vadd.xlane.f32.xlu0 %v192
    %v194 = vpop.xlane.xlu0 %193
    %v195 = vmul.f32 %v191, %v182
    %v196 = vmul.f32 %v194, %v182
    %v197 = vadd.f32 %v195, 1e-12
    %v198 = vadd.f32 %v196, 1e-12
    %v199 = vrsqrt.pop %v197
    %v200 = vmul.f32 %v199, %v197
    %v201 = vmul.f32 %v200, %v199
    %v202 = vmul.f32 0.5, %v201
    %v203 = vsub.f32 1.5, %v202
    %v204 = vmul.f32 %v199, %v203
    %vm205 = vweird.f32 %v197
    %vm206 = vweird.f32 %v199
    %vm207 = vmor %vm205, %vm206
    %v208 = vsel %vm207, %v199, %v204
    %v209 = vrsqrt.pop %v198
    %v210 = vmul.f32 %v209, %v198
    %v211 = vmul.f32 %v210, %v209
    %v212 = vmul.f32 0.5, %v211
    %v213 = vsub.f32 1.5, %v212
    %v214 = vmul.f32 %v209, %v213
    %vm215 = vweird.f32 %v198
    %vm216 = vweird.f32 %v209
    %vm217 = vmor %vm215, %vm216
    %v218 = vsel %vm217, %v209, %v214
    %v219 = vmul.f32 %v185, %v208
    %v220 = vmul.f32 %v186, %v218
    %v222 = vperm.slane %v167, 0
    %v224 = vmul.f32 %v219, %v222
    %v225 = vmul.f32 %v220, %v222
    %v227 = vperm.slane %v168, 0
    %v229 = vadd.f32 %v224, %v227
    %v230 = vadd.f32 %v225, %v227
    %v231 = vld [vmem:[%s8] sm:$0xff]
    %v232 = vld [vmem:[%s8 + $0x8] sm:$0xff]
    %v233 = vld [vmem:[%s8 + $0x10] sm:$0xff]
    %v234 = vld [vmem:[%s8 + $0x18] sm:$0xff]
    %v235 = vld [vmem:[%s9] sm:$0x1]
    %v237 = vperm.slane %v235, 0
    %v240 = vsel %vm169, %v229, 0
    %v243 = vsel %vm169, %v230, 0
    %245 = vmatpush.msra.mxu0 0.0
    %246 = vmatpush.msra.mxu0 0.0
    %247 = vmatpush.msra.mxu0 0.0
    %248 = vmatpush.msra.mxu0 0.0
    %249 = vmatpush.msra.mxu0 0.0
    %250 = vmatpush.msra.mxu0 0.0
    %251 = vmatpush.msra.mxu0 0.0
    %252 = vmatpush.msra.mxu0 0.0
    %253 = vmatpush.msra.mxu0 0.0
    %254 = vmatpush.msra.mxu0 0.0
    %255 = vmatpush.msra.mxu0 0.0
    %256 = vmatpush.msra.mxu0 0.0
    %257 = vmatpush.msra.mxu0 %v234
    %258 = vmatpush.msra.mxu0 %v233
    %259 = vmatpush.msra.mxu0 %v232
    %260 = vmatpush.msra.mxu0 %v231
    %261 = vmatmul.f32.gmra.mxu0 %v240
    %v262 = vpop.f32.mrf.mxu0
    %v263 = vadd.f32 %v237, %v262
    %264 = vmatmul.f32.gmra.mxu0 %v243
    %v265 = vpop.f32.mrf.mxu0
    %v266 = vadd.f32 %v237, %v265
    %267 = vdwg.mxu0
    %v268 = vld [vmem:[%s2] sm:$0x1]
    %v269 = vld [vmem:[%s2 + $0x1] sm:$0x1]
    %v272 = vperm.slane %v268, 0
    %v273 = vperm.slane %v269, 0
    %v276 = vld [vmem:[%s10] sm:$0xff]
    %v277 = vld [vmem:[%s10 + $0x8] sm:$0xff]
    %v278 = vld [vmem:[%s10 + $0x10] sm:$0xff]
    %v279 = vld [vmem:[%s10 + $0x18] sm:$0xff]
    %v280 = vld [vmem:[%s10 + $0x20] sm:$0xff]
    %v281 = vld [vmem:[%s10 + $0x28] sm:$0xff]
    %v282 = vld [vmem:[%s10 + $0x30] sm:$0xff]
    %v283 = vld [vmem:[%s10 + $0x38] sm:$0xff]
    %v284 = vld [vmem:[%s10 + $0x40] sm:$0xff]
    %v285 = vld [vmem:[%s10 + $0x48] sm:$0xff]
    %v286 = vld [vmem:[%s10 + $0x50] sm:$0xff]
    %v287 = vld [vmem:[%s10 + $0x58] sm:$0xff]
    %v288 = vld [vmem:[%s10 + $0x60] sm:$0xff]
    %v289 = vld [vmem:[%s10 + $0x68] sm:$0xff]
    %v290 = vld [vmem:[%s10 + $0x70] sm:$0xff]
    %v291 = vld [vmem:[%s10 + $0x78] sm:$0xff]
    %v292 = vld [vmem:[%s10 + $0x80] sm:$0xff]
    %v293 = vld [vmem:[%s10 + $0x88] sm:$0xff]
    %v294 = vld [vmem:[%s10 + $0x90] sm:$0xff]
    %v295 = vld [vmem:[%s10 + $0x98] sm:$0xff]
    %v296 = vld [vmem:[%s10 + $0xa0] sm:$0xff]
    %v297 = vld [vmem:[%s10 + $0xa8] sm:$0xff]
    %v298 = vld [vmem:[%s10 + $0xb0] sm:$0xff]
    %v299 = vld [vmem:[%s10 + $0xb8] sm:$0xff]
    %v300 = vld [vmem:[%s10 + $0xc0] sm:$0xff]
    %v301 = vld [vmem:[%s10 + $0xc8] sm:$0xff]
    %v302 = vld [vmem:[%s10 + $0xd0] sm:$0xff]
    %v303 = vld [vmem:[%s10 + $0xd8] sm:$0xff]
    %v304 = vld [vmem:[%s10 + $0xe0] sm:$0xff]
    %v305 = vld [vmem:[%s10 + $0xe8] sm:$0xff]
    %v306 = vld [vmem:[%s10 + $0xf0] sm:$0xff]
    %v307 = vld [vmem:[%s10 + $0xf8] sm:$0xff]
    %v308 = vld [vmem:[%s10 + $0x100] sm:$0xff]
    %v309 = vld [vmem:[%s10 + $0x108] sm:$0xff]
    %v310 = vld [vmem:[%s10 + $0x110] sm:$0xff]
    %v311 = vld [vmem:[%s10 + $0x118] sm:$0xff]
    %v312 = vld [vmem:[%s10 + $0x120] sm:$0xff]
    %v313 = vld [vmem:[%s10 + $0x128] sm:$0xff]
    %v314 = vld [vmem:[%s10 + $0x130] sm:$0xff]
    %v315 = vld [vmem:[%s10 + $0x138] sm:$0xff]
    %v316 = vld [vmem:[%s10 + $0x140] sm:$0xff]
    %v317 = vld [vmem:[%s10 + $0x148] sm:$0xff]
    %v318 = vld [vmem:[%s10 + $0x150] sm:$0xff]
    %v319 = vld [vmem:[%s10 + $0x158] sm:$0xff]
    %v320 = vld [vmem:[%s10 + $0x160] sm:$0xff]
    %v321 = vld [vmem:[%s10 + $0x168] sm:$0xff]
    %v322 = vld [vmem:[%s10 + $0x170] sm:$0xff]
    %v323 = vld [vmem:[%s10 + $0x178] sm:$0xff]
    %v324 = vld [vmem:[%s11] sm:$0x7]
    %v325 = vld [vmem:[%s12] sm:$0xff]
    %v326 = vld [vmem:[%s12 + $0x8] sm:$0xff]
    %v327 = vld [vmem:[%s12 + $0x10] sm:$0xff]
    %v328 = vld [vmem:[%s12 + $0x18] sm:$0xff]
    %v329 = vld [vmem:[%s12 + $0x20] sm:$0xff]
    %v330 = vld [vmem:[%s12 + $0x28] sm:$0xff]
    %v331 = vld [vmem:[%s12 + $0x30] sm:$0xff]
    %v332 = vld [vmem:[%s12 + $0x38] sm:$0xff]
    %v333 = vld [vmem:[%s12 + $0x40] sm:$0xff]
    %v334 = vld [vmem:[%s12 + $0x48] sm:$0xff]
    %v335 = vld [vmem:[%s12 + $0x50] sm:$0xff]
    %v336 = vld [vmem:[%s12 + $0x58] sm:$0xff]
    %v337 = vld [vmem:[%s12 + $0x60] sm:$0xff]
    %v338 = vld [vmem:[%s12 + $0x68] sm:$0xff]
    %v339 = vld [vmem:[%s12 + $0x70] sm:$0xff]
    %v340 = vld [vmem:[%s12 + $0x78] sm:$0xff]
    %v341 = vld [vmem:[%s13] sm:$0x1]
    %v342 = vld [vmem:[%s14] sm:$0x1]
    %v343 = vld [vmem:[%s15] sm:$0x1]
    %v344 = vld [vmem:[%s16] sm:$0xff]
    %v345 = vld [vmem:[%s16 + $0x8] sm:$0xff]
    %v346 = vld [vmem:[%s16 + $0x10] sm:$0xff]
    %v347 = vld [vmem:[%s16 + $0x18] sm:$0xff]
    %v348 = vld [vmem:[%s16 + $0x20] sm:$0xff]
    %v349 = vld [vmem:[%s16 + $0x28] sm:$0xff]
    %v350 = vld [vmem:[%s16 + $0x30] sm:$0xff]
    %v351 = vld [vmem:[%s16 + $0x38] sm:$0xff]
    %v352 = vld [vmem:[%s16 + $0x40] sm:$0xff]
    %v353 = vld [vmem:[%s16 + $0x48] sm:$0xff]
    %v354 = vld [vmem:[%s16 + $0x50] sm:$0xff]
    %v355 = vld [vmem:[%s16 + $0x58] sm:$0xff]
    %v356 = vld [vmem:[%s16 + $0x60] sm:$0xff]
    %v357 = vld [vmem:[%s16 + $0x68] sm:$0xff]
    %v358 = vld [vmem:[%s16 + $0x70] sm:$0xff]
    %v359 = vld [vmem:[%s16 + $0x78] sm:$0xff]
    %v360 = vld [vmem:[%s16 + $0x80] sm:$0xff]
    %v361 = vld [vmem:[%s16 + $0x88] sm:$0xff]
    %v362 = vld [vmem:[%s16 + $0x90] sm:$0xff]
    %v363 = vld [vmem:[%s16 + $0x98] sm:$0xff]
    %v364 = vld [vmem:[%s16 + $0xa0] sm:$0xff]
    %v365 = vld [vmem:[%s16 + $0xa8] sm:$0xff]
    %v366 = vld [vmem:[%s16 + $0xb0] sm:$0xff]
    %v367 = vld [vmem:[%s16 + $0xb8] sm:$0xff]
    %v368 = vld [vmem:[%s16 + $0xc0] sm:$0xff]
    %v369 = vld [vmem:[%s16 + $0xc8] sm:$0xff]
    %v370 = vld [vmem:[%s16 + $0xd0] sm:$0xff]
    %v371 = vld [vmem:[%s16 + $0xd8] sm:$0xff]
    %v372 = vld [vmem:[%s16 + $0xe0] sm:$0xff]
    %v373 = vld [vmem:[%s16 + $0xe8] sm:$0xff]
    %v374 = vld [vmem:[%s16 + $0xf0] sm:$0xff]
    %v375 = vld [vmem:[%s16 + $0xf8] sm:$0xff]
    %v376 = vld [vmem:[%s17] sm:$0x3]
    %v377 = vld [vmem:[%s18] sm:$0xff]
    %v378 = vld [vmem:[%s18 + $0x8] sm:$0xff]
    %v379 = vld [vmem:[%s18 + $0x10] sm:$0xff]
    %v380 = vld [vmem:[%s18 + $0x18] sm:$0xff]
    %v381 = vld [vmem:[%s18 + $0x20] sm:$0xff]
    %v382 = vld [vmem:[%s18 + $0x28] sm:$0xff]
    %v383 = vld [vmem:[%s18 + $0x30] sm:$0xff]
    %v384 = vld [vmem:[%s18 + $0x38] sm:$0xff]
    %v385 = vld [vmem:[%s18 + $0x40] sm:$0xff]
    %v386 = vld [vmem:[%s18 + $0x48] sm:$0xff]
    %v387 = vld [vmem:[%s18 + $0x50] sm:$0xff]
    %v388 = vld [vmem:[%s18 + $0x58] sm:$0xff]
    %v389 = vld [vmem:[%s18 + $0x60] sm:$0xff]
    %v390 = vld [vmem:[%s18 + $0x68] sm:$0xff]
    %v391 = vld [vmem:[%s18 + $0x70] sm:$0xff]
    %v392 = vld [vmem:[%s18 + $0x78] sm:$0xff]
    %v393 = vld [vmem:[%s18 + $0x80] sm:$0xff]
    %v394 = vld [vmem:[%s18 + $0x88] sm:$0xff]
    %v395 = vld [vmem:[%s18 + $0x90] sm:$0xff]
    %v396 = vld [vmem:[%s18 + $0x98] sm:$0xff]
    %v397 = vld [vmem:[%s18 + $0xa0] sm:$0xff]
    %v398 = vld [vmem:[%s18 + $0xa8] sm:$0xff]
    %v399 = vld [vmem:[%s18 + $0xb0] sm:$0xff]
    %v400 = vld [vmem:[%s18 + $0xb8] sm:$0xff]
    %v401 = vld [vmem:[%s18 + $0xc0] sm:$0xff]
    %v402 = vld [vmem:[%s18 + $0xc8] sm:$0xff]
    %v403 = vld [vmem:[%s18 + $0xd0] sm:$0xff]
    %v404 = vld [vmem:[%s18 + $0xd8] sm:$0xff]
    %v405 = vld [vmem:[%s18 + $0xe0] sm:$0xff]
    %v406 = vld [vmem:[%s18 + $0xe8] sm:$0xff]
    %v407 = vld [vmem:[%s18 + $0xf0] sm:$0xff]
    %v408 = vld [vmem:[%s18 + $0xf8] sm:$0xff]
    %v409 = vld [vmem:[%s19] sm:$0x1]
    %v410 = vld [vmem:[%s20] sm:$0x1]
    %v411 = vld [vmem:[%s21] sm:$0x1]
    %v413 = vperm.slane %v324, 0
    %v414 = vperm.slane %v324, 1
    %v415 = vperm.slane %v324, 2
    %419 = vmatpush.msra.mxu0 %v321
    %420 = vmatpush.msra.mxu0 %v318
    %421 = vmatpush.msra.mxu0 %v315
    %422 = vmatpush.msra.mxu0 %v312
    %423 = vmatpush.msra.mxu0 %v309
    %424 = vmatpush.msra.mxu0 %v306
    %425 = vmatpush.msra.mxu0 %v303
    %426 = vmatpush.msra.mxu0 %v300
    %427 = vmatpush.msra.mxu0 %v297
    %428 = vmatpush.msra.mxu0 %v294
    %429 = vmatpush.msra.mxu0 %v291
    %430 = vmatpush.msra.mxu0 %v288
    %431 = vmatpush.msra.mxu0 %v285
    %432 = vmatpush.msra.mxu0 %v282
    %433 = vmatpush.msra.mxu0 %v279
    %434 = vmatpush.msra.mxu0 %v276
    %435 = vmatmul.f32.gmra.mxu0 %v263
    %v436 = vpop.f32.mrf.mxu0
    %v437 = vadd.f32 %v413, %v436
    %438 = vmatmul.f32.gmra.mxu0 %v266
    %v439 = vpop.f32.mrf.mxu0
    %v440 = vadd.f32 %v413, %v439
    %441 = vdwg.mxu0
    %442 = vmatpush.msra.mxu0 %v322
    %443 = vmatpush.msra.mxu0 %v319
    %444 = vmatpush.msra.mxu0 %v316
    %445 = vmatpush.msra.mxu0 %v313
    %446 = vmatpush.msra.mxu0 %v310
    %447 = vmatpush.msra.mxu0 %v307
    %448 = vmatpush.msra.mxu0 %v304
    %449 = vmatpush.msra.mxu0 %v301
    %450 = vmatpush.msra.mxu0 %v298
    %451 = vmatpush.msra.mxu0 %v295
    %452 = vmatpush.msra.mxu0 %v292
    %453 = vmatpush.msra.mxu0 %v289
    %454 = vmatpush.msra.mxu0 %v286
    %455 = vmatpush.msra.mxu0 %v283
    %456 = vmatpush.msra.mxu0 %v280
    %457 = vmatpush.msra.mxu0 %v277
    %458 = vmatmul.f32.gmra.mxu0 %v263
    %v459 = vpop.f32.mrf.mxu0
    %v460 = vadd.f32 %v414, %v459
    %461 = vmatmul.f32.gmra.mxu0 %v266
    %v462 = vpop.f32.mrf.mxu0
    %v463 = vadd.f32 %v414, %v462
    %464 = vdwg.mxu0
    %465 = vmatpush.msra.mxu0 %v323
    %466 = vmatpush.msra.mxu0 %v320
    %467 = vmatpush.msra.mxu0 %v317
    %468 = vmatpush.msra.mxu0 %v314
    %469 = vmatpush.msra.mxu0 %v311
    %470 = vmatpush.msra.mxu0 %v308
    %471 = vmatpush.msra.mxu0 %v305
    %472 = vmatpush.msra.mxu0 %v302
    %473 = vmatpush.msra.mxu0 %v299
    %474 = vmatpush.msra.mxu0 %v296
    %475 = vmatpush.msra.mxu0 %v293
    %476 = vmatpush.msra.mxu0 %v290
    %477 = vmatpush.msra.mxu0 %v287
    %478 = vmatpush.msra.mxu0 %v284
    %479 = vmatpush.msra.mxu0 %v281
    %480 = vmatpush.msra.mxu0 %v278
    %481 = vmatmul.f32.gmra.mxu0 %v263
    %v482 = vpop.f32.mrf.mxu0
    %v483 = vadd.f32 %v415, %v482
    %484 = vmatmul.f32.gmra.mxu0 %v266
    %v485 = vpop.f32.mrf.mxu0
    %v486 = vadd.f32 %v415, %v485
    %487 = vdwg.mxu0
    %v489 = vsel %vm169, %v437, 0
    %v492 = vsel %vm169, %v460, 0
    %494 = vmatpush.xpose.msra.mxu0 0.0
    %495 = vmatpush.xpose.msra.mxu0 0.0
    %496 = vmatpush.xpose.msra.mxu0 0.0
    %497 = vmatpush.xpose.msra.mxu0 0.0
    %498 = vmatpush.xpose.msra.mxu0 0.0
    %499 = vmatpush.xpose.msra.mxu0 0.0
    %500 = vmatpush.xpose.msra.mxu0 0.0
    %501 = vmatpush.xpose.msra.mxu0 0.0
    %502 = vmatpush.xpose.msra.mxu0 0.0
    %503 = vmatpush.xpose.msra.mxu0 0.0
    %504 = vmatpush.xpose.msra.mxu0 0.0
    %505 = vmatpush.xpose.msra.mxu0 0.0
    %506 = vmatpush.xpose.msra.mxu0 0.0
    %507 = vmatpush.xpose.msra.mxu0 0.0
    %508 = vmatpush.xpose.msra.mxu0 0.0
    %509 = vmatpush.xpose.msra.mxu0 %v492
    %510 = vmatmul.f32.gmra.mxu0 %v489
    %v511 = vpop.f32.mrf.mxu0
    %v512 = vadd.f32 0.0, %v511
    %513 = vdwg.mxu0
    %v515 = vsel %vm169, %v440, 0
    %v518 = vsel %vm169, %v463, 0
    %520 = vmatpush.xpose.msra.mxu0 0.0
    %521 = vmatpush.xpose.msra.mxu0 0.0
    %522 = vmatpush.xpose.msra.mxu0 0.0
    %523 = vmatpush.xpose.msra.mxu0 0.0
    %524 = vmatpush.xpose.msra.mxu0 0.0
    %525 = vmatpush.xpose.msra.mxu0 0.0
    %526 = vmatpush.xpose.msra.mxu0 0.0
    %527 = vmatpush.xpose.msra.mxu0 0.0
    %528 = vmatpush.xpose.msra.mxu0 0.0
    %529 = vmatpush.xpose.msra.mxu0 0.0
    %530 = vmatpush.xpose.msra.mxu0 0.0
    %531 = vmatpush.xpose.msra.mxu0 0.0
    %532 = vmatpush.xpose.msra.mxu0 0.0
    %533 = vmatpush.xpose.msra.mxu0 0.0
    %534 = vmatpush.xpose.msra.mxu0 0.0
    %535 = vmatpush.xpose.msra.mxu0 %v518
    %536 = vmatmul.f32.gmra.mxu0 %v515
    %v537 = vpop.f32.mrf.mxu0
    %v538 = vadd.f32 0.0, %v537
    %539 = vdwg.mxu0
    %v540 = vmul.f32 %v512, 0.17677669
    %v541 = vmul.f32 %v538, 0.17677669
    %v542 = vadd.f32 %v540, %v272
    %v543 = vadd.f32 %v541, %v273
    %vm544 = vcmask 64512
    %v545 = vsel %vm544, %v542, -inf
    %546 = vmax.xlane.f32.xlu0 %v545
    %v547 = vpop.xlane.xlu0 %546
    %v548 = vsel %vm544, %v543, -inf
    %549 = vmax.xlane.f32.xlu0 %v548
    %v550 = vpop.xlane.xlu0 %549
    %v551 = vsub.f32 %v542, %v547
    %v552 = vsub.f32 %v543, %v550
    %v553 = vmul.f32 %v551, 1.442695
    %v554 = vpow.pop %v553
    %v555 = vmul.f32 %v552, 1.442695
    %v556 = vpow.pop %v555
    %v557 = vsel %vm544, %v554, 0.0
    %558 = vadd.xlane.f32.xlu0 %v557
    %v559 = vpop.xlane.xlu0 %558
    %v560 = vsel %vm544, %v556, 0.0
    %561 = vadd.xlane.f32.xlu0 %v560
    %v562 = vpop.xlane.xlu0 %561
    %v563 = vrcp.pop %v559
    %v564 = vrcp.pop %v562
    %v565 = vmul.f32 %v554, %v563
    %v566 = vmul.f32 %v556, %v564
    %v568 = vsel %vm544, %v565, 0
    %570 = vmatpush.msra.mxu0 0.0
    %571 = vmatpush.msra.mxu0 0.0
    %572 = vmatpush.msra.mxu0 0.0
    %573 = vmatpush.msra.mxu0 0.0
    %574 = vmatpush.msra.mxu0 0.0
    %575 = vmatpush.msra.mxu0 0.0
    %576 = vmatpush.msra.mxu0 0.0
    %577 = vmatpush.msra.mxu0 0.0
    %578 = vmatpush.msra.mxu0 0.0
    %579 = vmatpush.msra.mxu0 0.0
    %580 = vmatpush.msra.mxu0 0.0
    %581 = vmatpush.msra.mxu0 0.0
    %582 = vmatpush.msra.mxu0 0.0
    %583 = vmatpush.msra.mxu0 0.0
    %584 = vmatpush.msra.mxu0 0.0
    %585 = vmatpush.msra.mxu0 %v483
    %586 = vmatmul.f32.gmra.mxu0 %v568
    %v587 = vpop.f32.mrf.mxu0
    %v588 = vadd.f32 0.0, %v587
    %589 = vdwg.mxu0
    %v591 = vsel %vm544, %v566, 0
    %593 = vmatpush.msra.mxu0 0.0
    %594 = vmatpush.msra.mxu0 0.0
    %595 = vmatpush.msra.mxu0 0.0
    %596 = vmatpush.msra.mxu0 0.0
    %597 = vmatpush.msra.mxu0 0.0
    %598 = vmatpush.msra.mxu0 0.0
    %599 = vmatpush.msra.mxu0 0.0
    %600 = vmatpush.msra.mxu0 0.0
    %601 = vmatpush.msra.mxu0 0.0
    %602 = vmatpush.msra.mxu0 0.0
    %603 = vmatpush.msra.mxu0 0.0
    %604 = vmatpush.msra.mxu0 0.0
    %605 = vmatpush.msra.mxu0 0.0
    %606 = vmatpush.msra.mxu0 0.0
    %607 = vmatpush.msra.mxu0 0.0
    %608 = vmatpush.msra.mxu0 %v486
    %609 = vmatmul.f32.gmra.mxu0 %v591
    %v610 = vpop.f32.mrf.mxu0
    %v611 = vadd.f32 0.0, %v610
    %612 = vdwg.mxu0
    %613 = vrot.lane.b32.xlu0 %v437, 96
    %v614 = vpop.permute.xlu0 %613
    %615 = vrot.lane.b32.xlu0 %v460, 96
    %v616 = vpop.permute.xlu0 %615
    %v617 = vsel %vm169, %v614, 0
    %v619 = vsel %vm169, %v616, 0
    %621 = vmatpush.xpose.msra.mxu0 0.0
    %622 = vmatpush.xpose.msra.mxu0 0.0
    %623 = vmatpush.xpose.msra.mxu0 0.0
    %624 = vmatpush.xpose.msra.mxu0 0.0
    %625 = vmatpush.xpose.msra.mxu0 0.0
    %626 = vmatpush.xpose.msra.mxu0 0.0
    %627 = vmatpush.xpose.msra.mxu0 0.0
    %628 = vmatpush.xpose.msra.mxu0 0.0
    %629 = vmatpush.xpose.msra.mxu0 0.0
    %630 = vmatpush.xpose.msra.mxu0 0.0
    %631 = vmatpush.xpose.msra.mxu0 0.0
    %632 = vmatpush.xpose.msra.mxu0 0.0
    %633 = vmatpush.xpose.msra.mxu0 0.0
    %634 = vmatpush.xpose.msra.mxu0 0.0
    %635 = vmatpush.xpose.msra.mxu0 0.0
    %636 = vmatpush.xpose.msra.mxu0 %v619
    %637 = vmatmul.f32.gmra.mxu0 %v617
    %v638 = vpop.f32.mrf.mxu0
    %v639 = vadd.f32 0.0, %v638
    %640 = vdwg.mxu0
    %641 = vrot.lane.b32.xlu0 %v440, 96
    %v642 = vpop.permute.xlu0 %641
    %643 = vrot.lane.b32.xlu0 %v463, 96
    %v644 = vpop.permute.xlu0 %643
    %v645 = vsel %vm169, %v642, 0
    %v647 = vsel %vm169, %v644, 0
    %649 = vmatpush.xpose.msra.mxu0 0.0
    %650 = vmatpush.xpose.msra.mxu0 0.0
    %651 = vmatpush.xpose.msra.mxu0 0.0
    %652 = vmatpush.xpose.msra.mxu0 0.0
    %653 = vmatpush.xpose.msra.mxu0 0.0
    %654 = vmatpush.xpose.msra.mxu0 0.0
    %655 = vmatpush.xpose.msra.mxu0 0.0
    %656 = vmatpush.xpose.msra.mxu0 0.0
    %657 = vmatpush.xpose.msra.mxu0 0.0
    %658 = vmatpush.xpose.msra.mxu0 0.0
    %659 = vmatpush.xpose.msra.mxu0 0.0
    %660 = vmatpush.xpose.msra.mxu0 0.0
    %661 = vmatpush.xpose.msra.mxu0 0.0
    %662 = vmatpush.xpose.msra.mxu0 0.0
    %663 = vmatpush.xpose.msra.mxu0 0.0
    %664 = vmatpush.xpose.msra.mxu0 %v647
    %665 = vmatmul.f32.gmra.mxu0 %v645
    %v666 = vpop.f32.mrf.mxu0
    %v667 = vadd.f32 0.0, %v666
    %668 = vdwg.mxu0
    %v669 = vmul.f32 %v639, 0.17677669
    %v670 = vmul.f32 %v667, 0.17677669
    %v671 = vadd.f32 %v669, %v272
    %v672 = vadd.f32 %v670, %v273
    %v673 = vsel %vm544, %v671, -inf
    %674 = vmax.xlane.f32.xlu0 %v673
    %v675 = vpop.xlane.xlu0 %674
    %v676 = vsel %vm544, %v672, -inf
    %677 = vmax.xlane.f32.xlu0 %v676
    %v678 = vpop.xlane.xlu0 %677
    %v679 = vsub.f32 %v671, %v675
    %v680 = vsub.f32 %v672, %v678
    %v681 = vmul.f32 %v679, 1.442695
    %v682 = vpow.pop %v681
    %v683 = vmul.f32 %v680, 1.442695
    %v684 = vpow.pop %v683
    %v685 = vsel %vm544, %v682, 0.0
    %686 = vadd.xlane.f32.xlu0 %v685
    %v687 = vpop.xlane.xlu0 %686
    %v688 = vsel %vm544, %v684, 0.0
    %689 = vadd.xlane.f32.xlu0 %v688
    %v690 = vpop.xlane.xlu0 %689
    %v691 = vrcp.pop %v687
    %v692 = vrcp.pop %v690
    %v693 = vmul.f32 %v682, %v691
    %v694 = vmul.f32 %v684, %v692
    %696 = vrot.lane.b32.xlu0 %v483, 96
    %v697 = vpop.permute.xlu0 %696
    %v700 = vsel %vm544, %v693, 0
    %702 = vmatpush.msra.mxu0 0.0
    %703 = vmatpush.msra.mxu0 0.0
    %704 = vmatpush.msra.mxu0 0.0
    %705 = vmatpush.msra.mxu0 0.0
    %706 = vmatpush.msra.mxu0 0.0
    %707 = vmatpush.msra.mxu0 0.0
    %708 = vmatpush.msra.mxu0 0.0
    %709 = vmatpush.msra.mxu0 0.0
    %710 = vmatpush.msra.mxu0 0.0
    %711 = vmatpush.msra.mxu0 0.0
    %712 = vmatpush.msra.mxu0 0.0
    %713 = vmatpush.msra.mxu0 0.0
    %714 = vmatpush.msra.mxu0 0.0
    %715 = vmatpush.msra.mxu0 0.0
    %716 = vmatpush.msra.mxu0 0.0
    %717 = vmatpush.msra.mxu0 %v697
    %718 = vmatmul.f32.gmra.mxu0 %v700
    %v719 = vpop.f32.mrf.mxu0
    %v720 = vadd.f32 0.0, %v719
    %721 = vdwg.mxu0
    %723 = vrot.lane.b32.xlu0 %v486, 96
    %v724 = vpop.permute.xlu0 %723
    %v727 = vsel %vm544, %v694, 0
    %729 = vmatpush.msra.mxu0 0.0
    %730 = vmatpush.msra.mxu0 0.0
    %731 = vmatpush.msra.mxu0 0.0
    %732 = vmatpush.msra.mxu0 0.0
    %733 = vmatpush.msra.mxu0 0.0
    %734 = vmatpush.msra.mxu0 0.0
    %735 = vmatpush.msra.mxu0 0.0
    %736 = vmatpush.msra.mxu0 0.0
    %737 = vmatpush.msra.mxu0 0.0
    %738 = vmatpush.msra.mxu0 0.0
    %739 = vmatpush.msra.mxu0 0.0
    %740 = vmatpush.msra.mxu0 0.0
    %741 = vmatpush.msra.mxu0 0.0
    %742 = vmatpush.msra.mxu0 0.0
    %743 = vmatpush.msra.mxu0 0.0
    %744 = vmatpush.msra.mxu0 %v724
    %745 = vmatmul.f32.gmra.mxu0 %v727
    %v746 = vpop.f32.mrf.mxu0
    %v747 = vadd.f32 0.0, %v746
    %748 = vdwg.mxu0
    %749 = vrot.lane.b32.xlu0 %v437, 64
    %v750 = vpop.permute.xlu0 %749
    %751 = vrot.lane.b32.xlu0 %v460, 64
    %v752 = vpop.permute.xlu0 %751
    %v753 = vsel %vm169, %v750, 0
    %v755 = vsel %vm169, %v752, 0
    %757 = vmatpush.xpose.msra.mxu0 0.0
    %758 = vmatpush.xpose.msra.mxu0 0.0
    %759 = vmatpush.xpose.msra.mxu0 0.0
    %760 = vmatpush.xpose.msra.mxu0 0.0
    %761 = vmatpush.xpose.msra.mxu0 0.0
    %762 = vmatpush.xpose.msra.mxu0 0.0
    %763 = vmatpush.xpose.msra.mxu0 0.0
    %764 = vmatpush.xpose.msra.mxu0 0.0
    %765 = vmatpush.xpose.msra.mxu0 0.0
    %766 = vmatpush.xpose.msra.mxu0 0.0
    %767 = vmatpush.xpose.msra.mxu0 0.0
    %768 = vmatpush.xpose.msra.mxu0 0.0
    %769 = vmatpush.xpose.msra.mxu0 0.0
    %770 = vmatpush.xpose.msra.mxu0 0.0
    %771 = vmatpush.xpose.msra.mxu0 0.0
    %772 = vmatpush.xpose.msra.mxu0 %v755
    %773 = vmatmul.f32.gmra.mxu0 %v753
    %v774 = vpop.f32.mrf.mxu0
    %v775 = vadd.f32 0.0, %v774
    %776 = vdwg.mxu0
    %777 = vrot.lane.b32.xlu0 %v440, 64
    %v778 = vpop.permute.xlu0 %777
    %779 = vrot.lane.b32.xlu0 %v463, 64
    %v780 = vpop.permute.xlu0 %779
    %v781 = vsel %vm169, %v778, 0
    %v783 = vsel %vm169, %v780, 0
    %785 = vmatpush.xpose.msra.mxu0 0.0
    %786 = vmatpush.xpose.msra.mxu0 0.0
    %787 = vmatpush.xpose.msra.mxu0 0.0
    %788 = vmatpush.xpose.msra.mxu0 0.0
    %789 = vmatpush.xpose.msra.mxu0 0.0
    %790 = vmatpush.xpose.msra.mxu0 0.0
    %791 = vmatpush.xpose.msra.mxu0 0.0
    %792 = vmatpush.xpose.msra.mxu0 0.0
    %793 = vmatpush.xpose.msra.mxu0 0.0
    %794 = vmatpush.xpose.msra.mxu0 0.0
    %795 = vmatpush.xpose.msra.mxu0 0.0
    %796 = vmatpush.xpose.msra.mxu0 0.0
    %797 = vmatpush.xpose.msra.mxu0 0.0
    %798 = vmatpush.xpose.msra.mxu0 0.0
    %799 = vmatpush.xpose.msra.mxu0 0.0
    %800 = vmatpush.xpose.msra.mxu0 %v783
    %801 = vmatmul.f32.gmra.mxu0 %v781
    %v802 = vpop.f32.mrf.mxu0
    %v803 = vadd.f32 0.0, %v802
    %804 = vdwg.mxu0
    %v805 = vmul.f32 %v775, 0.17677669
    %v806 = vmul.f32 %v803, 0.17677669
    %v807 = vadd.f32 %v805, %v272
    %v808 = vadd.f32 %v806, %v273
    %v809 = vsel %vm544, %v807, -inf
    %810 = vmax.xlane.f32.xlu0 %v809
    %v811 = vpop.xlane.xlu0 %810
    %v812 = vsel %vm544, %v808, -inf
    %813 = vmax.xlane.f32.xlu0 %v812
    %v814 = vpop.xlane.xlu0 %813
    %v815 = vsub.f32 %v807, %v811
    %v816 = vsub.f32 %v808, %v814
    %v817 = vmul.f32 %v815, 1.442695
    %v818 = vpow.pop %v817
    %v819 = vmul.f32 %v816, 1.442695
    %v820 = vpow.pop %v819
    %v821 = vsel %vm544, %v818, 0.0
    %822 = vadd.xlane.f32.xlu0 %v821
    %v823 = vpop.xlane.xlu0 %822
    %v824 = vsel %vm544, %v820, 0.0
    %825 = vadd.xlane.f32.xlu0 %v824
    %v826 = vpop.xlane.xlu0 %825
    %v827 = vrcp.pop %v823
    %v828 = vrcp.pop %v826
    %v829 = vmul.f32 %v818, %v827
    %v830 = vmul.f32 %v820, %v828
    %831 = vrot.lane.b32.xlu0 %v483, 64
    %v832 = vpop.permute.xlu0 %831
    %v835 = vsel %vm544, %v829, 0
    %837 = vmatpush.msra.mxu0 0.0
    %838 = vmatpush.msra.mxu0 0.0
    %839 = vmatpush.msra.mxu0 0.0
    %840 = vmatpush.msra.mxu0 0.0
    %841 = vmatpush.msra.mxu0 0.0
    %842 = vmatpush.msra.mxu0 0.0
    %843 = vmatpush.msra.mxu0 0.0
    %844 = vmatpush.msra.mxu0 0.0
    %845 = vmatpush.msra.mxu0 0.0
    %846 = vmatpush.msra.mxu0 0.0
    %847 = vmatpush.msra.mxu0 0.0
    %848 = vmatpush.msra.mxu0 0.0
    %849 = vmatpush.msra.mxu0 0.0
    %850 = vmatpush.msra.mxu0 0.0
    %851 = vmatpush.msra.mxu0 0.0
    %852 = vmatpush.msra.mxu0 %v832
    %853 = vmatmul.f32.gmra.mxu0 %v835
    %v854 = vpop.f32.mrf.mxu0
    %v855 = vadd.f32 0.0, %v854
    %856 = vdwg.mxu0
    %857 = vrot.lane.b32.xlu0 %v486, 64
    %v858 = vpop.permute.xlu0 %857
    %v861 = vsel %vm544, %v830, 0
    %863 = vmatpush.msra.mxu0 0.0
    %864 = vmatpush.msra.mxu0 0.0
    %865 = vmatpush.msra.mxu0 0.0
    %866 = vmatpush.msra.mxu0 0.0
    %867 = vmatpush.msra.mxu0 0.0
    %868 = vmatpush.msra.mxu0 0.0
    %869 = vmatpush.msra.mxu0 0.0
    %870 = vmatpush.msra.mxu0 0.0
    %871 = vmatpush.msra.mxu0 0.0
    %872 = vmatpush.msra.mxu0 0.0
    %873 = vmatpush.msra.mxu0 0.0
    %874 = vmatpush.msra.mxu0 0.0
    %875 = vmatpush.msra.mxu0 0.0
    %876 = vmatpush.msra.mxu0 0.0
    %877 = vmatpush.msra.mxu0 0.0
    %878 = vmatpush.msra.mxu0 %v858
    %879 = vmatmul.f32.gmra.mxu0 %v861
    %v880 = vpop.f32.mrf.mxu0
    %v881 = vadd.f32 0.0, %v880
    %882 = vdwg.mxu0
    %883 = vrot.lane.b32.xlu0 %v437, 32
    %v884 = vpop.permute.xlu0 %883
    %885 = vrot.lane.b32.xlu0 %v460, 32
    %v886 = vpop.permute.xlu0 %885
    %v887 = vsel %vm169, %v884, 0
    %v889 = vsel %vm169, %v886, 0
    %891 = vmatpush.xpose.msra.mxu0 0.0
    %892 = vmatpush.xpose.msra.mxu0 0.0
    %893 = vmatpush.xpose.msra.mxu0 0.0
    %894 = vmatpush.xpose.msra.mxu0 0.0
    %895 = vmatpush.xpose.msra.mxu0 0.0
    %896 = vmatpush.xpose.msra.mxu0 0.0
    %897 = vmatpush.xpose.msra.mxu0 0.0
    %898 = vmatpush.xpose.msra.mxu0 0.0
    %899 = vmatpush.xpose.msra.mxu0 0.0
    %900 = vmatpush.xpose.msra.mxu0 0.0
    %901 = vmatpush.xpose.msra.mxu0 0.0
    %902 = vmatpush.xpose.msra.mxu0 0.0
    %903 = vmatpush.xpose.msra.mxu0 0.0
    %904 = vmatpush.xpose.msra.mxu0 0.0
    %905 = vmatpush.xpose.msra.mxu0 0.0
    %906 = vmatpush.xpose.msra.mxu0 %v889
    %907 = vmatmul.f32.gmra.mxu0 %v887
    %v908 = vpop.f32.mrf.mxu0
    %v909 = vadd.f32 0.0, %v908
    %910 = vdwg.mxu0
    %911 = vrot.lane.b32.xlu0 %v440, 32
    %v912 = vpop.permute.xlu0 %911
    %913 = vrot.lane.b32.xlu0 %v463, 32
    %v914 = vpop.permute.xlu0 %913
    %v915 = vsel %vm169, %v912, 0
    %v917 = vsel %vm169, %v914, 0
    %919 = vmatpush.xpose.msra.mxu0 0.0
    %920 = vmatpush.xpose.msra.mxu0 0.0
    %921 = vmatpush.xpose.msra.mxu0 0.0
    %922 = vmatpush.xpose.msra.mxu0 0.0
    %923 = vmatpush.xpose.msra.mxu0 0.0
    %924 = vmatpush.xpose.msra.mxu0 0.0
    %925 = vmatpush.xpose.msra.mxu0 0.0
    %926 = vmatpush.xpose.msra.mxu0 0.0
    %927 = vmatpush.xpose.msra.mxu0 0.0
    %928 = vmatpush.xpose.msra.mxu0 0.0
    %929 = vmatpush.xpose.msra.mxu0 0.0
    %930 = vmatpush.xpose.msra.mxu0 0.0
    %931 = vmatpush.xpose.msra.mxu0 0.0
    %932 = vmatpush.xpose.msra.mxu0 0.0
    %933 = vmatpush.xpose.msra.mxu0 0.0
    %934 = vmatpush.xpose.msra.mxu0 %v917
    %935 = vmatmul.f32.gmra.mxu0 %v915
    %v936 = vpop.f32.mrf.mxu0
    %v937 = vadd.f32 0.0, %v936
    %938 = vdwg.mxu0
    %v939 = vmul.f32 %v909, 0.17677669
    %v940 = vmul.f32 %v937, 0.17677669
    %v941 = vadd.f32 %v939, %v272
    %v942 = vadd.f32 %v940, %v273
    %v943 = vsel %vm544, %v941, -inf
    %944 = vmax.xlane.f32.xlu0 %v943
    %v945 = vpop.xlane.xlu0 %944
    %v946 = vsel %vm544, %v942, -inf
    %947 = vmax.xlane.f32.xlu0 %v946
    %v948 = vpop.xlane.xlu0 %947
    %v949 = vsub.f32 %v941, %v945
    %v950 = vsub.f32 %v942, %v948
    %v951 = vmul.f32 %v949, 1.442695
    %v952 = vpow.pop %v951
    %v953 = vmul.f32 %v950, 1.442695
    %v954 = vpow.pop %v953
    %v955 = vsel %vm544, %v952, 0.0
    %956 = vadd.xlane.f32.xlu0 %v955
    %v957 = vpop.xlane.xlu0 %956
    %v958 = vsel %vm544, %v954, 0.0
    %959 = vadd.xlane.f32.xlu0 %v958
    %v960 = vpop.xlane.xlu0 %959
    %v961 = vrcp.pop %v957
    %v962 = vrcp.pop %v960
    %v963 = vmul.f32 %v952, %v961
    %v964 = vmul.f32 %v954, %v962
    %965 = vrot.lane.b32.xlu0 %v483, 32
    %v966 = vpop.permute.xlu0 %965
    %v969 = vsel %vm544, %v963, 0
    %971 = vmatpush.msra.mxu0 0.0
    %972 = vmatpush.msra.mxu0 0.0
    %973 = vmatpush.msra.mxu0 0.0
    %974 = vmatpush.msra.mxu0 0.0
    %975 = vmatpush.msra.mxu0 0.0
    %976 = vmatpush.msra.mxu0 0.0
    %977 = vmatpush.msra.mxu0 0.0
    %978 = vmatpush.msra.mxu0 0.0
    %979 = vmatpush.msra.mxu0 0.0
    %980 = vmatpush.msra.mxu0 0.0
    %981 = vmatpush.msra.mxu0 0.0
    %982 = vmatpush.msra.mxu0 0.0
    %983 = vmatpush.msra.mxu0 0.0
    %984 = vmatpush.msra.mxu0 0.0
    %985 = vmatpush.msra.mxu0 0.0
    %986 = vmatpush.msra.mxu0 %v966
    %987 = vmatmul.f32.gmra.mxu0 %v969
    %v988 = vpop.f32.mrf.mxu0
    %v989 = vadd.f32 0.0, %v988
    %990 = vdwg.mxu0
    %991 = vrot.lane.b32.xlu0 %v486, 32
    %v992 = vpop.permute.xlu0 %991
    %v995 = vsel %vm544, %v964, 0
    %997 = vmatpush.msra.mxu0 0.0
    %998 = vmatpush.msra.mxu0 0.0
    %999 = vmatpush.msra.mxu0 0.0
    %1000 = vmatpush.msra.mxu0 0.0
    %1001 = vmatpush.msra.mxu0 0.0
    %1002 = vmatpush.msra.mxu0 0.0
    %1003 = vmatpush.msra.mxu0 0.0
    %1004 = vmatpush.msra.mxu0 0.0
    %1005 = vmatpush.msra.mxu0 0.0
    %1006 = vmatpush.msra.mxu0 0.0
    %1007 = vmatpush.msra.mxu0 0.0
    %1008 = vmatpush.msra.mxu0 0.0
    %1009 = vmatpush.msra.mxu0 0.0
    %1010 = vmatpush.msra.mxu0 0.0
    %1011 = vmatpush.msra.mxu0 0.0
    %1012 = vmatpush.msra.mxu0 %v992
    %1013 = vmatmul.f32.gmra.mxu0 %v995
    %v1014 = vpop.f32.mrf.mxu0
    %v1015 = vadd.f32 0.0, %v1014
    %1016 = vdwg.mxu0
    %1019 = vrot.lane.b32.xlu0 %v720, 32
    %v1020 = vpop.permute.xlu0 %1019
    %1021 = vrot.lane.b32.xlu0 %v747, 32
    %v1022 = vpop.permute.xlu0 %1021
    %1027 = vrot.lane.b32.xlu0 %v855, 64
    %v1028 = vpop.permute.xlu0 %1027
    %1029 = vrot.lane.b32.xlu0 %v881, 64
    %v1030 = vpop.permute.xlu0 %1029
    %1035 = vrot.lane.b32.xlu0 %v989, 96
    %v1036 = vpop.permute.xlu0 %1035
    %1037 = vrot.lane.b32.xlu0 %v1015, 96
    %v1038 = vpop.permute.xlu0 %1037
    %v1041 = vsel %vm169, %v588, %v1020
    %v1042 = vsel %vm169, %v611, %v1022
    %vm1043 = vcmask 523264
    %v1044 = vsel %vm1043, %v1041, %v1028
    %v1045 = vsel %vm1043, %v1042, %v1030
    %vm1046 = vcmask 785408
    %v1047 = vsel %vm1046, %v1044, %v1036
    %v1048 = vsel %vm1046, %v1045, %v1038
    %v1050 = vperm.slane %v341, 0
    %1052 = vmatpush.msra.mxu0 %v340
    %1053 = vmatpush.msra.mxu0 %v339
    %1054 = vmatpush.msra.mxu0 %v338
    %1055 = vmatpush.msra.mxu0 %v337
    %1056 = vmatpush.msra.mxu0 %v336
    %1057 = vmatpush.msra.mxu0 %v335
    %1058 = vmatpush.msra.mxu0 %v334
    %1059 = vmatpush.msra.mxu0 %v333
    %1060 = vmatpush.msra.mxu0 %v332
    %1061 = vmatpush.msra.mxu0 %v331
    %1062 = vmatpush.msra.mxu0 %v330
    %1063 = vmatpush.msra.mxu0 %v329
    %1064 = vmatpush.msra.mxu0 %v328
    %1065 = vmatpush.msra.mxu0 %v327
    %1066 = vmatpush.msra.mxu0 %v326
    %1067 = vmatpush.msra.mxu0 %v325
    %1068 = vmatmul.f32.gmra.mxu0 %v1047
    %v1069 = vpop.f32.mrf.mxu0
    %v1070 = vadd.f32 %v1050, %v1069
    %1071 = vmatmul.f32.gmra.mxu0 %v1048
    %v1072 = vpop.f32.mrf.mxu0
    %v1073 = vadd.f32 %v1050, %v1072
    %1074 = vdwg.mxu0
    %v1075 = vadd.f32 %v263, %v1070
    %v1076 = vadd.f32 %v266, %v1073
    %1077 = vadd.xlane.f32.xlu0 %v1075
    %v1078 = vpop.xlane.xlu0 %1077
    %1079 = vadd.xlane.f32.xlu0 %v1076
    %v1080 = vpop.xlane.xlu0 %1079
    %v1081 = vrcp.pop 128.0
    %v1082 = vmul.f32 128.0, %v1081
    %v1083 = vsub.f32 1.0, %v1082
    %v1084 = vmul.f32 %v1081, %v1083
    %v1085 = vadd.f32 %v1081, %v1084
    %vm1086 = vweird.f32 %v1081
    %v1087 = vsel %vm1086, %v1081, %v1085
    %v1088 = vmul.f32 %v1078, %v1087
    %v1089 = vmul.f32 %v1080, %v1087
    %v1090 = vsub.f32 %v1075, %v1088
    %v1091 = vsub.f32 %v1076, %v1089
    %v1092 = vmul.f32 %v1090, %v1090
    %v1093 = vmul.f32 %v1091, %v1091
    %1094 = vadd.xlane.f32.xlu0 %v1092
    %v1095 = vpop.xlane.xlu0 %1094
    %1096 = vadd.xlane.f32.xlu0 %v1093
    %v1097 = vpop.xlane.xlu0 %1096
    %v1098 = vmul.f32 %v1095, %v1087
    %v1099 = vmul.f32 %v1097, %v1087
    %v1100 = vadd.f32 %v1098, 1e-12
    %v1101 = vadd.f32 %v1099, 1e-12
    %v1102 = vrsqrt.pop %v1100
    %v1103 = vmul.f32 %v1102, %v1100
    %v1104 = vmul.f32 %v1103, %v1102
    %v1105 = vmul.f32 0.5, %v1104
    %v1106 = vsub.f32 1.5, %v1105
    %v1107 = vmul.f32 %v1102, %v1106
    %vm1108 = vweird.f32 %v1100
    %vm1109 = vweird.f32 %v1102
    %vm1110 = vmor %vm1108, %vm1109
    %v1111 = vsel %vm1110, %v1102, %v1107
    %v1112 = vrsqrt.pop %v1101
    %v1113 = vmul.f32 %v1112, %v1101
    %v1114 = vmul.f32 %v1113, %v1112
    %v1115 = vmul.f32 0.5, %v1114
    %v1116 = vsub.f32 1.5, %v1115
    %v1117 = vmul.f32 %v1112, %v1116
    %vm1118 = vweird.f32 %v1101
    %vm1119 = vweird.f32 %v1112
    %vm1120 = vmor %vm1118, %vm1119
    %v1121 = vsel %vm1120, %v1112, %v1117
    %v1122 = vmul.f32 %v1090, %v1111
    %v1123 = vmul.f32 %v1091, %v1121
    %v1125 = vperm.slane %v342, 0
    %v1127 = vmul.f32 %v1122, %v1125
    %v1128 = vmul.f32 %v1123, %v1125
    %v1130 = vperm.slane %v343, 0
    %v1132 = vadd.f32 %v1127, %v1130
    %v1133 = vadd.f32 %v1128, %v1130
    %v1135 = vperm.slane %v376, 0
    %v1136 = vperm.slane %v376, 1
    %1139 = vmatpush.msra.mxu0 %v374
    %1140 = vmatpush.msra.mxu0 %v372
    %1141 = vmatpush.msra.mxu0 %v370
    %1142 = vmatpush.msra.mxu0 %v368
    %1143 = vmatpush.msra.mxu0 %v366
    %1144 = vmatpush.msra.mxu0 %v364
    %1145 = vmatpush.msra.mxu0 %v362
    %1146 = vmatpush.msra.mxu0 %v360
    %1147 = vmatpush.msra.mxu0 %v358
    %1148 = vmatpush.msra.mxu0 %v356
    %1149 = vmatpush.msra.mxu0 %v354
    %1150 = vmatpush.msra.mxu0 %v352
    %1151 = vmatpush.msra.mxu0 %v350
    %1152 = vmatpush.msra.mxu0 %v348
    %1153 = vmatpush.msra.mxu0 %v346
    %1154 = vmatpush.msra.mxu0 %v344
    %1155 = vmatmul.f32.gmra.mxu0 %v1132
    %v1156 = vpop.f32.mrf.mxu0
    %v1157 = vadd.f32 %v1135, %v1156
    %1158 = vmatmul.f32.gmra.mxu0 %v1133
    %v1159 = vpop.f32.mrf.mxu0
    %v1160 = vadd.f32 %v1135, %v1159
    %1161 = vdwg.mxu0
    %1162 = vmatpush.msra.mxu0 %v375
    %1163 = vmatpush.msra.mxu0 %v373
    %1164 = vmatpush.msra.mxu0 %v371
    %1165 = vmatpush.msra.mxu0 %v369
    %1166 = vmatpush.msra.mxu0 %v367
    %1167 = vmatpush.msra.mxu0 %v365
    %1168 = vmatpush.msra.mxu0 %v363
    %1169 = vmatpush.msra.mxu0 %v361
    %1170 = vmatpush.msra.mxu0 %v359
    %1171 = vmatpush.msra.mxu0 %v357
    %1172 = vmatpush.msra.mxu0 %v355
    %1173 = vmatpush.msra.mxu0 %v353
    %1174 = vmatpush.msra.mxu0 %v351
    %1175 = vmatpush.msra.mxu0 %v349
    %1176 = vmatpush.msra.mxu0 %v347
    %1177 = vmatpush.msra.mxu0 %v345
    %1178 = vmatmul.f32.gmra.mxu0 %v1132
    %v1179 = vpop.f32.mrf.mxu0
    %v1180 = vadd.f32 %v1136, %v1179
    %1181 = vmatmul.f32.gmra.mxu0 %v1133
    %v1182 = vpop.f32.mrf.mxu0
    %v1183 = vadd.f32 %v1136, %v1182
    %1184 = vdwg.mxu0
    %v1185 = vmul.f32 %v1157, %v1157
    %v1186 = vmul.f32 %v1180, %v1180
    %v1187 = vmul.f32 %v1160, %v1160
    %v1188 = vmul.f32 %v1183, %v1183
    %v1189 = vmul.f32 %v1157, %v1185
    %v1190 = vmul.f32 %v1180, %v1186
    %v1191 = vmul.f32 %v1160, %v1187
    %v1192 = vmul.f32 %v1183, %v1188
    %v1193 = vmul.f32 %v1189, 0.044715
    %v1194 = vmul.f32 %v1190, 0.044715
    %v1195 = vmul.f32 %v1191, 0.044715
    %v1196 = vmul.f32 %v1192, 0.044715
    %v1197 = vadd.f32 %v1157, %v1193
    %v1198 = vadd.f32 %v1180, %v1194
    %v1199 = vadd.f32 %v1160, %v1195
    %v1200 = vadd.f32 %v1183, %v1196
    %v1201 = vmul.f32 %v1197, 0.7978846
    %v1202 = vmul.f32 %v1198, 0.7978846
    %v1203 = vmul.f32 %v1199, 0.7978846
    %v1204 = vmul.f32 %v1200, 0.7978846
    %v1205 = vtanh.pop %v1201
    %v1206 = vtanh.pop %v1202
    %v1207 = vtanh.pop %v1203
    %v1208 = vtanh.pop %v1204
    %v1209 = vadd.f32 %v1205, 1.0
    %v1210 = vadd.f32 %v1206, 1.0
    %v1211 = vadd.f32 %v1207, 1.0
    %v1212 = vadd.f32 %v1208, 1.0
    %v1213 = vmul.f32 %v1209, 0.5
    %v1214 = vmul.f32 %v1210, 0.5
    %v1215 = vmul.f32 %v1211, 0.5
    %v1216 = vmul.f32 %v1212, 0.5
    %v1217 = vmul.f32 %v1157, %v1213
    %v1218 = vmul.f32 %v1180, %v1214
    %v1219 = vmul.f32 %v1160, %v1215
    %v1220 = vmul.f32 %v1183, %v1216
    %v1222 = vperm.slane %v409, 0
    %1224 = vmatpush.msra.mxu0 %v392
    %1225 = vmatpush.msra.mxu0 %v391
    %1226 = vmatpush.msra.mxu0 %v390
    %1227 = vmatpush.msra.mxu0 %v389
    %1228 = vmatpush.msra.mxu0 %v388
    %1229 = vmatpush.msra.mxu0 %v387
    %1230 = vmatpush.msra.mxu0 %v386
    %1231 = vmatpush.msra.mxu0 %v385
    %1232 = vmatpush.msra.mxu0 %v384
    %1233 = vmatpush.msra.mxu0 %v383
    %1234 = vmatpush.msra.mxu0 %v382
    %1235 = vmatpush.msra.mxu0 %v381
    %1236 = vmatpush.msra.mxu0 %v380
    %1237 = vmatpush.msra.mxu0 %v379
    %1238 = vmatpush.msra.mxu0 %v378
    %1239 = vmatpush.msra.mxu0 %v377
    %1240 = vmatmul.f32.gmra.mxu0 %v1217
    %v1241 = vpop.f32.mrf.mxu0
    %v1242 = vadd.f32 %v1222, %v1241
    %1243 = vmatmul.f32.gmra.mxu0 %v1219
    %v1244 = vpop.f32.mrf.mxu0
    %v1245 = vadd.f32 %v1222, %v1244
    %1246 = vdwg.mxu0
    %1247 = vmatpush.msra.mxu0 %v408
    %1248 = vmatpush.msra.mxu0 %v407
    %1249 = vmatpush.msra.mxu0 %v406
    %1250 = vmatpush.msra.mxu0 %v405
    %1251 = vmatpush.msra.mxu0 %v404
    %1252 = vmatpush.msra.mxu0 %v403
    %1253 = vmatpush.msra.mxu0 %v402
    %1254 = vmatpush.msra.mxu0 %v401
    %1255 = vmatpush.msra.mxu0 %v400
    %1256 = vmatpush.msra.mxu0 %v399
    %1257 = vmatpush.msra.mxu0 %v398
    %1258 = vmatpush.msra.mxu0 %v397
    %1259 = vmatpush.msra.mxu0 %v396
    %1260 = vmatpush.msra.mxu0 %v395
    %1261 = vmatpush.msra.mxu0 %v394
    %1262 = vmatpush.msra.mxu0 %v393
    %1263 = vmatmul.f32.gmra.mxu0 %v1218
    %v1264 = vpop.f32.mrf.mxu0
    %v1265 = vadd.f32 %v1242, %v1264
    %1266 = vmatmul.f32.gmra.mxu0 %v1220
    %v1267 = vpop.f32.mrf.mxu0
    %v1268 = vadd.f32 %v1245, %v1267
    %1269 = vdwg.mxu0
    %v1270 = vadd.f32 %v1132, %v1265
    %v1271 = vadd.f32 %v1133, %v1268
    %1272 = vadd.xlane.f32.xlu0 %v1270
    %v1273 = vpop.xlane.xlu0 %1272
    %1274 = vadd.xlane.f32.xlu0 %v1271
    %v1275 = vpop.xlane.xlu0 %1274
    %v1276 = vmul.f32 %v1273, %v1087
    %v1277 = vmul.f32 %v1275, %v1087
    %v1278 = vsub.f32 %v1270, %v1276
    %v1279 = vsub.f32 %v1271, %v1277
    %v1280 = vmul.f32 %v1278, %v1278
    %v1281 = vmul.f32 %v1279, %v1279
    %1282 = vadd.xlane.f32.xlu0 %v1280
    %v1283 = vpop.xlane.xlu0 %1282
    %1284 = vadd.xlane.f32.xlu0 %v1281
    %v1285 = vpop.xlane.xlu0 %1284
    %v1286 = vmul.f32 %v1283, %v1087
    %v1287 = vmul.f32 %v1285, %v1087
    %v1288 = vadd.f32 %v1286, 1e-12
    %v1289 = vadd.f32 %v1287, 1e-12
    %v1290 = vrsqrt.pop %v1288
    %v1291 = vmul.f32 %v1290, %v1288
    %v1292 = vmul.f32 %v1291, %v1290
    %v1293 = vmul.f32 0.5, %v1292
    %v1294 = vsub.f32 1.5, %v1293
    %v1295 = vmul.f32 %v1290, %v1294
    %vm1296 = vweird.f32 %v1288
    %vm1297 = vweird.f32 %v1290
    %vm1298 = vmor %vm1296, %vm1297
    %v1299 = vsel %vm1298, %v1290, %v1295
    %v1300 = vrsqrt.pop %v1289
    %v1301 = vmul.f32 %v1300, %v1289
    %v1302 = vmul.f32 %v1301, %v1300
    %v1303 = vmul.f32 0.5, %v1302
    %v1304 = vsub.f32 1.5, %v1303
    %v1305 = vmul.f32 %v1300, %v1304
    %vm1306 = vweird.f32 %v1289
    %vm1307 = vweird.f32 %v1300
    %vm1308 = vmor %vm1306, %vm1307
    %v1309 = vsel %vm1308, %v1300, %v1305
    %v1310 = vmul.f32 %v1278, %v1299
    %v1311 = vmul.f32 %v1279, %v1309
    %v1313 = vperm.slane %v410, 0
    %v1315 = vmul.f32 %v1310, %v1313
    %v1316 = vmul.f32 %v1311, %v1313
    %v1318 = vperm.slane %v411, 0
    %v1320 = vadd.f32 %v1315, %v1318
    %v1321 = vadd.f32 %v1316, %v1318
    %1322 = vmatpush.msra.mxu0 %v321
    %1323 = vmatpush.msra.mxu0 %v318
    %1324 = vmatpush.msra.mxu0 %v315
    %1325 = vmatpush.msra.mxu0 %v312
    %1326 = vmatpush.msra.mxu0 %v309
    %1327 = vmatpush.msra.mxu0 %v306
    %1328 = vmatpush.msra.mxu0 %v303
    %1329 = vmatpush.msra.mxu0 %v300
    %1330 = vmatpush.msra.mxu0 %v297
    %1331 = vmatpush.msra.mxu0 %v294
    %1332 = vmatpush.msra.mxu0 %v291
    %1333 = vmatpush.msra.mxu0 %v288
    %1334 = vmatpush.msra.mxu0 %v285
    %1335 = vmatpush.msra.mxu0 %v282
    %1336 = vmatpush.msra.mxu0 %v279
    %1337 = vmatpush.msra.mxu0 %v276
    %1338 = vmatmul.f32.gmra.mxu0 %v1320
    %v1339 = vpop.f32.mrf.mxu0
    %v1340 = vadd.f32 %v413, %v1339
    %1341 = vmatmul.f32.gmra.mxu0 %v1321
    %v1342 = vpop.f32.mrf.mxu0
    %v1343 = vadd.f32 %v413, %v1342
    %1344 = vdwg.mxu0
    %1345 = vmatpush.msra.mxu0 %v322
    %1346 = vmatpush.msra.mxu0 %v319
    %1347 = vmatpush.msra.mxu0 %v316
    %1348 = vmatpush.msra.mxu0 %v313
    %1349 = vmatpush.msra.mxu0 %v310
    %1350 = vmatpush.msra.mxu0 %v307
    %1351 = vmatpush.msra.mxu0 %v304
    %1352 = vmatpush.msra.mxu0 %v301
    %1353 = vmatpush.msra.mxu0 %v298
    %1354 = vmatpush.msra.mxu0 %v295
    %1355 = vmatpush.msra.mxu0 %v292
    %1356 = vmatpush.msra.mxu0 %v289
    %1357 = vmatpush.msra.mxu0 %v286
    %1358 = vmatpush.msra.mxu0 %v283
    %1359 = vmatpush.msra.mxu0 %v280
    %1360 = vmatpush.msra.mxu0 %v277
    %1361 = vmatmul.f32.gmra.mxu0 %v1320
    %v1362 = vpop.f32.mrf.mxu0
    %v1363 = vadd.f32 %v414, %v1362
    %1364 = vmatmul.f32.gmra.mxu0 %v1321
    %v1365 = vpop.f32.mrf.mxu0
    %v1366 = vadd.f32 %v414, %v1365
    %1367 = vdwg.mxu0
    %1368 = vmatpush.msra.mxu0 %v323
    %1369 = vmatpush.msra.mxu0 %v320
    %1370 = vmatpush.msra.mxu0 %v317
    %1371 = vmatpush.msra.mxu0 %v314
    %1372 = vmatpush.msra.mxu0 %v311
    %1373 = vmatpush.msra.mxu0 %v308
    %1374 = vmatpush.msra.mxu0 %v305
    %1375 = vmatpush.msra.mxu0 %v302
    %1376 = vmatpush.msra.mxu0 %v299
    %1377 = vmatpush.msra.mxu0 %v296
    %1378 = vmatpush.msra.mxu0 %v293
    %1379 = vmatpush.msra.mxu0 %v290
    %1380 = vmatpush.msra.mxu0 %v287
    %1381 = vmatpush.msra.mxu0 %v284
    %1382 = vmatpush.msra.mxu0 %v281
    %1383 = vmatpush.msra.mxu0 %v278
    %1384 = vmatmul.f32.gmra.mxu0 %v1320
    %v1385 = vpop.f32.mrf.mxu0
    %v1386 = vadd.f32 %v415, %v1385
    %1387 = vmatmul.f32.gmra.mxu0 %v1321
    %v1388 = vpop.f32.mrf.mxu0
    %v1389 = vadd.f32 %v415, %v1388
    %1390 = vdwg.mxu0
    %v1392 = vsel %vm169, %v1340, 0
    %v1395 = vsel %vm169, %v1363, 0
    %1397 = vmatpush.xpose.msra.mxu0 0.0
    %1398 = vmatpush.xpose.msra.mxu0 0.0
    %1399 = vmatpush.xpose.msra.mxu0 0.0
    %1400 = vmatpush.xpose.msra.mxu0 0.0
    %1401 = vmatpush.xpose.msra.mxu0 0.0
    %1402 = vmatpush.xpose.msra.mxu0 0.0
    %1403 = vmatpush.xpose.msra.mxu0 0.0
    %1404 = vmatpush.xpose.msra.mxu0 0.0
    %1405 = vmatpush.xpose.msra.mxu0 0.0
    %1406 = vmatpush.xpose.msra.mxu0 0.0
    %1407 = vmatpush.xpose.msra.mxu0 0.0
    %1408 = vmatpush.xpose.msra.mxu0 0.0
    %1409 = vmatpush.xpose.msra.mxu0 0.0
    %1410 = vmatpush.xpose.msra.mxu0 0.0
    %1411 = vmatpush.xpose.msra.mxu0 0.0
    %1412 = vmatpush.xpose.msra.mxu0 %v1395
    %1413 = vmatmul.f32.gmra.mxu0 %v1392
    %v1414 = vpop.f32.mrf.mxu0
    %v1415 = vadd.f32 0.0, %v1414
    %1416 = vdwg.mxu0
    %v1418 = vsel %vm169, %v1343, 0
    %v1421 = vsel %vm169, %v1366, 0
    %1423 = vmatpush.xpose.msra.mxu0 0.0
    %1424 = vmatpush.xpose.msra.mxu0 0.0
    %1425 = vmatpush.xpose.msra.mxu0 0.0
    %1426 = vmatpush.xpose.msra.mxu0 0.0
    %1427 = vmatpush.xpose.msra.mxu0 0.0
    %1428 = vmatpush.xpose.msra.mxu0 0.0
    %1429 = vmatpush.xpose.msra.mxu0 0.0
    %1430 = vmatpush.xpose.msra.mxu0 0.0
    %1431 = vmatpush.xpose.msra.mxu0 0.0
    %1432 = vmatpush.xpose.msra.mxu0 0.0
    %1433 = vmatpush.xpose.msra.mxu0 0.0
    %1434 = vmatpush.xpose.msra.mxu0 0.0
    %1435 = vmatpush.xpose.msra.mxu0 0.0
    %1436 = vmatpush.xpose.msra.mxu0 0.0
    %1437 = vmatpush.xpose.msra.mxu0 0.0
    %1438 = vmatpush.xpose.msra.mxu0 %v1421
    %1439 = vmatmul.f32.gmra.mxu0 %v1418
    %v1440 = vpop.f32.mrf.mxu0
    %v1441 = vadd.f32 0.0, %v1440
    %1442 = vdwg.mxu0
    %v1443 = vmul.f32 %v1415, 0.17677669
    %v1444 = vmul.f32 %v1441, 0.17677669
    %v1445 = vadd.f32 %v1443, %v272
    %v1446 = vadd.f32 %v1444, %v273
    %v1447 = vsel %vm544, %v1445, -inf
    %1448 = vmax.xlane.f32.xlu0 %v1447
    %v1449 = vpop.xlane.xlu0 %1448
    %v1450 = vsel %vm544, %v1446, -inf
    %1451 = vmax.xlane.f32.xlu0 %v1450
    %v1452 = vpop.xlane.xlu0 %1451
    %v1453 = vsub.f32 %v1445, %v1449
    %v1454 = vsub.f32 %v1446, %v1452
    %v1455 = vmul.f32 %v1453, 1.442695
    %v1456 = vpow.pop %v1455
    %v1457 = vmul.f32 %v1454, 1.442695
    %v1458 = vpow.pop %v1457
    %v1459 = vsel %vm544, %v1456, 0.0
    %1460 = vadd.xlane.f32.xlu0 %v1459
    %v1461 = vpop.xlane.xlu0 %1460
    %v1462 = vsel %vm544, %v1458, 0.0
    %1463 = vadd.xlane.f32.xlu0 %v1462
    %v1464 = vpop.xlane.xlu0 %1463
    %v1465 = vrcp.pop %v1461
    %v1466 = vrcp.pop %v1464
    %v1467 = vmul.f32 %v1456, %v1465
    %v1468 = vmul.f32 %v1458, %v1466
    %v1470 = vsel %vm544, %v1467, 0
    %1472 = vmatpush.msra.mxu0 0.0
    %1473 = vmatpush.msra.mxu0 0.0
    %1474 = vmatpush.msra.mxu0 0.0
    %1475 = vmatpush.msra.mxu0 0.0
    %1476 = vmatpush.msra.mxu0 0.0
    %1477 = vmatpush.msra.mxu0 0.0
    %1478 = vmatpush.msra.mxu0 0.0
    %1479 = vmatpush.msra.mxu0 0.0
    %1480 = vmatpush.msra.mxu0 0.0
    %1481 = vmatpush.msra.mxu0 0.0
    %1482 = vmatpush.msra.mxu0 0.0
    %1483 = vmatpush.msra.mxu0 0.0
    %1484 = vmatpush.msra.mxu0 0.0
    %1485 = vmatpush.msra.mxu0 0.0
    %1486 = vmatpush.msra.mxu0 0.0
    %1487 = vmatpush.msra.mxu0 %v1386
    %1488 = vmatmul.f32.gmra.mxu0 %v1470
    %v1489 = vpop.f32.mrf.mxu0
    %v1490 = vadd.f32 0.0, %v1489
    %1491 = vdwg.mxu0
    %v1493 = vsel %vm544, %v1468, 0
    %1495 = vmatpush.msra.mxu0 0.0
    %1496 = vmatpush.msra.mxu0 0.0
    %1497 = vmatpush.msra.mxu0 0.0
    %1498 = vmatpush.msra.mxu0 0.0
    %1499 = vmatpush.msra.mxu0 0.0
    %1500 = vmatpush.msra.mxu0 0.0
    %1501 = vmatpush.msra.mxu0 0.0
    %1502 = vmatpush.msra.mxu0 0.0
    %1503 = vmatpush.msra.mxu0 0.0
    %1504 = vmatpush.msra.mxu0 0.0
    %1505 = vmatpush.msra.mxu0 0.0
    %1506 = vmatpush.msra.mxu0 0.0
    %1507 = vmatpush.msra.mxu0 0.0
    %1508 = vmatpush.msra.mxu0 0.0
    %1509 = vmatpush.msra.mxu0 0.0
    %1510 = vmatpush.msra.mxu0 %v1389
    %1511 = vmatmul.f32.gmra.mxu0 %v1493
    %v1512 = vpop.f32.mrf.mxu0
    %v1513 = vadd.f32 0.0, %v1512
    %1514 = vdwg.mxu0
    %1515 = vrot.lane.b32.xlu0 %v1340, 96
    %v1516 = vpop.permute.xlu0 %1515
    %1517 = vrot.lane.b32.xlu0 %v1363, 96
    %v1518 = vpop.permute.xlu0 %1517
    %v1519 = vsel %vm169, %v1516, 0
    %v1521 = vsel %vm169, %v1518, 0
    %1523 = vmatpush.xpose.msra.mxu0 0.0
    %1524 = vmatpush.xpose.msra.mxu0 0.0
    %1525 = vmatpush.xpose.msra.mxu0 0.0
    %1526 = vmatpush.xpose.msra.mxu0 0.0
    %1527 = vmatpush.xpose.msra.mxu0 0.0
    %1528 = vmatpush.xpose.msra.mxu0 0.0
    %1529 = vmatpush.xpose.msra.mxu0 0.0
    %1530 = vmatpush.xpose.msra.mxu0 0.0
    %1531 = vmatpush.xpose.msra.mxu0 0.0
    %1532 = vmatpush.xpose.msra.mxu0 0.0
    %1533 = vmatpush.xpose.msra.mxu0 0.0
    %1534 = vmatpush.xpose.msra.mxu0 0.0
    %1535 = vmatpush.xpose.msra.mxu0 0.0
    %1536 = vmatpush.xpose.msra.mxu0 0.0
    %1537 = vmatpush.xpose.msra.mxu0 0.0
    %1538 = vmatpush.xpose.msra.mxu0 %v1521
    %1539 = vmatmul.f32.gmra.mxu0 %v1519
    %v1540 = vpop.f32.mrf.mxu0
    %v1541 = vadd.f32 0.0, %v1540
    %1542 = vdwg.mxu0
    %1543 = vrot.lane.b32.xlu0 %v1343, 96
    %v1544 = vpop.permute.xlu0 %1543
    %1545 = vrot.lane.b32.xlu0 %v1366, 96
    %v1546 = vpop.permute.xlu0 %1545
    %v1547 = vsel %vm169, %v1544, 0
    %v1549 = vsel %vm169, %v1546, 0
    %1551 = vmatpush.xpose.msra.mxu0 0.0
    %1552 = vmatpush.xpose.msra.mxu0 0.0
    %1553 = vmatpush.xpose.msra.mxu0 0.0
    %1554 = vmatpush.xpose.msra.mxu0 0.0
    %1555 = vmatpush.xpose.msra.mxu0 0.0
    %1556 = vmatpush.xpose.msra.mxu0 0.0
    %1557 = vmatpush.xpose.msra.mxu0 0.0
    %1558 = vmatpush.xpose.msra.mxu0 0.0
    %1559 = vmatpush.xpose.msra.mxu0 0.0
    %1560 = vmatpush.xpose.msra.mxu0 0.0
    %1561 = vmatpush.xpose.msra.mxu0 0.0
    %1562 = vmatpush.xpose.msra.mxu0 0.0
    %1563 = vmatpush.xpose.msra.mxu0 0.0
    %1564 = vmatpush.xpose.msra.mxu0 0.0
    %1565 = vmatpush.xpose.msra.mxu0 0.0
    %1566 = vmatpush.xpose.msra.mxu0 %v1549
    %1567 = vmatmul.f32.gmra.mxu0 %v1547
    %v1568 = vpop.f32.mrf.mxu0
    %v1569 = vadd.f32 0.0, %v1568
    %1570 = vdwg.mxu0
    %v1571 = vmul.f32 %v1541, 0.17677669
    %v1572 = vmul.f32 %v1569, 0.17677669
    %v1573 = vadd.f32 %v1571, %v272
    %v1574 = vadd.f32 %v1572, %v273
    %v1575 = vsel %vm544, %v1573, -inf
    %1576 = vmax.xlane.f32.xlu0 %v1575
    %v1577 = vpop.xlane.xlu0 %1576
    %v1578 = vsel %vm544, %v1574, -inf
    %1579 = vmax.xlane.f32.xlu0 %v1578
    %v1580 = vpop.xlane.xlu0 %1579
    %v1581 = vsub.f32 %v1573, %v1577
    %v1582 = vsub.f32 %v1574, %v1580
    %v1583 = vmul.f32 %v1581, 1.442695
    %v1584 = vpow.pop %v1583
    %v1585 = vmul.f32 %v1582, 1.442695
    %v1586 = vpow.pop %v1585
    %v1587 = vsel %vm544, %v1584, 0.0
    %1588 = vadd.xlane.f32.xlu0 %v1587
    %v1589 = vpop.xlane.xlu0 %1588
    %v1590 = vsel %vm544, %v1586, 0.0
    %1591 = vadd.xlane.f32.xlu0 %v1590
    %v1592 = vpop.xlane.xlu0 %1591
    %v1593 = vrcp.pop %v1589
    %v1594 = vrcp.pop %v1592
    %v1595 = vmul.f32 %v1584, %v1593
    %v1596 = vmul.f32 %v1586, %v1594
    %1598 = vrot.lane.b32.xlu0 %v1386, 96
    %v1599 = vpop.permute.xlu0 %1598
    %v1602 = vsel %vm544, %v1595, 0
    %1604 = vmatpush.msra.mxu0 0.0
    %1605 = vmatpush.msra.mxu0 0.0
    %1606 = vmatpush.msra.mxu0 0.0
    %1607 = vmatpush.msra.mxu0 0.0
    %1608 = vmatpush.msra.mxu0 0.0
    %1609 = vmatpush.msra.mxu0 0.0
    %1610 = vmatpush.msra.mxu0 0.0
    %1611 = vmatpush.msra.mxu0 0.0
    %1612 = vmatpush.msra.mxu0 0.0
    %1613 = vmatpush.msra.mxu0 0.0
    %1614 = vmatpush.msra.mxu0 0.0
    %1615 = vmatpush.msra.mxu0 0.0
    %1616 = vmatpush.msra.mxu0 0.0
    %1617 = vmatpush.msra.mxu0 0.0
    %1618 = vmatpush.msra.mxu0 0.0
    %1619 = vmatpush.msra.mxu0 %v1599
    %1620 = vmatmul.f32.gmra.mxu0 %v1602
    %v1621 = vpop.f32.mrf.mxu0
    %v1622 = vadd.f32 0.0, %v1621
    %1623 = vdwg.mxu0
    %1625 = vrot.lane.b32.xlu0 %v1389, 96
    %v1626 = vpop.permute.xlu0 %1625
    %v1629 = vsel %vm544, %v1596, 0
    %1631 = vmatpush.msra.mxu0 0.0
    %1632 = vmatpush.msra.mxu0 0.0
    %1633 = vmatpush.msra.mxu0 0.0
    %1634 = vmatpush.msra.mxu0 0.0
    %1635 = vmatpush.msra.mxu0 0.0
    %1636 = vmatpush.msra.mxu0 0.0
    %1637 = vmatpush.msra.mxu0 0.0
    %1638 = vmatpush.msra.mxu0 0.0
    %1639 = vmatpush.msra.mxu0 0.0
    %1640 = vmatpush.msra.mxu0 0.0
    %1641 = vmatpush.msra.mxu0 0.0
    %1642 = vmatpush.msra.mxu0 0.0
    %1643 = vmatpush.msra.mxu0 0.0
    %1644 = vmatpush.msra.mxu0 0.0
    %1645 = vmatpush.msra.mxu0 0.0
    %1646 = vmatpush.msra.mxu0 %v1626
    %1647 = vmatmul.f32.gmra.mxu0 %v1629
    %v1648 = vpop.f32.mrf.mxu0
    %v1649 = vadd.f32 0.0, %v1648
    %1650 = vdwg.mxu0
    %1651 = vrot.lane.b32.xlu0 %v1340, 64
    %v1652 = vpop.permute.xlu0 %1651
    %1653 = vrot.lane.b32.xlu0 %v1363, 64
    %v1654 = vpop.permute.xlu0 %1653
    %v1655 = vsel %vm169, %v1652, 0
    %v1657 = vsel %vm169, %v1654, 0
    %1659 = vmatpush.xpose.msra.mxu0 0.0
    %1660 = vmatpush.xpose.msra.mxu0 0.0
    %1661 = vmatpush.xpose.msra.mxu0 0.0
    %1662 = vmatpush.xpose.msra.mxu0 0.0
    %1663 = vmatpush.xpose.msra.mxu0 0.0
    %1664 = vmatpush.xpose.msra.mxu0 0.0
    %1665 = vmatpush.xpose.msra.mxu0 0.0
    %1666 = vmatpush.xpose.msra.mxu0 0.0
    %1667 = vmatpush.xpose.msra.mxu0 0.0
    %1668 = vmatpush.xpose.msra.mxu0 0.0
    %1669 = vmatpush.xpose.msra.mxu0 0.0
    %1670 = vmatpush.xpose.msra.mxu0 0.0
    %1671 = vmatpush.xpose.msra.mxu0 0.0
    %1672 = vmatpush.xpose.msra.mxu0 0.0
    %1673 = vmatpush.xpose.msra.mxu0 0.0
    %1674 = vmatpush.xpose.msra.mxu0 %v1657
    %1675 = vmatmul.f32.gmra.mxu0 %v1655
    %v1676 = vpop.f32.mrf.mxu0
    %v1677 = vadd.f32 0.0, %v1676
    %1678 = vdwg.mxu0
    %1679 = vrot.lane.b32.xlu0 %v1343, 64
    %v1680 = vpop.permute.xlu0 %1679
    %1681 = vrot.lane.b32.xlu0 %v1366, 64
    %v1682 = vpop.permute.xlu0 %1681
    %v1683 = vsel %vm169, %v1680, 0
    %v1685 = vsel %vm169, %v1682, 0
    %1687 = vmatpush.xpose.msra.mxu0 0.0
    %1688 = vmatpush.xpose.msra.mxu0 0.0
    %1689 = vmatpush.xpose.msra.mxu0 0.0
    %1690 = vmatpush.xpose.msra.mxu0 0.0
    %1691 = vmatpush.xpose.msra.mxu0 0.0
    %1692 = vmatpush.xpose.msra.mxu0 0.0
    %1693 = vmatpush.xpose.msra.mxu0 0.0
    %1694 = vmatpush.xpose.msra.mxu0 0.0
    %1695 = vmatpush.xpose.msra.mxu0 0.0
    %1696 = vmatpush.xpose.msra.mxu0 0.0
    %1697 = vmatpush.xpose.msra.mxu0 0.0
    %1698 = vmatpush.xpose.msra.mxu0 0.0
    %1699 = vmatpush.xpose.msra.mxu0 0.0
    %1700 = vmatpush.xpose.msra.mxu0 0.0
    %1701 = vmatpush.xpose.msra.mxu0 0.0
    %1702 = vmatpush.xpose.msra.mxu0 %v1685
    %1703 = vmatmul.f32.gmra.mxu0 %v1683
    %v1704 = vpop.f32.mrf.mxu0
    %v1705 = vadd.f32 0.0, %v1704
    %1706 = vdwg.mxu0
    %v1707 = vmul.f32 %v1677, 0.17677669
    %v1708 = vmul.f32 %v1705, 0.17677669
    %v1709 = vadd.f32 %v1707, %v272
    %v1710 = vadd.f32 %v1708, %v273
    %v1711 = vsel %vm544, %v1709, -inf
    %1712 = vmax.xlane.f32.xlu0 %v1711
    %v1713 = vpop.xlane.xlu0 %1712
    %v1714 = vsel %vm544, %v1710, -inf
    %1715 = vmax.xlane.f32.xlu0 %v1714
    %v1716 = vpop.xlane.xlu0 %1715
    %v1717 = vsub.f32 %v1709, %v1713
    %v1718 = vsub.f32 %v1710, %v1716
    %v1719 = vmul.f32 %v1717, 1.442695
    %v1720 = vpow.pop %v1719
    %v1721 = vmul.f32 %v1718, 1.442695
    %v1722 = vpow.pop %v1721
    %v1723 = vsel %vm544, %v1720, 0.0
    %1724 = vadd.xlane.f32.xlu0 %v1723
    %v1725 = vpop.xlane.xlu0 %1724
    %v1726 = vsel %vm544, %v1722, 0.0
    %1727 = vadd.xlane.f32.xlu0 %v1726
    %v1728 = vpop.xlane.xlu0 %1727
    %v1729 = vrcp.pop %v1725
    %v1730 = vrcp.pop %v1728
    %v1731 = vmul.f32 %v1720, %v1729
    %v1732 = vmul.f32 %v1722, %v1730
    %1733 = vrot.lane.b32.xlu0 %v1386, 64
    %v1734 = vpop.permute.xlu0 %1733
    %v1737 = vsel %vm544, %v1731, 0
    %1739 = vmatpush.msra.mxu0 0.0
    %1740 = vmatpush.msra.mxu0 0.0
    %1741 = vmatpush.msra.mxu0 0.0
    %1742 = vmatpush.msra.mxu0 0.0
    %1743 = vmatpush.msra.mxu0 0.0
    %1744 = vmatpush.msra.mxu0 0.0
    %1745 = vmatpush.msra.mxu0 0.0
    %1746 = vmatpush.msra.mxu0 0.0
    %1747 = vmatpush.msra.mxu0 0.0
    %1748 = vmatpush.msra.mxu0 0.0
    %1749 = vmatpush.msra.mxu0 0.0
    %1750 = vmatpush.msra.mxu0 0.0
    %1751 = vmatpush.msra.mxu0 0.0
    %1752 = vmatpush.msra.mxu0 0.0
    %1753 = vmatpush.msra.mxu0 0.0
    %1754 = vmatpush.msra.mxu0 %v1734
    %1755 = vmatmul.f32.gmra.mxu0 %v1737
    %v1756 = vpop.f32.mrf.mxu0
    %v1757 = vadd.f32 0.0, %v1756
    %1758 = vdwg.mxu0
    %1759 = vrot.lane.b32.xlu0 %v1389, 64
    %v1760 = vpop.permute.xlu0 %1759
    %v1763 = vsel %vm544, %v1732, 0
    %1765 = vmatpush.msra.mxu0 0.0
    %1766 = vmatpush.msra.mxu0 0.0
    %1767 = vmatpush.msra.mxu0 0.0
    %1768 = vmatpush.msra.mxu0 0.0
    %1769 = vmatpush.msra.mxu0 0.0
    %1770 = vmatpush.msra.mxu0 0.0
    %1771 = vmatpush.msra.mxu0 0.0
    %1772 = vmatpush.msra.mxu0 0.0
    %1773 = vmatpush.msra.mxu0 0.0
    %1774 = vmatpush.msra.mxu0 0.0
    %1775 = vmatpush.msra.mxu0 0.0
    %1776 = vmatpush.msra.mxu0 0.0
    %1777 = vmatpush.msra.mxu0 0.0
    %1778 = vmatpush.msra.mxu0 0.0
    %1779 = vmatpush.msra.mxu0 0.0
    %1780 = vmatpush.msra.mxu0 %v1760
    %1781 = vmatmul.f32.gmra.mxu0 %v1763
    %v1782 = vpop.f32.mrf.mxu0
    %v1783 = vadd.f32 0.0, %v1782
    %1784 = vdwg.mxu0
    %1785 = vrot.lane.b32.xlu0 %v1340, 32
    %v1786 = vpop.permute.xlu0 %1785
    %1787 = vrot.lane.b32.xlu0 %v1363, 32
    %v1788 = vpop.permute.xlu0 %1787
    %v1789 = vsel %vm169, %v1786, 0
    %v1791 = vsel %vm169, %v1788, 0
    %1793 = vmatpush.xpose.msra.mxu0 0.0
    %1794 = vmatpush.xpose.msra.mxu0 0.0
    %1795 = vmatpush.xpose.msra.mxu0 0.0
    %1796 = vmatpush.xpose.msra.mxu0 0.0
    %1797 = vmatpush.xpose.msra.mxu0 0.0
    %1798 = vmatpush.xpose.msra.mxu0 0.0
    %1799 = vmatpush.xpose.msra.mxu0 0.0
    %1800 = vmatpush.xpose.msra.mxu0 0.0
    %1801 = vmatpush.xpose.msra.mxu0 0.0
    %1802 = vmatpush.xpose.msra.mxu0 0.0
    %1803 = vmatpush.xpose.msra.mxu0 0.0
    %1804 = vmatpush.xpose.msra.mxu0 0.0
    %1805 = vmatpush.xpose.msra.mxu0 0.0
    %1806 = vmatpush.xpose.msra.mxu0 0.0
    %1807 = vmatpush.xpose.msra.mxu0 0.0
    %1808 = vmatpush.xpose.msra.mxu0 %v1791
    %1809 = vmatmul.f32.gmra.mxu0 %v1789
    %v1810 = vpop.f32.mrf.mxu0
    %v1811 = vadd.f32 0.0, %v1810
    %1812 = vdwg.mxu0
    %1813 = vrot.lane.b32.xlu0 %v1343, 32
    %v1814 = vpop.permute.xlu0 %1813
    %1815 = vrot.lane.b32.xlu0 %v1366, 32
    %v1816 = vpop.permute.xlu0 %1815
    %v1817 = vsel %vm169, %v1814, 0
    %v1819 = vsel %vm169, %v1816, 0
    %1821 = vmatpush.xpose.msra.mxu0 0.0
    %1822 = vmatpush.xpose.msra.mxu0 0.0
    %1823 = vmatpush.xpose.msra.mxu0 0.0
    %1824 = vmatpush.xpose.msra.mxu0 0.0
    %1825 = vmatpush.xpose.msra.mxu0 0.0
    %1826 = vmatpush.xpose.msra.mxu0 0.0
    %1827 = vmatpush.xpose.msra.mxu0 0.0
    %1828 = vmatpush.xpose.msra.mxu0 0.0
    %1829 = vmatpush.xpose.msra.mxu0 0.0
    %1830 = vmatpush.xpose.msra.mxu0 0.0
    %1831 = vmatpush.xpose.msra.mxu0 0.0
    %1832 = vmatpush.xpose.msra.mxu0 0.0
    %1833 = vmatpush.xpose.msra.mxu0 0.0
    %1834 = vmatpush.xpose.msra.mxu0 0.0
    %1835 = vmatpush.xpose.msra.mxu0 0.0
    %1836 = vmatpush.xpose.msra.mxu0 %v1819
    %1837 = vmatmul.f32.gmra.mxu0 %v1817
    %v1838 = vpop.f32.mrf.mxu0
    %v1839 = vadd.f32 0.0, %v1838
    %1840 = vdwg.mxu0
    %v1841 = vmul.f32 %v1811, 0.17677669
    %v1842 = vmul.f32 %v1839, 0.17677669
    %v1843 = vadd.f32 %v1841, %v272
    %v1844 = vadd.f32 %v1842, %v273
    %v1845 = vsel %vm544, %v1843, -inf
    %1846 = vmax.xlane.f32.xlu0 %v1845
    %v1847 = vpop.xlane.xlu0 %1846
    %v1848 = vsel %vm544, %v1844, -inf
    %1849 = vmax.xlane.f32.xlu0 %v1848
    %v1850 = vpop.xlane.xlu0 %1849
    %v1851 = vsub.f32 %v1843, %v1847
    %v1852 = vsub.f32 %v1844, %v1850
    %v1853 = vmul.f32 %v1851, 1.442695
    %v1854 = vpow.pop %v1853
    %v1855 = vmul.f32 %v1852, 1.442695
    %v1856 = vpow.pop %v1855
    %v1857 = vsel %vm544, %v1854, 0.0
    %1858 = vadd.xlane.f32.xlu0 %v1857
    %v1859 = vpop.xlane.xlu0 %1858
    %v1860 = vsel %vm544, %v1856, 0.0
    %1861 = vadd.xlane.f32.xlu0 %v1860
    %v1862 = vpop.xlane.xlu0 %1861
    %v1863 = vrcp.pop %v1859
    %v1864 = vrcp.pop %v1862
    %v1865 = vmul.f32 %v1854, %v1863
    %v1866 = vmul.f32 %v1856, %v1864
    %1867 = vrot.lane.b32.xlu0 %v1386, 32
    %v1868 = vpop.permute.xlu0 %1867
    %v1871 = vsel %vm544, %v1865, 0
    %1873 = vmatpush.msra.mxu0 0.0
    %1874 = vmatpush.msra.mxu0 0.0
    %1875 = vmatpush.msra.mxu0 0.0
    %1876 = vmatpush.msra.mxu0 0.0
    %1877 = vmatpush.msra.mxu0 0.0
    %1878 = vmatpush.msra.mxu0 0.0
    %1879 = vmatpush.msra.mxu0 0.0
    %1880 = vmatpush.msra.mxu0 0.0
    %1881 = vmatpush.msra.mxu0 0.0
    %1882 = vmatpush.msra.mxu0 0.0
    %1883 = vmatpush.msra.mxu0 0.0
    %1884 = vmatpush.msra.mxu0 0.0
    %1885 = vmatpush.msra.mxu0 0.0
    %1886 = vmatpush.msra.mxu0 0.0
    %1887 = vmatpush.msra.mxu0 0.0
    %1888 = vmatpush.msra.mxu0 %v1868
    %1889 = vmatmul.f32.gmra.mxu0 %v1871
    %v1890 = vpop.f32.mrf.mxu0
    %v1891 = vadd.f32 0.0, %v1890
    %1892 = vdwg.mxu0
    %1893 = vrot.lane.b32.xlu0 %v1389, 32
    %v1894 = vpop.permute.xlu0 %1893
    %v1897 = vsel %vm544, %v1866, 0
    %1899 = vmatpush.msra.mxu0 0.0
    %1900 = vmatpush.msra.mxu0 0.0
    %1901 = vmatpush.msra.mxu0 0.0
    %1902 = vmatpush.msra.mxu0 0.0
    %1903 = vmatpush.msra.mxu0 0.0
    %1904 = vmatpush.msra.mxu0 0.0
    %1905 = vmatpush.msra.mxu0 0.0
    %1906 = vmatpush.msra.mxu0 0.0
    %1907 = vmatpush.msra.mxu0 0.0
    %1908 = vmatpush.msra.mxu0 0.0
    %1909 = vmatpush.msra.mxu0 0.0
    %1910 = vmatpush.msra.mxu0 0.0
    %1911 = vmatpush.msra.mxu0 0.0
    %1912 = vmatpush.msra.mxu0 0.0
    %1913 = vmatpush.msra.mxu0 0.0
    %1914 = vmatpush.msra.mxu0 %v1894
    %1915 = vmatmul.f32.gmra.mxu0 %v1897
    %v1916 = vpop.f32.mrf.mxu0
    %v1917 = vadd.f32 0.0, %v1916
    %1918 = vdwg.mxu0
    %1921 = vrot.lane.b32.xlu0 %v1622, 32
    %v1922 = vpop.permute.xlu0 %1921
    %1923 = vrot.lane.b32.xlu0 %v1649, 32
    %v1924 = vpop.permute.xlu0 %1923
    %1929 = vrot.lane.b32.xlu0 %v1757, 64
    %v1930 = vpop.permute.xlu0 %1929
    %1931 = vrot.lane.b32.xlu0 %v1783, 64
    %v1932 = vpop.permute.xlu0 %1931
    %1937 = vrot.lane.b32.xlu0 %v1891, 96
    %v1938 = vpop.permute.xlu0 %1937
    %1939 = vrot.lane.b32.xlu0 %v1917, 96
    %v1940 = vpop.permute.xlu0 %1939
    %v1943 = vsel %vm169, %v1490, %v1922
    %v1944 = vsel %vm169, %v1513, %v1924
    %v1945 = vsel %vm1043, %v1943, %v1930
    %v1946 = vsel %vm1043, %v1944, %v1932
    %v1947 = vsel %vm1046, %v1945, %v1938
    %v1948 = vsel %vm1046, %v1946, %v1940
    %1949 = vmatpush.msra.mxu0 %v340
    %1950 = vmatpush.msra.mxu0 %v339
    %1951 = vmatpush.msra.mxu0 %v338
    %1952 = vmatpush.msra.mxu0 %v337
    %1953 = vmatpush.msra.mxu0 %v336
    %1954 = vmatpush.msra.mxu0 %v335
    %1955 = vmatpush.msra.mxu0 %v334
    %1956 = vmatpush.msra.mxu0 %v333
    %1957 = vmatpush.msra.mxu0 %v332
    %1958 = vmatpush.msra.mxu0 %v331
    %1959 = vmatpush.msra.mxu0 %v330
    %1960 = vmatpush.msra.mxu0 %v329
    %1961 = vmatpush.msra.mxu0 %v328
    %1962 = vmatpush.msra.mxu0 %v327
    %1963 = vmatpush.msra.mxu0 %v326
    %1964 = vmatpush.msra.mxu0 %v325
    %1965 = vmatmul.f32.gmra.mxu0 %v1947
    %v1966 = vpop.f32.mrf.mxu0
    %v1967 = vadd.f32 %v1050, %v1966
    %1968 = vmatmul.f32.gmra.mxu0 %v1948
    %v1969 = vpop.f32.mrf.mxu0
    %v1970 = vadd.f32 %v1050, %v1969
    %1971 = vdwg.mxu0
    %v1972 = vadd.f32 %v1320, %v1967
    %v1973 = vadd.f32 %v1321, %v1970
    %1974 = vadd.xlane.f32.xlu0 %v1972
    %v1975 = vpop.xlane.xlu0 %1974
    %1976 = vadd.xlane.f32.xlu0 %v1973
    %v1977 = vpop.xlane.xlu0 %1976
    %v1978 = vmul.f32 %v1975, %v1087
    %v1979 = vmul.f32 %v1977, %v1087
    %v1980 = vsub.f32 %v1972, %v1978
    %v1981 = vsub.f32 %v1973, %v1979
    %v1982 = vmul.f32 %v1980, %v1980
    %v1983 = vmul.f32 %v1981, %v1981
    %1984 = vadd.xlane.f32.xlu0 %v1982
    %v1985 = vpop.xlane.xlu0 %1984
    %1986 = vadd.xlane.f32.xlu0 %v1983
    %v1987 = vpop.xlane.xlu0 %1986
    %v1988 = vmul.f32 %v1985, %v1087
    %v1989 = vmul.f32 %v1987, %v1087
    %v1990 = vadd.f32 %v1988, 1e-12
    %v1991 = vadd.f32 %v1989, 1e-12
    %v1992 = vrsqrt.pop %v1990
    %v1993 = vmul.f32 %v1992, %v1990
    %v1994 = vmul.f32 %v1993, %v1992
    %v1995 = vmul.f32 0.5, %v1994
    %v1996 = vsub.f32 1.5, %v1995
    %v1997 = vmul.f32 %v1992, %v1996
    %vm1998 = vweird.f32 %v1990
    %vm1999 = vweird.f32 %v1992
    %vm2000 = vmor %vm1998, %vm1999
    %v2001 = vsel %vm2000, %v1992, %v1997
    %v2002 = vrsqrt.pop %v1991
    %v2003 = vmul.f32 %v2002, %v1991
    %v2004 = vmul.f32 %v2003, %v2002
    %v2005 = vmul.f32 0.5, %v2004
    %v2006 = vsub.f32 1.5, %v2005
    %v2007 = vmul.f32 %v2002, %v2006
    %vm2008 = vweird.f32 %v1991
    %vm2009 = vweird.f32 %v2002
    %vm2010 = vmor %vm2008, %vm2009
    %v2011 = vsel %vm2010, %v2002, %v2007
    %v2012 = vmul.f32 %v1980, %v2001
    %v2013 = vmul.f32 %v1981, %v2011
    %v2014 = vmul.f32 %v2012, %v1125
    %v2015 = vmul.f32 %v2013, %v1125
    %v2016 = vadd.f32 %v2014, %v1130
    %v2017 = vadd.f32 %v2015, %v1130
    %2018 = vmatpush.msra.mxu0 %v374
    %2019 = vmatpush.msra.mxu0 %v372
    %2020 = vmatpush.msra.mxu0 %v370
    %2021 = vmatpush.msra.mxu0 %v368
    %2022 = vmatpush.msra.mxu0 %v366
    %2023 = vmatpush.msra.mxu0 %v364
    %2024 = vmatpush.msra.mxu0 %v362
    %2025 = vmatpush.msra.mxu0 %v360
    %2026 = vmatpush.msra.mxu0 %v358
    %2027 = vmatpush.msra.mxu0 %v356
    %2028 = vmatpush.msra.mxu0 %v354
    %2029 = vmatpush.msra.mxu0 %v352
    %2030 = vmatpush.msra.mxu0 %v350
    %2031 = vmatpush.msra.mxu0 %v348
    %2032 = vmatpush.msra.mxu0 %v346
    %2033 = vmatpush.msra.mxu0 %v344
    %2034 = vmatmul.f32.gmra.mxu0 %v2016
    %v2035 = vpop.f32.mrf.mxu0
    %v2036 = vadd.f32 %v1135, %v2035
    %2037 = vmatmul.f32.gmra.mxu0 %v2017
    %v2038 = vpop.f32.mrf.mxu0
    %v2039 = vadd.f32 %v1135, %v2038
    %2040 = vdwg.mxu0
    %2041 = vmatpush.msra.mxu0 %v375
    %2042 = vmatpush.msra.mxu0 %v373
    %2043 = vmatpush.msra.mxu0 %v371
    %2044 = vmatpush.msra.mxu0 %v369
    %2045 = vmatpush.msra.mxu0 %v367
    %2046 = vmatpush.msra.mxu0 %v365
    %2047 = vmatpush.msra.mxu0 %v363
    %2048 = vmatpush.msra.mxu0 %v361
    %2049 = vmatpush.msra.mxu0 %v359
    %2050 = vmatpush.msra.mxu0 %v357
    %2051 = vmatpush.msra.mxu0 %v355
    %2052 = vmatpush.msra.mxu0 %v353
    %2053 = vmatpush.msra.mxu0 %v351
    %2054 = vmatpush.msra.mxu0 %v349
    %2055 = vmatpush.msra.mxu0 %v347
    %2056 = vmatpush.msra.mxu0 %v345
    %2057 = vmatmul.f32.gmra.mxu0 %v2016
    %v2058 = vpop.f32.mrf.mxu0
    %v2059 = vadd.f32 %v1136, %v2058
    %2060 = vmatmul.f32.gmra.mxu0 %v2017
    %v2061 = vpop.f32.mrf.mxu0
    %v2062 = vadd.f32 %v1136, %v2061
    %2063 = vdwg.mxu0
    %v2064 = vmul.f32 %v2036, %v2036
    %v2065 = vmul.f32 %v2059, %v2059
    %v2066 = vmul.f32 %v2039, %v2039
    %v2067 = vmul.f32 %v2062, %v2062
    %v2068 = vmul.f32 %v2036, %v2064
    %v2069 = vmul.f32 %v2059, %v2065
    %v2070 = vmul.f32 %v2039, %v2066
    %v2071 = vmul.f32 %v2062, %v2067
    %v2072 = vmul.f32 %v2068, 0.044715
    %v2073 = vmul.f32 %v2069, 0.044715
    %v2074 = vmul.f32 %v2070, 0.044715
    %v2075 = vmul.f32 %v2071, 0.044715
    %v2076 = vadd.f32 %v2036, %v2072
    %v2077 = vadd.f32 %v2059, %v2073
    %v2078 = vadd.f32 %v2039, %v2074
    %v2079 = vadd.f32 %v2062, %v2075
    %v2080 = vmul.f32 %v2076, 0.7978846
    %v2081 = vmul.f32 %v2077, 0.7978846
    %v2082 = vmul.f32 %v2078, 0.7978846
    %v2083 = vmul.f32 %v2079, 0.7978846
    %v2084 = vtanh.pop %v2080
    %v2085 = vtanh.pop %v2081
    %v2086 = vtanh.pop %v2082
    %v2087 = vtanh.pop %v2083
    %v2088 = vadd.f32 %v2084, 1.0
    %v2089 = vadd.f32 %v2085, 1.0
    %v2090 = vadd.f32 %v2086, 1.0
    %v2091 = vadd.f32 %v2087, 1.0
    %v2092 = vmul.f32 %v2088, 0.5
    %v2093 = vmul.f32 %v2089, 0.5
    %v2094 = vmul.f32 %v2090, 0.5
    %v2095 = vmul.f32 %v2091, 0.5
    %v2096 = vmul.f32 %v2036, %v2092
    %v2097 = vmul.f32 %v2059, %v2093
    %v2098 = vmul.f32 %v2039, %v2094
    %v2099 = vmul.f32 %v2062, %v2095
    %2100 = vmatpush.msra.mxu0 %v392
    %2101 = vmatpush.msra.mxu0 %v391
    %2102 = vmatpush.msra.mxu0 %v390
    %2103 = vmatpush.msra.mxu0 %v389
    %2104 = vmatpush.msra.mxu0 %v388
    %2105 = vmatpush.msra.mxu0 %v387
    %2106 = vmatpush.msra.mxu0 %v386
    %2107 = vmatpush.msra.mxu0 %v385
    %2108 = vmatpush.msra.mxu0 %v384
    %2109 = vmatpush.msra.mxu0 %v383
    %2110 = vmatpush.msra.mxu0 %v382
    %2111 = vmatpush.msra.mxu0 %v381
    %2112 = vmatpush.msra.mxu0 %v380
    %2113 = vmatpush.msra.mxu0 %v379
    %2114 = vmatpush.msra.mxu0 %v378
    %2115 = vmatpush.msra.mxu0 %v377
    %2116 = vmatmul.f32.gmra.mxu0 %v2096
    %v2117 = vpop.f32.mrf.mxu0
    %v2118 = vadd.f32 %v1222, %v2117
    %2119 = vmatmul.f32.gmra.mxu0 %v2098
    %v2120 = vpop.f32.mrf.mxu0
    %v2121 = vadd.f32 %v1222, %v2120
    %2122 = vdwg.mxu0
    %2123 = vmatpush.msra.mxu0 %v408
    %2124 = vmatpush.msra.mxu0 %v407
    %2125 = vmatpush.msra.mxu0 %v406
    %2126 = vmatpush.msra.mxu0 %v405
    %2127 = vmatpush.msra.mxu0 %v404
    %2128 = vmatpush.msra.mxu0 %v403
    %2129 = vmatpush.msra.mxu0 %v402
    %2130 = vmatpush.msra.mxu0 %v401
    %2131 = vmatpush.msra.mxu0 %v400
    %2132 = vmatpush.msra.mxu0 %v399
    %2133 = vmatpush.msra.mxu0 %v398
    %2134 = vmatpush.msra.mxu0 %v397
    %2135 = vmatpush.msra.mxu0 %v396
    %2136 = vmatpush.msra.mxu0 %v395
    %2137 = vmatpush.msra.mxu0 %v394
    %2138 = vmatpush.msra.mxu0 %v393
    %2139 = vmatmul.f32.gmra.mxu0 %v2097
    %v2140 = vpop.f32.mrf.mxu0
    %v2141 = vadd.f32 %v2118, %v2140
    %2142 = vmatmul.f32.gmra.mxu0 %v2099
    %v2143 = vpop.f32.mrf.mxu0
    %v2144 = vadd.f32 %v2121, %v2143
    %2145 = vdwg.mxu0
    %v2146 = vadd.f32 %v2016, %v2141
    %v2147 = vadd.f32 %v2017, %v2144
    %2148 = vadd.xlane.f32.xlu0 %v2146
    %v2149 = vpop.xlane.xlu0 %2148
    %2150 = vadd.xlane.f32.xlu0 %v2147
    %v2151 = vpop.xlane.xlu0 %2150
    %v2152 = vmul.f32 %v2149, %v1087
    %v2153 = vmul.f32 %v2151, %v1087
    %v2154 = vsub.f32 %v2146, %v2152
    %v2155 = vsub.f32 %v2147, %v2153
    %v2156 = vmul.f32 %v2154, %v2154
    %v2157 = vmul.f32 %v2155, %v2155
    %2158 = vadd.xlane.f32.xlu0 %v2156
    %v2159 = vpop.xlane.xlu0 %2158
    %2160 = vadd.xlane.f32.xlu0 %v2157
    %v2161 = vpop.xlane.xlu0 %2160
    %v2162 = vmul.f32 %v2159, %v1087
    %v2163 = vmul.f32 %v2161, %v1087
    %v2164 = vadd.f32 %v2162, 1e-12
    %v2165 = vadd.f32 %v2163, 1e-12
    %v2166 = vrsqrt.pop %v2164
    %v2167 = vmul.f32 %v2166, %v2164
    %v2168 = vmul.f32 %v2167, %v2166
    %v2169 = vmul.f32 0.5, %v2168
    %v2170 = vsub.f32 1.5, %v2169
    %v2171 = vmul.f32 %v2166, %v2170
    %vm2172 = vweird.f32 %v2164
    %vm2173 = vweird.f32 %v2166
    %vm2174 = vmor %vm2172, %vm2173
    %v2175 = vsel %vm2174, %v2166, %v2171
    %v2176 = vrsqrt.pop %v2165
    %v2177 = vmul.f32 %v2176, %v2165
    %v2178 = vmul.f32 %v2177, %v2176
    %v2179 = vmul.f32 0.5, %v2178
    %v2180 = vsub.f32 1.5, %v2179
    %v2181 = vmul.f32 %v2176, %v2180
    %vm2182 = vweird.f32 %v2165
    %vm2183 = vweird.f32 %v2176
    %vm2184 = vmor %vm2182, %vm2183
    %v2185 = vsel %vm2184, %v2176, %v2181
    %v2186 = vmul.f32 %v2154, %v2175
    %v2187 = vmul.f32 %v2155, %v2185
    %v2188 = vmul.f32 %v2186, %v1313
    %v2189 = vmul.f32 %v2187, %v1313
    %v2190 = vadd.f32 %v2188, %v1318
    %v2191 = vadd.f32 %v2189, %v1318
    %v2192 = vld [vmem:[%s22] sm:$0xff]
    %v2193 = vld [vmem:[%s22 + $0x8] sm:$0xff]
    %v2194 = vld [vmem:[%s22 + $0x10] sm:$0xff]
    %v2195 = vld [vmem:[%s22 + $0x18] sm:$0xff]
    %v2196 = vld [vmem:[%s22 + $0x20] sm:$0xff]
    %v2197 = vld [vmem:[%s22 + $0x28] sm:$0xff]
    %v2198 = vld [vmem:[%s22 + $0x30] sm:$0xff]
    %v2199 = vld [vmem:[%s22 + $0x38] sm:$0xff]
    %v2200 = vld [vmem:[%s22 + $0x40] sm:$0xff]
    %v2201 = vld [vmem:[%s22 + $0x48] sm:$0xff]
    %v2202 = vld [vmem:[%s22 + $0x50] sm:$0xff]
    %v2203 = vld [vmem:[%s22 + $0x58] sm:$0xff]
    %v2204 = vld [vmem:[%s22 + $0x60] sm:$0xff]
    %v2205 = vld [vmem:[%s22 + $0x68] sm:$0xff]
    %v2206 = vld [vmem:[%s22 + $0x70] sm:$0xff]
    %v2207 = vld [vmem:[%s22 + $0x78] sm:$0xff]
    %v2208 = vld [vmem:[%s23] sm:$0x1]
    %v2210 = vperm.slane %v2208, 0
    %v2214 = vrot.slane %v2191, 7
    %vm2215 = vcmask 1041409
    %v2216 = vsel %vm2215, %v2214, %v2190
    %2218 = vmatpush.msra.mxu0 %v2207
    %2219 = vmatpush.msra.mxu0 %v2206
    %2220 = vmatpush.msra.mxu0 %v2205
    %2221 = vmatpush.msra.mxu0 %v2204
    %2222 = vmatpush.msra.mxu0 %v2203
    %2223 = vmatpush.msra.mxu0 %v2202
    %2224 = vmatpush.msra.mxu0 %v2201
    %2225 = vmatpush.msra.mxu0 %v2200
    %2226 = vmatpush.msra.mxu0 %v2199
    %2227 = vmatpush.msra.mxu0 %v2198
    %2228 = vmatpush.msra.mxu0 %v2197
    %2229 = vmatpush.msra.mxu0 %v2196
    %2230 = vmatpush.msra.mxu0 %v2195
    %2231 = vmatpush.msra.mxu0 %v2194
    %2232 = vmatpush.msra.mxu0 %v2193
    %2233 = vmatpush.msra.mxu0 %v2192
    %2234 = vmatmul.f32.gmra.mxu0 %v2216
    %v2235 = vpop.f32.mrf.mxu0
    %v2236 = vadd.f32 %v2210, %v2235
    %2237 = vdwg.mxu0
    %v2238 = vtanh.pop %v2236
    %v2239 = vld [vmem:[%s24] sm:$0xff]
    %v2240 = vld [vmem:[%s24 + $0x8] sm:$0xff]
    %v2241 = vld [vmem:[%s24 + $0x10] sm:$0xff]
    %v2242 = vld [vmem:[%s24 + $0x18] sm:$0xff]
    %v2243 = vld [vmem:[%s24 + $0x20] sm:$0xff]
    %v2244 = vld [vmem:[%s24 + $0x28] sm:$0xff]
    %v2245 = vld [vmem:[%s24 + $0x30] sm:$0xff]
    %v2246 = vld [vmem:[%s24 + $0x38] sm:$0xff]
    %v2247 = vld [vmem:[%s24 + $0x40] sm:$0xff]
    %v2248 = vld [vmem:[%s24 + $0x48] sm:$0xff]
    %v2249 = vld [vmem:[%s24 + $0x50] sm:$0xff]
    %v2250 = vld [vmem:[%s24 + $0x58] sm:$0xff]
    %v2251 = vld [vmem:[%s24 + $0x60] sm:$0xff]
    %v2252 = vld [vmem:[%s24 + $0x68] sm:$0xff]
    %v2253 = vld [vmem:[%s24 + $0x70] sm:$0xff]
    %v2254 = vld [vmem:[%s24 + $0x78] sm:$0xff]
    %v2255 = vld [vmem:[%s25] sm:$0x1]
    %v2257 = vperm.slane %v2255, 0
    %2259 = vmatpush.msra.mxu0 %v2254
    %2260 = vmatpush.msra.mxu0 %v2253
    %2261 = vmatpush.msra.mxu0 %v2252
    %2262 = vmatpush.msra.mxu0 %v2251
    %2263 = vmatpush.msra.mxu0 %v2250
    %2264 = vmatpush.msra.mxu0 %v2249
    %2265 = vmatpush.msra.mxu0 %v2248
    %2266 = vmatpush.msra.mxu0 %v2247
    %2267 = vmatpush.msra.mxu0 %v2246
    %2268 = vmatpush.msra.mxu0 %v2245
    %2269 = vmatpush.msra.mxu0 %v2244
    %2270 = vmatpush.msra.mxu0 %v2243
    %2271 = vmatpush.msra.mxu0 %v2242
    %2272 = vmatpush.msra.mxu0 %v2241
    %2273 = vmatpush.msra.mxu0 %v2240
    %2274 = vmatpush.msra.mxu0 %v2239
    %2275 = vmatmul.f32.gmra.mxu0 %v2238
    %v2276 = vpop.f32.mrf.mxu0
    %v2277 = vadd.f32 %v2257, %v2276
    %2278 = vdwg.mxu0
    %2279 = vst [vmem:[#allocation2] sm:$0x3] %v2277
    // Predicated region
    $region106: #{albert_forward.1} parent=1 // pred_check
      _
    $region107: #{albert_forward.1} parent=1 // pred_check_branch
      %2281 = sbr.rel (0) target = $region109
    $region108: #{albert_forward.1} parent=1 // pred_region
      %2283 = vsyncadd [#allocation3], 0
      %s2285 = sshll.u32 [#allocation2], 4
      %s2286 = int_to_ptr.vmem [resolvable:$true] %s2285
      %s2287 = sshll.u32 %s26, 4
      %s2288 = int_to_ptr.hbm [resolvable:$true] %s2287
      %2290 = dma.vmem_to_hbm [thread:$0]  %s2286, 32, %s2288, [#allocation3]
    $region109: #{albert_forward.1} parent=1 // pred_fallthru
      _
    // Predicated region
    $region110: #{albert_forward.1} parent=1 // pred_check
      _
    $region111: #{albert_forward.1} parent=1 // pred_check_branch
      %2292 = sbr.rel (0) target = $region113
    $region112: #{albert_forward.1} parent=1 // pred_region
      %2294 = dma.done [#allocation3], 32
    $region113: #{albert_forward.1} parent=1 // pred_fallthru
      _
    %2295 = vsyncpa [#allocation3], 1

</llo_original>
